<compile_context>
chip_gen: v5e
topology: v5e:2x2
jax: 0.10.0
libtpu: 0.0.40
codegen_flags: <defaults>
</compile_context>

<pallas_src>
import copy
import functools

import jax
import jax.numpy as jnp
from jax import lax
from jax.experimental import pallas as pl
from jax.experimental.pallas import tpu as pltpu


# ------------------------------ fused kernel ------------------------------
def _fused_cross_attn_kernel(x_ref, y_ref, wq_ref, wkv_ref, wproj_ref, temp_ref,
                             o_ref, qn_s, o_s, *, num_heads, q_block):
    """Whole forward for one batch element; activations are channel-major (C, L)."""
    f32 = jnp.float32
    eps2 = 1e-24  # (F.normalize eps = 1e-12)^2, clamp applied to the squared norm

    x = x_ref[...]                     # (C, L)   storage dtype (no upcast)
    y = y_ref[...]                     # (C, L)
    C, L = x_ref.shape
    hd = C // num_heads
    dt = x_ref.dtype                   # matmul operand dtype (bf16 stays bf16)

    # Input projections (bias=False), channel-major: q[o, l] = sum_i W[o, i] x[i, l].
    # Operands stay in storage dtype -> native MXU rate; accumulate in f32.
    q = jnp.dot(wq_ref[...], x, preferred_element_type=f32)       # (C, L)  f32
    kv = jnp.dot(wkv_ref[...], y, preferred_element_type=f32)     # (2C, L) f32

    # ---- pass 1: per-head L2-normalize q over the head-channel axis, fold in the
    #      per-head temperature (rsqrt on EUP + one broadcast multiply, no divides),
    #      park in a VMEM scratch so live ranges stay bounded.
    for h in range(num_heads):
        lo = h * hd
        qh = q[lo:lo + hd, :]                                      # (hd, L)
        inv_q = lax.rsqrt(jnp.maximum(jnp.sum(qh * qh, axis=0, keepdims=True), eps2))
        qn_s[lo:lo + hd, :] = (qh * (inv_q * temp_ref[0, h])).astype(qn_s.dtype)

    # One hoisted XLU transpose of the whole normalized q (instead of per-head .T).
    q_t = qn_s[...].T.astype(dt)                                   # (L, C)

    # ---- pass 2: per-head attention, tiled over the query axis.
    n_qblk = L // q_block
    for h in range(num_heads):
        lo = h * hd
        kh = kv[lo:lo + hd, :]                                     # (hd, L) f32
        vh = kv[C + lo:C + lo + hd, :].astype(dt)                  # (hd, L)
        inv_k = lax.rsqrt(jnp.maximum(jnp.sum(kh * kh, axis=0, keepdims=True), eps2))
        kn = (kh * inv_k).astype(dt)                               # (hd, L)

        for qb in range(n_qblk):
            qlo = qb * q_block
            # scores (q_block, L): NN matmul, f32 accumulate.
            s = jnp.dot(q_t[qlo:qlo + q_block, lo:lo + hd], kn,
                        preferred_element_type=f32)
            # keep row-max subtraction: temperature is learned, so scores are not
            # guaranteed O(1).
            s = s - jnp.max(s, axis=-1, keepdims=True)
            p = jnp.exp(s)                                         # (q_block, L) f32
            denom = jnp.sum(p, axis=-1, keepdims=True)             # (q_block, 1)
            # deferred softmax denominator: AV on un-normalized p (NT matmul), then
            # scale the small (q_block, hd) result with an EUP reciprocal.
            oh = lax.dot_general(p.astype(dt), vh, (((1,), (1,)), ((), ())),
                                 preferred_element_type=f32)       # (q_block, hd)
            oh = oh * pl.reciprocal(denom, approx=True)
            o_s[qlo:qlo + q_block, lo:lo + hd] = oh.astype(o_s.dtype)

    # ---- output projection on the merged heads (single full-contraction NT matmul):
    # proj[o, l] = sum_i Wp[o, i] * o_s[l, i]
    proj = lax.dot_general(wproj_ref[...], o_s[...].astype(dt),
                           (((1,), (1,)), ((), ())), preferred_element_type=f32)
    o_ref[...] = proj.astype(o_ref.dtype)                          # (C, L) lane-dense


def _pick_q_block(L):
    """Query-axis tile so the live score block is (q_block, L) instead of (L, L)."""
    if L <= 512:
        return L
    for blk in (512, 384, 256, 128):
        if L % blk == 0:
            return blk
    return L   # TODO(synk): pad / guard ragged L before production use.


def _fused_forward(x_cl, y_cl, wq, wkv, wproj, temperature, *, num_heads):
    """x_cl, y_cl: (B, C, L) channel-major tokens -> (B, C, L)."""
    B, C, L = x_cl.shape
    q_block = _pick_q_block(L)
    itemsize = jnp.dtype(x_cl.dtype).itemsize

    # Shape-derived VMEM budget (double-buffered activations + weights + f32 scratch
    # and intermediates), clamped to [32 MiB, 64 MiB] so it also fits v7x.
    est = (3 * 2 * C * L * itemsize          # x, y, out blocks (double-buffered)
           + 2 * 4 * C * C * itemsize        # wq + wkv + wproj (double-buffered)
           + 2 * C * L * 4                   # qn / merged-head scratch (f32)
           + 3 * C * L * 4                   # q, kv intermediates (f32)
           + 3 * q_block * L * 4)            # score / exp temporaries (f32)
    vmem_limit = int(min(max(2 * est, 32 * 1024 * 1024), 64 * 1024 * 1024))

    act_spec = pl.BlockSpec((None, C, L), lambda b: (b, 0, 0))
    kernel = functools.partial(_fused_cross_attn_kernel,
                               num_heads=num_heads, q_block=q_block)
    return pl.pallas_call(
        kernel,
        out_shape=jax.ShapeDtypeStruct((B, C, L), x_cl.dtype),
        grid_spec=pltpu.PrefetchScalarGridSpec(
            num_scalar_prefetch=0,
            grid=(B,),
            in_specs=[
                act_spec,                                            # x (per-batch tile)
                act_spec,                                            # y
                pl.BlockSpec((C, C), lambda b: (0, 0)),              # w_q  (resident)
                pl.BlockSpec((2 * C, C), lambda b: (0, 0)),          # w_kv (resident)
                pl.BlockSpec((C, C), lambda b: (0, 0)),              # w_proj
                pl.BlockSpec(memory_space=pltpu.MemorySpace.SMEM),   # temperature (1, nh)
            ],
            out_specs=act_spec,
            scratch_shapes=[
                pltpu.VMEM((C, L), jnp.float32),   # normalized+scaled q (channel-major)
                pltpu.VMEM((L, C), jnp.float32),   # merged head outputs (token-major)
            ],
        ),
        compiler_params=pltpu.CompilerParams(
            dimension_semantics=("parallel",),
            vmem_limit_bytes=vmem_limit),
    )(x_cl, y_cl, wq, wkv, wproj, temperature)


# ------------------------------ module wrapper ------------------------------
class SpatialUniCrossAttentionPallas:
    """JAX/Pallas port of SpatialUniCrossAttention forward (bias=False, module default)."""

    def __init__(self, input_dim=256, num_heads=8, bias=False, key=None,
                 dtype=jnp.float32):
        assert input_dim % num_heads == 0
        if bias:
            # TODO(synk): bias=True Linear variant not wired into the fused kernel
            # (the module default is bias=False).
            raise NotImplementedError("bias=True not implemented")
        self.input_dim = input_dim
        self.num_heads = num_heads
        if key is None:
            key = jax.random.PRNGKey(0)
        k1, k2, k3, k4 = jax.random.split(key, 4)
        C = input_dim
        s = 0.05
        # PyTorch nn.Linear weight layout: (out_features, in_features).
        self.w_q = (s * jax.random.normal(k1, (C, C), jnp.float32)).astype(dtype)
        self.w_kv = (s * jax.random.normal(k2, (2 * C, C), jnp.float32)).astype(dtype)
        self.w_proj = (s * jax.random.normal(k3, (C, C), jnp.float32)).astype(dtype)
        # nn.Parameter(torch.ones(num_heads, 1, 1)); randomized here so the per-head
        # temperature path is actually exercised by the test.  Kept f32 (SMEM scalars).
        self.temperature = 0.5 + jax.random.uniform(k4, (num_heads,), jnp.float32)

    def astype(self, dtype):
        """Return a copy with weights stored in `dtype` (e.g. bf16 for native MXU rate)."""
        other = copy.copy(self)
        other.w_q = self.w_q.astype(dtype)
        other.w_kv = self.w_kv.astype(dtype)
        other.w_proj = self.w_proj.astype(dtype)
        return other

    def __call__(self, x, y):
        temp = self.temperature.reshape(1, self.num_heads)
        if x.ndim == 4:
            B, C, H, W = x.shape
            x_cl = x.reshape(B, C, H * W)      # free reshape, stays channel-major
            y_cl = y.reshape(B, C, H * W)
            out = _fused_forward(x_cl, y_cl, self.w_q, self.w_kv, self.w_proj,
                                 temp, num_heads=self.num_heads)
            return out.reshape(B, C, H, W)
        # Token-mode (B, L, C): one transpose each way, then the same fused kernel.
        # TODO(synk): add an (L, C)-layout kernel variant to avoid the wrapper swapaxes
        # (extra HBM read+write) in token mode.
        x_cl = jnp.swapaxes(x, 1, 2)
        y_cl = jnp.swapaxes(y, 1, 2)
        out = _fused_forward(x_cl, y_cl, self.w_q, self.w_kv, self.w_proj,
                             temp, num_heads=self.num_heads)
        return jnp.swapaxes(out, 1, 2)


# ------------------------------ pure-JAX reference ------------------------------
def reference_forward(x, y, mod):
    """Direct transcription of the PyTorch forward (4D spatial mode), all f32."""
    B, C, H, W = x.shape
    L = H * W
    nh, hd = mod.num_heads, C // mod.num_heads
    wq = mod.w_q.astype(jnp.float32)
    wkv = mod.w_kv.astype(jnp.float32)
    wp = mod.w_proj.astype(jnp.float32)
    xt = x.reshape(B, C, L).transpose(0, 2, 1)     # b c h w -> b (h w) c
    yt = y.reshape(B, C, L).transpose(0, 2, 1)
    q = xt @ wq.T
    kv = yt @ wkv.T
    k, v = kv[..., :C], kv[..., C:]

    def heads(t):  # b l (head c) -> b head l c
        return t.reshape(B, L, nh, hd).transpose(0, 2, 1, 3)

    q, k, v = heads(q), heads(k), heads(v)
    eps = 1e-12
    q = q / jnp.maximum(jnp.linalg.norm(q, axis=-1, keepdims=True), eps)
    k = k / jnp.maximum(jnp.linalg.norm(k, axis=-1, keepdims=True), eps)
    attn = jnp.einsum("bhlc,bhmc->bhlm", q, k) * mod.temperature.reshape(1, nh, 1, 1)
    attn = jax.nn.softmax(attn, axis=-1)
    out = jnp.einsum("bhlm,bhmc->bhlc", attn, v)
    out = out.transpose(0, 2, 1, 3).reshape(B, L, C)   # b head l c -> b l (head c)
    out = out @ wp.T
    return out.transpose(0, 2, 1).reshape(B, C, H, W)


if __name__ == "__main__":
    key = jax.random.PRNGKey(0)
    kx, ky, kp = jax.random.split(key, 3)

    B, C, H, W = 2, 32, 16, 16
    num_heads = 4
    x = jax.random.normal(kx, (B, C, H, W), jnp.float32)
    y = jax.random.normal(ky, (B, C, H, W), jnp.float32)

    mod = SpatialUniCrossAttentionPallas(input_dim=C, num_heads=num_heads, key=kp)

    out = jax.block_until_ready(mod(x, y))
    assert out.shape == (B, C, H, W)

    ref = jax.block_until_ready(reference_forward(x, y, mod))
    err = float(jnp.max(jnp.abs(out - ref)))
    # Tolerance loosened vs a bit-exact softmax: the deferred-denominator path uses the
    # approximate EUP reciprocal (low-order-bit changes only).
    if not err < 1e-3:
        raise AssertionError(f"f32 mismatch vs reference, max abs err = {err}")

    # bf16 storage path: weights/activations stay bf16 into the MXU (no in-kernel
    # upcast); compared against the f32 reference with a loose tolerance.
    mod_bf16 = mod.astype(jnp.bfloat16)
    out_bf16 = jax.block_until_ready(
        mod_bf16(x.astype(jnp.bfloat16), y.astype(jnp.bfloat16)))
    err_bf16 = float(jnp.max(jnp.abs(out_bf16.astype(jnp.float32) - ref)))
    if not err_bf16 < 5e-2:
        raise AssertionError(f"bf16 mismatch vs reference, max abs err = {err_bf16}")

    print("KERNEL_OK")
</pallas_src>

<mosaic_0001>
module attributes {stable_mosaic.version = 11 : i64} {
  func.func @_fused_cross_attn_kernel(%arg0: i32, %arg1: memref<1x32x256xf32, #tpu.memory_space<vmem>>, %arg2: memref<1x32x256xf32, #tpu.memory_space<vmem>>, %arg3: memref<32x32xf32, #tpu.memory_space<vmem>>, %arg4: memref<64x32xf32, #tpu.memory_space<vmem>>, %arg5: memref<32x32xf32, #tpu.memory_space<vmem>>, %arg6: memref<1x4xf32, #tpu.memory_space<smem>>, %arg7: memref<1x32x256xf32, #tpu.memory_space<vmem>>, %arg8: memref<32x256xf32, #tpu.memory_space<vmem>>, %arg9: memref<256x32xf32, #tpu.memory_space<vmem>>) attributes {dimension_semantics = [#tpu.dimension_semantics<parallel>], iteration_bounds = array<i64: 2>, scalar_prefetch = 0 : i64, scratch_operands = 2 : i64, tpu.core_type = #tpu.core_type<tc>, window_params = [{transform_indices = @transform_0, window_bounds = array<i64: 1, 32, 256>}, {transform_indices = @transform_1, window_bounds = array<i64: 1, 32, 256>}, {pipeline_mode = #tpu.pipeline_mode<synchronous>, transform_indices = @transform_2, window_bounds = array<i64: 32, 32>}, {pipeline_mode = #tpu.pipeline_mode<synchronous>, transform_indices = @transform_3, window_bounds = array<i64: 64, 32>}, {pipeline_mode = #tpu.pipeline_mode<synchronous>, transform_indices = @transform_4, window_bounds = array<i64: 32, 32>}, {transform_indices = @transform_5, window_bounds = array<i64: 1, 4>}, {transform_indices = @transform_6, window_bounds = array<i64: 1, 32, 256>}]} {
    %c0 = arith.constant 0 : index
    %c0_0 = arith.constant 0 : index
    %c0_1 = arith.constant 0 : index
    %0 = vector.load %arg1[%c0, %c0_0, %c0_1] : memref<1x32x256xf32, #tpu.memory_space<vmem>>, vector<1x32x256xf32>
    %1 = vector.shape_cast %0 : vector<1x32x256xf32> to vector<32x256xf32>
    %c0_2 = arith.constant 0 : index
    %c0_3 = arith.constant 0 : index
    %c0_4 = arith.constant 0 : index
    %2 = vector.load %arg2[%c0_2, %c0_3, %c0_4] : memref<1x32x256xf32, #tpu.memory_space<vmem>>, vector<1x32x256xf32>
    %3 = vector.shape_cast %2 : vector<1x32x256xf32> to vector<32x256xf32>
    %c0_5 = arith.constant 0 : index
    %c0_6 = arith.constant 0 : index
    %4 = vector.load %arg3[%c0_5, %c0_6] : memref<32x32xf32, #tpu.memory_space<vmem>>, vector<32x32xf32>
    %cst = arith.constant dense<0.000000e+00> : vector<32x256xf32>
    %5 = tpu.matmul %4, %1, %cst {dimension_numbers = #tpu.dot_dimension_numbers<[1], [0], [0], [1], [0, 0, 1, 1], [], []>} : vector<32x32xf32>, vector<32x256xf32>, vector<32x256xf32> -> vector<32x256xf32>
    %c0_7 = arith.constant 0 : index
    %c0_8 = arith.constant 0 : index
    %6 = vector.load %arg4[%c0_7, %c0_8] : memref<64x32xf32, #tpu.memory_space<vmem>>, vector<64x32xf32>
    %cst_9 = arith.constant dense<0.000000e+00> : vector<64x256xf32>
    %7 = tpu.matmul %6, %3, %cst_9 {dimension_numbers = #tpu.dot_dimension_numbers<[1], [0], [0], [1], [0, 0, 1, 1], [], []>} : vector<64x32xf32>, vector<32x256xf32>, vector<64x256xf32> -> vector<64x256xf32>
    %8 = vector.extract_strided_slice %5 {offsets = [0, 0], sizes = [8, 256], strides = [1, 1]} : vector<32x256xf32> to vector<8x256xf32>
    %9 = arith.mulf %8, %8 : vector<8x256xf32>
    %cst_10 = arith.constant dense<0.000000e+00> : vector<256xf32>
    %10 = vector.multi_reduction <add>, %9, %cst_10 [0] : vector<8x256xf32> to vector<256xf32>
    %11 = vector.shape_cast %10 : vector<256xf32> to vector<1x256xf32>
    %cst_11 = arith.constant 1.000000e-24 : f32
    %12 = vector.broadcast %cst_11 : f32 to vector<1x256xf32>
    %13 = arith.maximumf %11, %12 : vector<1x256xf32>
    %14 = math.rsqrt %13 : vector<1x256xf32>
    %c0_12 = arith.constant 0 : index
    %c0_13 = arith.constant 0 : index
    %15 = memref.load %arg6[%c0_12, %c0_13] : memref<1x4xf32, #tpu.memory_space<smem>>
    %16 = vector.broadcast %15 : f32 to vector<1x256xf32>
    %17 = arith.mulf %14, %16 : vector<1x256xf32>
    %18 = vector.broadcast %17 : vector<1x256xf32> to vector<8x256xf32>
    %19 = arith.mulf %8, %18 : vector<8x256xf32>
    %c0_14 = arith.constant 0 : index
    %c0_15 = arith.constant 0 : index
    %20 = vector.load %arg8[%c0_14, %c0_15] : memref<32x256xf32, #tpu.memory_space<vmem>>, vector<8x256xf32>
    tpu.vector_store %arg8[%c0_14, %c0_15], %19 {strides = array<i32>} : memref<32x256xf32, #tpu.memory_space<vmem>>, vector<8x256xf32>,
    %21 = vector.extract_strided_slice %5 {offsets = [8, 0], sizes = [8, 256], strides = [1, 1]} : vector<32x256xf32> to vector<8x256xf32>
    %22 = arith.mulf %21, %21 : vector<8x256xf32>
    %cst_16 = arith.constant dense<0.000000e+00> : vector<256xf32>
    %23 = vector.multi_reduction <add>, %22, %cst_16 [0] : vector<8x256xf32> to vector<256xf32>
    %24 = vector.shape_cast %23 : vector<256xf32> to vector<1x256xf32>
    %cst_17 = arith.constant 1.000000e-24 : f32
    %25 = vector.broadcast %cst_17 : f32 to vector<1x256xf32>
    %26 = arith.maximumf %24, %25 : vector<1x256xf32>
    %27 = math.rsqrt %26 : vector<1x256xf32>
    %c0_18 = arith.constant 0 : index
    %c1 = arith.constant 1 : index
    %28 = memref.load %arg6[%c0_18, %c1] : memref<1x4xf32, #tpu.memory_space<smem>>
    %29 = vector.broadcast %28 : f32 to vector<1x256xf32>
    %30 = arith.mulf %27, %29 : vector<1x256xf32>
    %31 = vector.broadcast %30 : vector<1x256xf32> to vector<8x256xf32>
    %32 = arith.mulf %21, %31 : vector<8x256xf32>
    %c8 = arith.constant 8 : index
    %c0_19 = arith.constant 0 : index
    %33 = vector.load %arg8[%c8, %c0_19] : memref<32x256xf32, #tpu.memory_space<vmem>>, vector<8x256xf32>
    tpu.vector_store %arg8[%c8, %c0_19], %32 {strides = array<i32>} : memref<32x256xf32, #tpu.memory_space<vmem>>, vector<8x256xf32>,
    %34 = vector.extract_strided_slice %5 {offsets = [16, 0], sizes = [8, 256], strides = [1, 1]} : vector<32x256xf32> to vector<8x256xf32>
    %35 = arith.mulf %34, %34 : vector<8x256xf32>
    %cst_20 = arith.constant dense<0.000000e+00> : vector<256xf32>
    %36 = vector.multi_reduction <add>, %35, %cst_20 [0] : vector<8x256xf32> to vector<256xf32>
    %37 = vector.shape_cast %36 : vector<256xf32> to vector<1x256xf32>
    %cst_21 = arith.constant 1.000000e-24 : f32
    %38 = vector.broadcast %cst_21 : f32 to vector<1x256xf32>
    %39 = arith.maximumf %37, %38 : vector<1x256xf32>
    %40 = math.rsqrt %39 : vector<1x256xf32>
    %c0_22 = arith.constant 0 : index
    %c2 = arith.constant 2 : index
    %41 = memref.load %arg6[%c0_22, %c2] : memref<1x4xf32, #tpu.memory_space<smem>>
    %42 = vector.broadcast %41 : f32 to vector<1x256xf32>
    %43 = arith.mulf %40, %42 : vector<1x256xf32>
    %44 = vector.broadcast %43 : vector<1x256xf32> to vector<8x256xf32>
    %45 = arith.mulf %34, %44 : vector<8x256xf32>
    %c16 = arith.constant 16 : index
    %c0_23 = arith.constant 0 : index
    %46 = vector.load %arg8[%c16, %c0_23] : memref<32x256xf32, #tpu.memory_space<vmem>>, vector<8x256xf32>
    tpu.vector_store %arg8[%c16, %c0_23], %45 {strides = array<i32>} : memref<32x256xf32, #tpu.memory_space<vmem>>, vector<8x256xf32>,
    %47 = vector.extract_strided_slice %5 {offsets = [24, 0], sizes = [8, 256], strides = [1, 1]} : vector<32x256xf32> to vector<8x256xf32>
    %48 = arith.mulf %47, %47 : vector<8x256xf32>
    %cst_24 = arith.constant dense<0.000000e+00> : vector<256xf32>
    %49 = vector.multi_reduction <add>, %48, %cst_24 [0] : vector<8x256xf32> to vector<256xf32>
    %50 = vector.shape_cast %49 : vector<256xf32> to vector<1x256xf32>
    %cst_25 = arith.constant 1.000000e-24 : f32
    %51 = vector.broadcast %cst_25 : f32 to vector<1x256xf32>
    %52 = arith.maximumf %50, %51 : vector<1x256xf32>
    %53 = math.rsqrt %52 : vector<1x256xf32>
    %c0_26 = arith.constant 0 : index
    %c3 = arith.constant 3 : index
    %54 = memref.load %arg6[%c0_26, %c3] : memref<1x4xf32, #tpu.memory_space<smem>>
    %55 = vector.broadcast %54 : f32 to vector<1x256xf32>
    %56 = arith.mulf %53, %55 : vector<1x256xf32>
    %57 = vector.broadcast %56 : vector<1x256xf32> to vector<8x256xf32>
    %58 = arith.mulf %47, %57 : vector<8x256xf32>
    %c24 = arith.constant 24 : index
    %c0_27 = arith.constant 0 : index
    %59 = vector.load %arg8[%c24, %c0_27] : memref<32x256xf32, #tpu.memory_space<vmem>>, vector<8x256xf32>
    tpu.vector_store %arg8[%c24, %c0_27], %58 {strides = array<i32>} : memref<32x256xf32, #tpu.memory_space<vmem>>, vector<8x256xf32>,
    %c0_28 = arith.constant 0 : index
    %c0_29 = arith.constant 0 : index
    %60 = vector.load %arg8[%c0_28, %c0_29] : memref<32x256xf32, #tpu.memory_space<vmem>>, vector<32x256xf32>
    %61 = tpu.transpose %60, [1, 0] : vector<32x256xf32> -> vector<256x32xf32>
    %62 = vector.extract_strided_slice %7 {offsets = [0, 0], sizes = [8, 256], strides = [1, 1]} : vector<64x256xf32> to vector<8x256xf32>
    %63 = vector.extract_strided_slice %7 {offsets = [32, 0], sizes = [8, 256], strides = [1, 1]} : vector<64x256xf32> to vector<8x256xf32>
    %64 = arith.mulf %62, %62 : vector<8x256xf32>
    %cst_30 = arith.constant dense<0.000000e+00> : vector<256xf32>
    %65 = vector.multi_reduction <add>, %64, %cst_30 [0] : vector<8x256xf32> to vector<256xf32>
    %66 = vector.shape_cast %65 : vector<256xf32> to vector<1x256xf32>
    %cst_31 = arith.constant 1.000000e-24 : f32
    %67 = vector.broadcast %cst_31 : f32 to vector<1x256xf32>
    %68 = arith.maximumf %66, %67 : vector<1x256xf32>
    %69 = math.rsqrt %68 : vector<1x256xf32>
    %70 = vector.broadcast %69 : vector<1x256xf32> to vector<8x256xf32>
    %71 = arith.mulf %62, %70 : vector<8x256xf32>
    %72 = vector.extract_strided_slice %61 {offsets = [0, 0], sizes = [256, 8], strides = [1, 1]} : vector<256x32xf32> to vector<256x8xf32>
    %cst_32 = arith.constant dense<0.000000e+00> : vector<256x256xf32>
    %73 = tpu.matmul %72, %71, %cst_32 {dimension_numbers = #tpu.dot_dimension_numbers<[1], [0], [0], [1], [0, 0, 1, 1], [], []>} : vector<256x8xf32>, vector<8x256xf32>, vector<256x256xf32> -> vector<256x256xf32>
    %cst_33 = arith.constant dense<0xFF800000> : vector<256xf32>
    %74 = vector.multi_reduction <maximumf>, %73, %cst_33 [1] : vector<256x256xf32> to vector<256xf32>
    %75 = vector.shape_cast %74 : vector<256xf32> to vector<256x1xf32>
    %76 = vector.broadcast %75 : vector<256x1xf32> to vector<256x256xf32>
    %77 = arith.subf %73, %76 : vector<256x256xf32>
    %78 = math.exp %77 : vector<256x256xf32>
    %cst_34 = arith.constant dense<0.000000e+00> : vector<256xf32>
    %79 = vector.multi_reduction <add>, %78, %cst_34 [1] : vector<256x256xf32> to vector<256xf32>
    %80 = vector.shape_cast %79 : vector<256xf32> to vector<256x1xf32>
    %cst_35 = arith.constant dense<0.000000e+00> : vector<256x8xf32>
    %81 = tpu.matmul %78, %63, %cst_35 {dimension_numbers = #tpu.dot_dimension_numbers<[1], [1], [0], [0], [0, 0, 1, 0], [], []>} : vector<256x256xf32>, vector<8x256xf32>, vector<256x8xf32> -> vector<256x8xf32>
    %82 = tpu.reciprocal %80 {approx = true} : vector<256x1xf32> -> vector<256x1xf32>
    %83 = vector.broadcast %82 : vector<256x1xf32> to vector<256x8xf32>
    %84 = arith.mulf %81, %83 : vector<256x8xf32>
    %c0_36 = arith.constant 0 : index
    %c0_37 = arith.constant 0 : index
    %85 = vector.load %arg9[%c0_36, %c0_37] : memref<256x32xf32, #tpu.memory_space<vmem>>, vector<256x8xf32>
    tpu.vector_store %arg9[%c0_36, %c0_37], %84 {strides = array<i32>} : memref<256x32xf32, #tpu.memory_space<vmem>>, vector<256x8xf32>,
    %86 = vector.extract_strided_slice %7 {offsets = [8, 0], sizes = [8, 256], strides = [1, 1]} : vector<64x256xf32> to vector<8x256xf32>
    %87 = vector.extract_strided_slice %7 {offsets = [40, 0], sizes = [8, 256], strides = [1, 1]} : vector<64x256xf32> to vector<8x256xf32>
    %88 = arith.mulf %86, %86 : vector<8x256xf32>
    %cst_38 = arith.constant dense<0.000000e+00> : vector<256xf32>
    %89 = vector.multi_reduction <add>, %88, %cst_38 [0] : vector<8x256xf32> to vector<256xf32>
    %90 = vector.shape_cast %89 : vector<256xf32> to vector<1x256xf32>
    %cst_39 = arith.constant 1.000000e-24 : f32
    %91 = vector.broadcast %cst_39 : f32 to vector<1x256xf32>
    %92 = arith.maximumf %90, %91 : vector<1x256xf32>
    %93 = math.rsqrt %92 : vector<1x256xf32>
    %94 = vector.broadcast %93 : vector<1x256xf32> to vector<8x256xf32>
    %95 = arith.mulf %86, %94 : vector<8x256xf32>
    %96 = vector.extract_strided_slice %61 {offsets = [0, 8], sizes = [256, 8], strides = [1, 1]} : vector<256x32xf32> to vector<256x8xf32>
    %cst_40 = arith.constant dense<0.000000e+00> : vector<256x256xf32>
    %97 = tpu.matmul %96, %95, %cst_40 {dimension_numbers = #tpu.dot_dimension_numbers<[1], [0], [0], [1], [0, 0, 1, 1], [], []>} : vector<256x8xf32>, vector<8x256xf32>, vector<256x256xf32> -> vector<256x256xf32>
    %cst_41 = arith.constant dense<0xFF800000> : vector<256xf32>
    %98 = vector.multi_reduction <maximumf>, %97, %cst_41 [1] : vector<256x256xf32> to vector<256xf32>
    %99 = vector.shape_cast %98 : vector<256xf32> to vector<256x1xf32>
    %100 = vector.broadcast %99 : vector<256x1xf32> to vector<256x256xf32>
    %101 = arith.subf %97, %100 : vector<256x256xf32>
    %102 = math.exp %101 : vector<256x256xf32>
    %cst_42 = arith.constant dense<0.000000e+00> : vector<256xf32>
    %103 = vector.multi_reduction <add>, %102, %cst_42 [1] : vector<256x256xf32> to vector<256xf32>
    %104 = vector.shape_cast %103 : vector<256xf32> to vector<256x1xf32>
    %cst_43 = arith.constant dense<0.000000e+00> : vector<256x8xf32>
    %105 = tpu.matmul %102, %87, %cst_43 {dimension_numbers = #tpu.dot_dimension_numbers<[1], [1], [0], [0], [0, 0, 1, 0], [], []>} : vector<256x256xf32>, vector<8x256xf32>, vector<256x8xf32> -> vector<256x8xf32>
    %106 = tpu.reciprocal %104 {approx = true} : vector<256x1xf32> -> vector<256x1xf32>
    %107 = vector.broadcast %106 : vector<256x1xf32> to vector<256x8xf32>
    %108 = arith.mulf %105, %107 : vector<256x8xf32>
    %c0_44 = arith.constant 0 : index
    %c8_45 = arith.constant 8 : index
    %109 = vector.load %arg9[%c0_44, %c8_45] : memref<256x32xf32, #tpu.memory_space<vmem>>, vector<256x8xf32>
    tpu.vector_store %arg9[%c0_44, %c8_45], %108 {strides = array<i32>} : memref<256x32xf32, #tpu.memory_space<vmem>>, vector<256x8xf32>,
    %110 = vector.extract_strided_slice %7 {offsets = [16, 0], sizes = [8, 256], strides = [1, 1]} : vector<64x256xf32> to vector<8x256xf32>
    %111 = vector.extract_strided_slice %7 {offsets = [48, 0], sizes = [8, 256], strides = [1, 1]} : vector<64x256xf32> to vector<8x256xf32>
    %112 = arith.mulf %110, %110 : vector<8x256xf32>
    %cst_46 = arith.constant dense<0.000000e+00> : vector<256xf32>
    %113 = vector.multi_reduction <add>, %112, %cst_46 [0] : vector<8x256xf32> to vector<256xf32>
    %114 = vector.shape_cast %113 : vector<256xf32> to vector<1x256xf32>
    %cst_47 = arith.constant 1.000000e-24 : f32
    %115 = vector.broadcast %cst_47 : f32 to vector<1x256xf32>
    %116 = arith.maximumf %114, %115 : vector<1x256xf32>
    %117 = math.rsqrt %116 : vector<1x256xf32>
    %118 = vector.broadcast %117 : vector<1x256xf32> to vector<8x256xf32>
    %119 = arith.mulf %110, %118 : vector<8x256xf32>
    %120 = vector.extract_strided_slice %61 {offsets = [0, 16], sizes = [256, 8], strides = [1, 1]} : vector<256x32xf32> to vector<256x8xf32>
    %cst_48 = arith.constant dense<0.000000e+00> : vector<256x256xf32>
    %121 = tpu.matmul %120, %119, %cst_48 {dimension_numbers = #tpu.dot_dimension_numbers<[1], [0], [0], [1], [0, 0, 1, 1], [], []>} : vector<256x8xf32>, vector<8x256xf32>, vector<256x256xf32> -> vector<256x256xf32>
    %cst_49 = arith.constant dense<0xFF800000> : vector<256xf32>
    %122 = vector.multi_reduction <maximumf>, %121, %cst_49 [1] : vector<256x256xf32> to vector<256xf32>
    %123 = vector.shape_cast %122 : vector<256xf32> to vector<256x1xf32>
    %124 = vector.broadcast %123 : vector<256x1xf32> to vector<256x256xf32>
    %125 = arith.subf %121, %124 : vector<256x256xf32>
    %126 = math.exp %125 : vector<256x256xf32>
    %cst_50 = arith.constant dense<0.000000e+00> : vector<256xf32>
    %127 = vector.multi_reduction <add>, %126, %cst_50 [1] : vector<256x256xf32> to vector<256xf32>
    %128 = vector.shape_cast %127 : vector<256xf32> to vector<256x1xf32>
    %cst_51 = arith.constant dense<0.000000e+00> : vector<256x8xf32>
    %129 = tpu.matmul %126, %111, %cst_51 {dimension_numbers = #tpu.dot_dimension_numbers<[1], [1], [0], [0], [0, 0, 1, 0], [], []>} : vector<256x256xf32>, vector<8x256xf32>, vector<256x8xf32> -> vector<256x8xf32>
    %130 = tpu.reciprocal %128 {approx = true} : vector<256x1xf32> -> vector<256x1xf32>
    %131 = vector.broadcast %130 : vector<256x1xf32> to vector<256x8xf32>
    %132 = arith.mulf %129, %131 : vector<256x8xf32>
    %c0_52 = arith.constant 0 : index
    %c16_53 = arith.constant 16 : index
    %133 = vector.load %arg9[%c0_52, %c16_53] : memref<256x32xf32, #tpu.memory_space<vmem>>, vector<256x8xf32>
    tpu.vector_store %arg9[%c0_52, %c16_53], %132 {strides = array<i32>} : memref<256x32xf32, #tpu.memory_space<vmem>>, vector<256x8xf32>,
    %134 = vector.extract_strided_slice %7 {offsets = [24, 0], sizes = [8, 256], strides = [1, 1]} : vector<64x256xf32> to vector<8x256xf32>
    %135 = vector.extract_strided_slice %7 {offsets = [56, 0], sizes = [8, 256], strides = [1, 1]} : vector<64x256xf32> to vector<8x256xf32>
    %136 = arith.mulf %134, %134 : vector<8x256xf32>
    %cst_54 = arith.constant dense<0.000000e+00> : vector<256xf32>
    %137 = vector.multi_reduction <add>, %136, %cst_54 [0] : vector<8x256xf32> to vector<256xf32>
    %138 = vector.shape_cast %137 : vector<256xf32> to vector<1x256xf32>
    %cst_55 = arith.constant 1.000000e-24 : f32
    %139 = vector.broadcast %cst_55 : f32 to vector<1x256xf32>
    %140 = arith.maximumf %138, %139 : vector<1x256xf32>
    %141 = math.rsqrt %140 : vector<1x256xf32>
    %142 = vector.broadcast %141 : vector<1x256xf32> to vector<8x256xf32>
    %143 = arith.mulf %134, %142 : vector<8x256xf32>
    %144 = vector.extract_strided_slice %61 {offsets = [0, 24], sizes = [256, 8], strides = [1, 1]} : vector<256x32xf32> to vector<256x8xf32>
    %cst_56 = arith.constant dense<0.000000e+00> : vector<256x256xf32>
    %145 = tpu.matmul %144, %143, %cst_56 {dimension_numbers = #tpu.dot_dimension_numbers<[1], [0], [0], [1], [0, 0, 1, 1], [], []>} : vector<256x8xf32>, vector<8x256xf32>, vector<256x256xf32> -> vector<256x256xf32>
    %cst_57 = arith.constant dense<0xFF800000> : vector<256xf32>
    %146 = vector.multi_reduction <maximumf>, %145, %cst_57 [1] : vector<256x256xf32> to vector<256xf32>
    %147 = vector.shape_cast %146 : vector<256xf32> to vector<256x1xf32>
    %148 = vector.broadcast %147 : vector<256x1xf32> to vector<256x256xf32>
    %149 = arith.subf %145, %148 : vector<256x256xf32>
    %150 = math.exp %149 : vector<256x256xf32>
    %cst_58 = arith.constant dense<0.000000e+00> : vector<256xf32>
    %151 = vector.multi_reduction <add>, %150, %cst_58 [1] : vector<256x256xf32> to vector<256xf32>
    %152 = vector.shape_cast %151 : vector<256xf32> to vector<256x1xf32>
    %cst_59 = arith.constant dense<0.000000e+00> : vector<256x8xf32>
    %153 = tpu.matmul %150, %135, %cst_59 {dimension_numbers = #tpu.dot_dimension_numbers<[1], [1], [0], [0], [0, 0, 1, 0], [], []>} : vector<256x256xf32>, vector<8x256xf32>, vector<256x8xf32> -> vector<256x8xf32>
    %154 = tpu.reciprocal %152 {approx = true} : vector<256x1xf32> -> vector<256x1xf32>
    %155 = vector.broadcast %154 : vector<256x1xf32> to vector<256x8xf32>
    %156 = arith.mulf %153, %155 : vector<256x8xf32>
    %c0_60 = arith.constant 0 : index
    %c24_61 = arith.constant 24 : index
    %157 = vector.load %arg9[%c0_60, %c24_61] : memref<256x32xf32, #tpu.memory_space<vmem>>, vector<256x8xf32>
    tpu.vector_store %arg9[%c0_60, %c24_61], %156 {strides = array<i32>} : memref<256x32xf32, #tpu.memory_space<vmem>>, vector<256x8xf32>,
    %c0_62 = arith.constant 0 : index
    %c0_63 = arith.constant 0 : index
    %158 = vector.load %arg5[%c0_62, %c0_63] : memref<32x32xf32, #tpu.memory_space<vmem>>, vector<32x32xf32>
    %c0_64 = arith.constant 0 : index
    %c0_65 = arith.constant 0 : index
    %159 = vector.load %arg9[%c0_64, %c0_65] : memref<256x32xf32, #tpu.memory_space<vmem>>, vector<256x32xf32>
    %cst_66 = arith.constant dense<0.000000e+00> : vector<32x256xf32>
    %160 = tpu.matmul %158, %159, %cst_66 {dimension_numbers = #tpu.dot_dimension_numbers<[1], [1], [0], [0], [0, 0, 1, 0], [], []>} : vector<32x32xf32>, vector<256x32xf32>, vector<32x256xf32> -> vector<32x256xf32>
    %c0_67 = arith.constant 0 : index
    %c0_68 = arith.constant 0 : index
    %c0_69 = arith.constant 0 : index
    %161 = vector.load %arg7[%c0_67, %c0_68, %c0_69] : memref<1x32x256xf32, #tpu.memory_space<vmem>>, vector<1x32x256xf32>
    %162 = vector.shape_cast %161 : vector<1x32x256xf32> to vector<32x256xf32>
    %163 = vector.shape_cast %160 : vector<32x256xf32> to vector<1x32x256xf32>
    tpu.vector_store %arg7[%c0_67, %c0_68, %c0_69], %163 {strides = array<i32>} : memref<1x32x256xf32, #tpu.memory_space<vmem>>, vector<1x32x256xf32>,
    return
  }
  func.func @transform_0(%arg0: i32) -> (i32, i32, i32) {
    %c0_i32 = arith.constant 0 : i32
    %c0_i32_0 = arith.constant 0 : i32
    %c0_i32_1 = arith.constant 0 : i32
    return %arg0, %c0_i32, %c0_i32_0 : i32, i32, i32
  }
  func.func @transform_1(%arg0: i32) -> (i32, i32, i32) {
    %c0_i32 = arith.constant 0 : i32
    %c0_i32_0 = arith.constant 0 : i32
    %c0_i32_1 = arith.constant 0 : i32
    return %arg0, %c0_i32, %c0_i32_0 : i32, i32, i32
  }
  func.func @transform_2(%arg0: i32) -> (i32, i32) {
    %c0_i32 = arith.constant 0 : i32
    %c0_i32_0 = arith.constant 0 : i32
    %c0_i32_1 = arith.constant 0 : i32
    return %c0_i32, %c0_i32_0 : i32, i32
  }
  func.func @transform_3(%arg0: i32) -> (i32, i32) {
    %c0_i32 = arith.constant 0 : i32
    %c0_i32_0 = arith.constant 0 : i32
    %c0_i32_1 = arith.constant 0 : i32
    return %c0_i32, %c0_i32_0 : i32, i32
  }
  func.func @transform_4(%arg0: i32) -> (i32, i32) {
    %c0_i32 = arith.constant 0 : i32
    %c0_i32_0 = arith.constant 0 : i32
    %c0_i32_1 = arith.constant 0 : i32
    return %c0_i32, %c0_i32_0 : i32, i32
  }
  func.func @transform_5(%arg0: i32) -> (i32, i32) {
    %c0_i32 = arith.constant 0 : i32
    %c0_i32_0 = arith.constant 0 : i32
    %c0_i32_1 = arith.constant 0 : i32
    return %c0_i32, %c0_i32_0 : i32, i32
  }
  func.func @transform_6(%arg0: i32) -> (i32, i32, i32) {
    %c0_i32 = arith.constant 0 : i32
    %c0_i32_0 = arith.constant 0 : i32
    %c0_i32_1 = arith.constant 0 : i32
    return %arg0, %c0_i32, %c0_i32_0 : i32, i32, i32
  }
}

</mosaic_0001>

<llo_original>
// kernel: tpu_custom_call.1
$region0: #{tpu_custom_call.1}
  #allocation0 [shape = 'u32[]', space=smem, size = 0x4, offset = 0x4, fixed_abs, tag = 'smem constant byte address 0x4 - core index']
  #allocation1 [shape = 'u32[72,128]{1,0:T(1,128)}', space=vmem, size = 0x9000, scoped, tag = 'internal scratch']
  #allocation2 [shape = 'f32[32,256]{1,0:T(8,128)}', space=vmem, size = 0x8000, scoped, tag = 'scratch operand']
  #allocation3 [shape = 'f32[256,32]{1,0:T(8,128)}', space=vmem, size = 0x20000, scoped, tag = 'scratch operand']
  %s0 = inlined_call_operand.hbm [shape: f32[2,32,256], index: 0, kind: input, shape index: {}]
  %s1 = inlined_call_operand.hbm [shape: f32[2,32,256], index: 1, kind: input, shape index: {}]
  %s2 = inlined_call_operand.vmem [shape: f32[32,32], index: 2, kind: input, shape index: {}]
  %s3 = inlined_call_operand.vmem [shape: f32[64,32], index: 3, kind: input, shape index: {}]
  %s4 = inlined_call_operand.vmem [shape: f32[32,32], index: 4, kind: input, shape index: {}]
  %s5 = inlined_call_operand.vmem [shape: f32[1,4], index: 5, kind: input, shape index: {}]
  %s6 = inlined_call_operand.hbm [shape: f32[2,32,256], index: 6, kind: output, shape index: {}]
  %s7 = sld [smem:[#allocation0]]
  $region69: #{tpu_custom_call.1} parent=0
    _
  %s9 = ssub.s32 1, %s7
  %s10 = scalar_select 0, %s9, %s7
  $region1: #{tpu_custom_call.1} parent=0
    #allocation4 [shape = 'u8[65536]{0}', space=vmem, size = 0x10000, scoped, tag = 'input window, operand 0']
    #allocation5 [shape = 's32[2]{0}', space=sflag, size = 0x8, scoped, tag = 'scoped memory for tpu_custom_call.1']
    #allocation6 [shape = 's32[2]{0}', space=sflag, size = 0x8, scoped, tag = 'scoped memory for tpu_custom_call.1']
    #allocation7 [shape = 's32[2]{0}', space=sflag, size = 0x8, scoped, tag = 'scoped memory for tpu_custom_call.1']
    #allocation8 [shape = 'u8[65536]{0}', space=vmem, size = 0x10000, scoped, tag = 'input window, operand 1']
    #allocation9 [shape = 's32[2]{0}', space=sflag, size = 0x8, scoped, tag = 'scoped memory for tpu_custom_call.1']
    #allocation10 [shape = 'u8[512]{0}', space=smem, size = 0x200, scoped, tag = 'input window, operand 5, single buffered']
    #allocation11 [shape = 'u8[65536]{0}', space=vmem, size = 0x10000, scoped, tag = 'output window, operand 0']
    %11 = vsyncpa [#allocation5], 0
    %s12 = scalar_lea.sflag [#allocation5], 1
    %13 = vsyncpa %s12, 0
    %14 = vsyncpa [#allocation9], 0
    %s15 = scalar_lea.sflag [#allocation9], 1
    %16 = vsyncpa %s15, 0
    %17 = vsyncpa [#allocation7], 0
    %18 = vsyncpa [#allocation6], 0
    %s19 = scalar_lea.sflag [#allocation6], 1
    %20 = vsyncpa %s19, 0
    loop: start=0, step=1, limit=4
    $region2: #{tpu_custom_call.1} parent=1 // loop_pre_header
      _
    $region3: #{tpu_custom_call.1} parent=1 // loop_header
      %s22 = sphi 0, %s26
      %p23 = scmp.ge.s32.totalorder %s22, 4
      %s32 = sphi 0, %s34
      %s35 = sphi 0, %s32
      %s36 = sphi 0, %s35
      %s52 = sphi 0, %s36
      %s58 = sphi 0, %s60
      %s61 = sphi 0, %s58
      %s62 = sphi 0, %s61
      %s78 = sphi 0, %s62
      %s82 = sphi 0, %s82
      %s84 = sphi 0, %s82
      %s85 = sphi 0, %s84
      %s99 = sphi 0, %s85
      %s103 = sphi 0, %s103
      %s105 = sphi 0, %s103
      %s106 = sphi 0, %s105
      %s120 = sphi 0, %s106
      %s124 = sphi 0, %s124
      %s126 = sphi 0, %s124
      %s127 = sphi 0, %s126
      %s141 = sphi 0, %s127
      %s145 = sphi 0, %s145
      %s147 = sphi 0, %s145
      %s148 = sphi 0, %s147
      %s162 = sphi 0, %s148
      %s168 = sphi 0, %s170
      %s171 = sphi 0, %s168
      %s172 = sphi 0, %s171
      %s188 = sphi 0, %s172
    $region4: #{tpu_custom_call.1} parent=1 // loop_header_branch
      %25 = sbr.rel (%p23) target = $region8
    $region5: #{tpu_custom_call.1} parent=1 // loop_body
      %s27 = ssub.s32 %s22, 1
      %s28 = ssub.s32 %s22, 2
      %s29 = sadd.s32 %s22, 1
      %s30 = ssub.s32 %s22, %s29
      %p31 = scmp.eq.s32.totalorder %s30, 0
      %s33 = sadd.s32 %s32, 1
      %s34 = scalar_select %p31, %s32, %s33
      %p37 = pneg %p31
      %p38 = scmp.eq.s32.totalorder %s22, 1
      %p39 = por %p37, %p38
      %p40 = scmp.ne.s32.totalorder %s32, %s35
      %p41 = scmp.eq.s32.totalorder %s22, 0
      %p42 = por %p40, %p41
      %p43 = scmp.ne.s32.totalorder %s32, %s35
      %p44 = scmp.eq.s32.totalorder %s27, 1
      %p45 = por %p43, %p44
      %p46 = scmp.ne.s32.totalorder %s35, %s36
      %p47 = scmp.eq.s32.totalorder %s27, 0
      %p48 = por %p46, %p47
      %p49 = scmp.ne.s32.totalorder %s35, %s36
      %p50 = scmp.eq.s32.totalorder %s28, 1
      %p51 = por %p49, %p50
      %p53 = scmp.ne.s32.totalorder %s36, %s52
      %p54 = scmp.eq.s32.totalorder %s28, 0
      %p55 = por %p53, %p54
      %s56 = ssub.s32 %s22, %s29
      %p57 = scmp.eq.s32.totalorder %s56, 0
      %s59 = sadd.s32 %s58, 1
      %s60 = scalar_select %p57, %s58, %s59
      %p63 = pneg %p57
      %p64 = scmp.eq.s32.totalorder %s22, 1
      %p65 = por %p63, %p64
      %p66 = scmp.ne.s32.totalorder %s58, %s61
      %p67 = scmp.eq.s32.totalorder %s22, 0
      %p68 = por %p66, %p67
      %p69 = scmp.ne.s32.totalorder %s58, %s61
      %p70 = scmp.eq.s32.totalorder %s27, 1
      %p71 = por %p69, %p70
      %p72 = scmp.ne.s32.totalorder %s61, %s62
      %p73 = scmp.eq.s32.totalorder %s27, 0
      %p74 = por %p72, %p73
      %p75 = scmp.ne.s32.totalorder %s61, %s62
      %p76 = scmp.eq.s32.totalorder %s28, 1
      %p77 = por %p75, %p76
      %p79 = scmp.ne.s32.totalorder %s62, %s78
      %p80 = scmp.eq.s32.totalorder %s28, 0
      %p81 = por %p79, %p80
      %s83 = sadd.s32 %s82, 1
      %p86 = scmp.eq.s32.totalorder %s22, 1
      %p87 = scmp.ne.s32.totalorder %s82, %s84
      %p88 = scmp.eq.s32.totalorder %s22, 0
      %p89 = por %p87, %p88
      %p90 = scmp.ne.s32.totalorder %s82, %s84
      %p91 = scmp.eq.s32.totalorder %s27, 1
      %p92 = por %p90, %p91
      %p93 = scmp.ne.s32.totalorder %s84, %s85
      %p94 = scmp.eq.s32.totalorder %s27, 0
      %p95 = por %p93, %p94
      %p96 = scmp.ne.s32.totalorder %s84, %s85
      %p97 = scmp.eq.s32.totalorder %s28, 1
      %p98 = por %p96, %p97
      %p100 = scmp.ne.s32.totalorder %s85, %s99
      %p101 = scmp.eq.s32.totalorder %s28, 0
      %p102 = por %p100, %p101
      %s104 = sadd.s32 %s103, 1
      %p107 = scmp.eq.s32.totalorder %s22, 1
      %p108 = scmp.ne.s32.totalorder %s103, %s105
      %p109 = scmp.eq.s32.totalorder %s22, 0
      %p110 = por %p108, %p109
      %p111 = scmp.ne.s32.totalorder %s103, %s105
      %p112 = scmp.eq.s32.totalorder %s27, 1
      %p113 = por %p111, %p112
      %p114 = scmp.ne.s32.totalorder %s105, %s106
      %p115 = scmp.eq.s32.totalorder %s27, 0
      %p116 = por %p114, %p115
      %p117 = scmp.ne.s32.totalorder %s105, %s106
      %p118 = scmp.eq.s32.totalorder %s28, 1
      %p119 = por %p117, %p118
      %p121 = scmp.ne.s32.totalorder %s106, %s120
      %p122 = scmp.eq.s32.totalorder %s28, 0
      %p123 = por %p121, %p122
      %s125 = sadd.s32 %s124, 1
      %p128 = scmp.eq.s32.totalorder %s22, 1
      %p129 = scmp.ne.s32.totalorder %s124, %s126
      %p130 = scmp.eq.s32.totalorder %s22, 0
      %p131 = por %p129, %p130
      %p132 = scmp.ne.s32.totalorder %s124, %s126
      %p133 = scmp.eq.s32.totalorder %s27, 1
      %p134 = por %p132, %p133
      %p135 = scmp.ne.s32.totalorder %s126, %s127
      %p136 = scmp.eq.s32.totalorder %s27, 0
      %p137 = por %p135, %p136
      %p138 = scmp.ne.s32.totalorder %s126, %s127
      %p139 = scmp.eq.s32.totalorder %s28, 1
      %p140 = por %p138, %p139
      %p142 = scmp.ne.s32.totalorder %s127, %s141
      %p143 = scmp.eq.s32.totalorder %s28, 0
      %p144 = por %p142, %p143
      %s146 = sadd.s32 %s145, 1
      %p149 = scmp.eq.s32.totalorder %s22, 1
      %p150 = scmp.ne.s32.totalorder %s145, %s147
      %p151 = scmp.eq.s32.totalorder %s22, 0
      %p152 = por %p150, %p151
      %p153 = scmp.ne.s32.totalorder %s145, %s147
      %p154 = scmp.eq.s32.totalorder %s27, 1
      %p155 = por %p153, %p154
      %p156 = scmp.ne.s32.totalorder %s147, %s148
      %p157 = scmp.eq.s32.totalorder %s27, 0
      %p158 = por %p156, %p157
      %p159 = scmp.ne.s32.totalorder %s147, %s148
      %p160 = scmp.eq.s32.totalorder %s28, 1
      %p161 = por %p159, %p160
      %p163 = scmp.ne.s32.totalorder %s148, %s162
      %p164 = scmp.eq.s32.totalorder %s28, 0
      %p165 = por %p163, %p164
      %s166 = ssub.s32 %s22, %s29
      %p167 = scmp.eq.s32.totalorder %s166, 0
      %s169 = sadd.s32 %s168, 1
      %s170 = scalar_select %p167, %s168, %s169
      %p173 = pneg %p167
      %p174 = scmp.eq.s32.totalorder %s22, 1
      %p175 = por %p173, %p174
      %p176 = scmp.ne.s32.totalorder %s168, %s171
      %p177 = scmp.eq.s32.totalorder %s22, 0
      %p178 = por %p176, %p177
      %p179 = scmp.ne.s32.totalorder %s168, %s171
      %p180 = scmp.eq.s32.totalorder %s27, 1
      %p181 = por %p179, %p180
      %p182 = scmp.ne.s32.totalorder %s171, %s172
      %p183 = scmp.eq.s32.totalorder %s27, 0
      %p184 = por %p182, %p183
      %p185 = scmp.ne.s32.totalorder %s171, %s172
      %p186 = scmp.eq.s32.totalorder %s28, 1
      %p187 = por %p185, %p186
      %p189 = scmp.ne.s32.totalorder %s172, %s188
      %p190 = scmp.eq.s32.totalorder %s28, 0
      %p191 = por %p189, %p190
      %p192 = scmp.le.s32.totalorder 1, %s22
      %p193 = scmp.lt.s32.totalorder %s22, 3
      %p194 = pnand %p192, %p193
      %p195 = pneg %p194
      // Predicated region
      $region9: #{tpu_custom_call.1} parent=5 // pred_check
        _
      $region10: #{tpu_custom_call.1} parent=5 // pred_check_branch
        %197 = sbr.rel (%p194) target = $region12
      $region11: #{tpu_custom_call.1} parent=5 // pred_region
        %s198 = ssub.s32 %s22, 1
        // Predicated region
        $region13: #{tpu_custom_call.1} parent=11 // pred_check
          %p199 = pneg %p95
        $region14: #{tpu_custom_call.1} parent=11 // pred_check_branch
          %201 = sbr.rel (%p199) target = $region16
        $region15: #{tpu_custom_call.1} parent=11 // pred_region
          _
        $region16: #{tpu_custom_call.1} parent=11 // pred_fallthru
          _
        // Predicated region
        $region17: #{tpu_custom_call.1} parent=11 // pred_check
          %p202 = pneg %p116
        $region18: #{tpu_custom_call.1} parent=11 // pred_check_branch
          %204 = sbr.rel (%p202) target = $region20
        $region19: #{tpu_custom_call.1} parent=11 // pred_region
          _
        $region20: #{tpu_custom_call.1} parent=11 // pred_fallthru
          _
        // Predicated region
        $region21: #{tpu_custom_call.1} parent=11 // pred_check
          %p205 = pneg %p137
        $region22: #{tpu_custom_call.1} parent=11 // pred_check_branch
          %207 = sbr.rel (%p205) target = $region24
        $region23: #{tpu_custom_call.1} parent=11 // pred_region
          _
        $region24: #{tpu_custom_call.1} parent=11 // pred_fallthru
          _
        // Predicated region
        $region25: #{tpu_custom_call.1} parent=11 // pred_check
          %p208 = pneg %p158
        $region26: #{tpu_custom_call.1} parent=11 // pred_check_branch
          %210 = sbr.rel (%p208) target = $region28
        $region27: #{tpu_custom_call.1} parent=11 // pred_region
          %212 = vsyncadd [#allocation7], 0
          %s214 = sshll.u32 %s5, 4
          %s215 = int_to_ptr.vmem [resolvable:$true] %s214
          %217 = dma.vmem_to_smem %s215, 16, [#allocation10], [#allocation7]
        $region28: #{tpu_custom_call.1} parent=11 // pred_fallthru
          _
      $region12: #{tpu_custom_call.1} parent=5 // pred_fallthru
        _
      %p218 = scmp.lt.s32.totalorder %s22, 2
      // Predicated region
      $region29: #{tpu_custom_call.1} parent=5 // pred_check
        %p219 = pneg %p218
      $region30: #{tpu_custom_call.1} parent=5 // pred_check_branch
        %221 = sbr.rel (%p219) target = $region32
      $region31: #{tpu_custom_call.1} parent=5 // pred_region
        // Predicated region
        $region33: #{tpu_custom_call.1} parent=31 // pred_check
          %p222 = pneg %p42
        $region34: #{tpu_custom_call.1} parent=31 // pred_check_branch
          %224 = sbr.rel (%p222) target = $region36
        $region35: #{tpu_custom_call.1} parent=31 // pred_region
          %s225 = sand.u32 %s32, 1
          %s226 = scalar_lea.sflag [#allocation5], %s225
          %s227 = sand.u32 %s32, 1
          %s228 = smul.addr %s227, 64
          %s229 = scalar_lea.vmem [#allocation4], %s228
          %231 = vsyncadd %s226, 0
          %s232 = smul.addr %s22, 8
          %s233 = smul.addr %s232, 8
          %s234 = scalar_lea.hbm %s0, %s233
          %s235 = sshll.u32 %s234, 4
          %s236 = int_to_ptr.hbm [resolvable:$true] %s235
          %s237 = sshll.u32 %s229, 4
          %s238 = int_to_ptr.vmem [resolvable:$true] %s237
          %243 = dma.hbm_to_vmem [thread:$0]  %s236, 1024, %s238, %s226, 256, 256, 16
        $region36: #{tpu_custom_call.1} parent=31 // pred_fallthru
          _
        // Predicated region
        $region37: #{tpu_custom_call.1} parent=31 // pred_check
          %p244 = pneg %p68
        $region38: #{tpu_custom_call.1} parent=31 // pred_check_branch
          %246 = sbr.rel (%p244) target = $region40
        $region39: #{tpu_custom_call.1} parent=31 // pred_region
          %s247 = sand.u32 %s58, 1
          %s248 = scalar_lea.sflag [#allocation9], %s247
          %s249 = sand.u32 %s58, 1
          %s250 = smul.addr %s249, 64
          %s251 = scalar_lea.vmem [#allocation8], %s250
          %253 = vsyncadd %s248, 0
          %s254 = smul.addr %s22, 8
          %s255 = smul.addr %s254, 8
          %s256 = scalar_lea.hbm %s1, %s255
          %s257 = sshll.u32 %s256, 4
          %s258 = int_to_ptr.hbm [resolvable:$true] %s257
          %s259 = sshll.u32 %s251, 4
          %s260 = int_to_ptr.vmem [resolvable:$true] %s259
          %265 = dma.hbm_to_vmem [thread:$0]  %s258, 1024, %s260, %s248, 256, 256, 16
        $region40: #{tpu_custom_call.1} parent=31 // pred_fallthru
          _
      $region32: #{tpu_custom_call.1} parent=5 // pred_fallthru
        _
      %p266 = scmp.le.s32.totalorder 1, %s22
      %p267 = scmp.lt.s32.totalorder %s22, 3
      %p268 = pnand %p266, %p267
      %p269 = pneg %p268
      // Predicated region
      $region41: #{tpu_custom_call.1} parent=5 // pred_check
        _
      $region42: #{tpu_custom_call.1} parent=5 // pred_check_branch
        %271 = sbr.rel (%p268) target = $region44
      $region43: #{tpu_custom_call.1} parent=5 // pred_region
        %s272 = ssub.s32 %s22, 1
        %s273 = sand.u32 %s35, 1
        %s274 = scalar_lea.sflag [#allocation5], %s273
        %s275 = sand.u32 %s35, 1
        %s276 = smul.addr %s275, 64
        %s277 = scalar_lea.vmem [#allocation4], %s276
        // Predicated region
        $region45: #{tpu_custom_call.1} parent=43 // pred_check
          %p278 = pneg %p48
        $region46: #{tpu_custom_call.1} parent=43 // pred_check_branch
          %280 = sbr.rel (%p278) target = $region48
        $region47: #{tpu_custom_call.1} parent=43 // pred_region
          %282 = dma.done %s274, 1024
        $region48: #{tpu_custom_call.1} parent=43 // pred_fallthru
          _
        %s283 = sand.u32 %s61, 1
        %s284 = scalar_lea.sflag [#allocation9], %s283
        %s285 = sand.u32 %s61, 1
        %s286 = smul.addr %s285, 64
        %s287 = scalar_lea.vmem [#allocation8], %s286
        // Predicated region
        $region49: #{tpu_custom_call.1} parent=43 // pred_check
          %p288 = pneg %p74
        $region50: #{tpu_custom_call.1} parent=43 // pred_check_branch
          %290 = sbr.rel (%p288) target = $region52
        $region51: #{tpu_custom_call.1} parent=43 // pred_region
          %292 = dma.done %s284, 1024
        $region52: #{tpu_custom_call.1} parent=43 // pred_fallthru
          _
        // Predicated region
        $region53: #{tpu_custom_call.1} parent=43 // pred_check
          %p293 = pneg %p158
        $region54: #{tpu_custom_call.1} parent=43 // pred_check_branch
          %295 = sbr.rel (%p293) target = $region56
        $region55: #{tpu_custom_call.1} parent=43 // pred_region
          %297 = dma.done [#allocation7], 16
        $region56: #{tpu_custom_call.1} parent=43 // pred_fallthru
          _
        %298 = sfence
        %s299 = sand.u32 %s35, 1
        %s300 = scalar_lea.sflag [#allocation5], %s299
        %s301 = sand.u32 %s35, 1
        %s302 = smul.addr %s301, 64
        %s303 = scalar_lea.vmem [#allocation4], %s302
        %p304 = pneg %p48
        %p305 = pneg %p45
        %s306 = sand.u32 %s61, 1
        %s307 = scalar_lea.sflag [#allocation9], %s306
        %s308 = sand.u32 %s61, 1
        %s309 = smul.addr %s308, 64
        %s310 = scalar_lea.vmem [#allocation8], %s309
        %p311 = pneg %p74
        %p312 = pneg %p71
        %p313 = pneg %p95
        %p314 = pneg %p92
        %p315 = pneg %p116
        %p316 = pneg %p113
        %p317 = pneg %p137
        %p318 = pneg %p134
        %p319 = pneg %p158
        %p320 = pneg %p155
        %p321 = pneg %p184
        %p322 = pneg %p181
        %s323 = sand.u32 %s171, 1
        %s324 = scalar_lea.sflag [#allocation6], %s323
        %s325 = sand.u32 %s171, 1
        %s326 = smul.addr %s325, 64
        %s327 = scalar_lea.vmem [#allocation11], %s326
        %v328 = vld [vmem:[%s277] sm:$0xff]
        %v329 = vld [vmem:[%s277 + $0x8] sm:$0xff]
        %v330 = vld [vmem:[%s277 + $0x10] sm:$0xff]
        %v331 = vld [vmem:[%s277 + $0x18] sm:$0xff]
        %v332 = vld [vmem:[%s277 + $0x20] sm:$0xff]
        %v333 = vld [vmem:[%s277 + $0x28] sm:$0xff]
        %v334 = vld [vmem:[%s277 + $0x30] sm:$0xff]
        %v335 = vld [vmem:[%s277 + $0x38] sm:$0xff]
        %v336 = vld [vmem:[%s287] sm:$0xff]
        %v337 = vld [vmem:[%s287 + $0x8] sm:$0xff]
        %v338 = vld [vmem:[%s287 + $0x10] sm:$0xff]
        %v339 = vld [vmem:[%s287 + $0x18] sm:$0xff]
        %v340 = vld [vmem:[%s287 + $0x20] sm:$0xff]
        %v341 = vld [vmem:[%s287 + $0x28] sm:$0xff]
        %v342 = vld [vmem:[%s287 + $0x30] sm:$0xff]
        %v343 = vld [vmem:[%s287 + $0x38] sm:$0xff]
        %v344 = vld [vmem:[%s2] sm:$0xff]
        %v345 = vld [vmem:[%s2 + $0x8] sm:$0xff]
        %v346 = vld [vmem:[%s2 + $0x10] sm:$0xff]
        %v347 = vld [vmem:[%s2 + $0x18] sm:$0xff]
        %vm348 = vcmask 261120
        %v350 = vsel %vm348, %v344, 0
        %v353 = vsel %vm348, %v345, 0
        %v356 = vsel %vm348, %v346, 0
        %v359 = vsel %vm348, %v347, 0
        %361 = vmatpush.msra.mxu0 0.0
        %362 = vmatpush.msra.mxu0 0.0
        %363 = vmatpush.msra.mxu0 0.0
        %364 = vmatpush.msra.mxu0 0.0
        %365 = vmatpush.msra.mxu0 0.0
        %366 = vmatpush.msra.mxu0 0.0
        %367 = vmatpush.msra.mxu0 0.0
        %368 = vmatpush.msra.mxu0 0.0
        %369 = vmatpush.msra.mxu0 0.0
        %370 = vmatpush.msra.mxu0 0.0
        %371 = vmatpush.msra.mxu0 0.0
        %372 = vmatpush.msra.mxu0 0.0
        %373 = vmatpush.msra.mxu0 %v334
        %374 = vmatpush.msra.mxu0 %v332
        %375 = vmatpush.msra.mxu0 %v330
        %376 = vmatpush.msra.mxu0 %v328
        %377 = vmatmul.f32.gmra.mxu0 %v350
        %v378 = vpop.f32.mrf.mxu0
        %v379 = vadd.f32 0.0, %v378
        %380 = vmatmul.f32.gmra.mxu0 %v353
        %v381 = vpop.f32.mrf.mxu0
        %v382 = vadd.f32 0.0, %v381
        %383 = vmatmul.f32.gmra.mxu0 %v356
        %v384 = vpop.f32.mrf.mxu0
        %v385 = vadd.f32 0.0, %v384
        %386 = vmatmul.f32.gmra.mxu0 %v359
        %v387 = vpop.f32.mrf.mxu0
        %v388 = vadd.f32 0.0, %v387
        %389 = vdwg.mxu0
        %390 = vmatpush.msra.mxu0 0.0
        %391 = vmatpush.msra.mxu0 0.0
        %392 = vmatpush.msra.mxu0 0.0
        %393 = vmatpush.msra.mxu0 0.0
        %394 = vmatpush.msra.mxu0 0.0
        %395 = vmatpush.msra.mxu0 0.0
        %396 = vmatpush.msra.mxu0 0.0
        %397 = vmatpush.msra.mxu0 0.0
        %398 = vmatpush.msra.mxu0 0.0
        %399 = vmatpush.msra.mxu0 0.0
        %400 = vmatpush.msra.mxu0 0.0
        %401 = vmatpush.msra.mxu0 0.0
        %402 = vmatpush.msra.mxu0 %v335
        %403 = vmatpush.msra.mxu0 %v333
        %404 = vmatpush.msra.mxu0 %v331
        %405 = vmatpush.msra.mxu0 %v329
        %406 = vmatmul.f32.gmra.mxu0 %v350
        %v407 = vpop.f32.mrf.mxu0
        %v408 = vadd.f32 0.0, %v407
        %409 = vmatmul.f32.gmra.mxu0 %v353
        %v410 = vpop.f32.mrf.mxu0
        %v411 = vadd.f32 0.0, %v410
        %412 = vmatmul.f32.gmra.mxu0 %v356
        %v413 = vpop.f32.mrf.mxu0
        %v414 = vadd.f32 0.0, %v413
        %415 = vmatmul.f32.gmra.mxu0 %v359
        %v416 = vpop.f32.mrf.mxu0
        %v417 = vadd.f32 0.0, %v416
        %418 = vdwg.mxu0
        %v419 = vld [vmem:[%s3] sm:$0xff]
        %v420 = vld [vmem:[%s3 + $0x8] sm:$0xff]
        %v421 = vld [vmem:[%s3 + $0x10] sm:$0xff]
        %v422 = vld [vmem:[%s3 + $0x18] sm:$0xff]
        %v423 = vld [vmem:[%s3 + $0x20] sm:$0xff]
        %v424 = vld [vmem:[%s3 + $0x28] sm:$0xff]
        %v425 = vld [vmem:[%s3 + $0x30] sm:$0xff]
        %v426 = vld [vmem:[%s3 + $0x38] sm:$0xff]
        %v428 = vsel %vm348, %v419, 0
        %v431 = vsel %vm348, %v420, 0
        %v434 = vsel %vm348, %v421, 0
        %v437 = vsel %vm348, %v422, 0
        %v440 = vsel %vm348, %v423, 0
        %v443 = vsel %vm348, %v424, 0
        %v446 = vsel %vm348, %v425, 0
        %v449 = vsel %vm348, %v426, 0
        %451 = vmatpush.msra.mxu0 0.0
        %452 = vmatpush.msra.mxu0 0.0
        %453 = vmatpush.msra.mxu0 0.0
        %454 = vmatpush.msra.mxu0 0.0
        %455 = vmatpush.msra.mxu0 0.0
        %456 = vmatpush.msra.mxu0 0.0
        %457 = vmatpush.msra.mxu0 0.0
        %458 = vmatpush.msra.mxu0 0.0
        %459 = vmatpush.msra.mxu0 0.0
        %460 = vmatpush.msra.mxu0 0.0
        %461 = vmatpush.msra.mxu0 0.0
        %462 = vmatpush.msra.mxu0 0.0
        %463 = vmatpush.msra.mxu0 %v342
        %464 = vmatpush.msra.mxu0 %v340
        %465 = vmatpush.msra.mxu0 %v338
        %466 = vmatpush.msra.mxu0 %v336
        %467 = vmatmul.f32.gmra.mxu0 %v428
        %v468 = vpop.f32.mrf.mxu0
        %v469 = vadd.f32 0.0, %v468
        %470 = vmatmul.f32.gmra.mxu0 %v431
        %v471 = vpop.f32.mrf.mxu0
        %v472 = vadd.f32 0.0, %v471
        %473 = vmatmul.f32.gmra.mxu0 %v434
        %v474 = vpop.f32.mrf.mxu0
        %v475 = vadd.f32 0.0, %v474
        %476 = vmatmul.f32.gmra.mxu0 %v437
        %v477 = vpop.f32.mrf.mxu0
        %v478 = vadd.f32 0.0, %v477
        %479 = vmatmul.f32.gmra.mxu0 %v440
        %v480 = vpop.f32.mrf.mxu0
        %v481 = vadd.f32 0.0, %v480
        %482 = vmatmul.f32.gmra.mxu0 %v443
        %v483 = vpop.f32.mrf.mxu0
        %v484 = vadd.f32 0.0, %v483
        %485 = vmatmul.f32.gmra.mxu0 %v446
        %v486 = vpop.f32.mrf.mxu0
        %v487 = vadd.f32 0.0, %v486
        %488 = vmatmul.f32.gmra.mxu0 %v449
        %v489 = vpop.f32.mrf.mxu0
        %v490 = vadd.f32 0.0, %v489
        %491 = vdwg.mxu0
        %492 = vmatpush.msra.mxu0 0.0
        %493 = vmatpush.msra.mxu0 0.0
        %494 = vmatpush.msra.mxu0 0.0
        %495 = vmatpush.msra.mxu0 0.0
        %496 = vmatpush.msra.mxu0 0.0
        %497 = vmatpush.msra.mxu0 0.0
        %498 = vmatpush.msra.mxu0 0.0
        %499 = vmatpush.msra.mxu0 0.0
        %500 = vmatpush.msra.mxu0 0.0
        %501 = vmatpush.msra.mxu0 0.0
        %502 = vmatpush.msra.mxu0 0.0
        %503 = vmatpush.msra.mxu0 0.0
        %504 = vmatpush.msra.mxu0 %v343
        %505 = vmatpush.msra.mxu0 %v341
        %506 = vmatpush.msra.mxu0 %v339
        %507 = vmatpush.msra.mxu0 %v337
        %508 = vmatmul.f32.gmra.mxu0 %v428
        %v509 = vpop.f32.mrf.mxu0
        %v510 = vadd.f32 0.0, %v509
        %511 = vmatmul.f32.gmra.mxu0 %v431
        %v512 = vpop.f32.mrf.mxu0
        %v513 = vadd.f32 0.0, %v512
        %514 = vmatmul.f32.gmra.mxu0 %v434
        %v515 = vpop.f32.mrf.mxu0
        %v516 = vadd.f32 0.0, %v515
        %517 = vmatmul.f32.gmra.mxu0 %v437
        %v518 = vpop.f32.mrf.mxu0
        %v519 = vadd.f32 0.0, %v518
        %520 = vmatmul.f32.gmra.mxu0 %v440
        %v521 = vpop.f32.mrf.mxu0
        %v522 = vadd.f32 0.0, %v521
        %523 = vmatmul.f32.gmra.mxu0 %v443
        %v524 = vpop.f32.mrf.mxu0
        %v525 = vadd.f32 0.0, %v524
        %526 = vmatmul.f32.gmra.mxu0 %v446
        %v527 = vpop.f32.mrf.mxu0
        %v528 = vadd.f32 0.0, %v527
        %529 = vmatmul.f32.gmra.mxu0 %v449
        %v530 = vpop.f32.mrf.mxu0
        %v531 = vadd.f32 0.0, %v530
        %532 = vdwg.mxu0
        %v533 = vmul.f32 %v379, %v379
        %v534 = vmul.f32 %v408, %v408
        %v535 = vrot.slane %v533, 4
        %v536 = vadd.f32 %v533, %v535
        %v537 = vrot.slane %v536, 2
        %v538 = vadd.f32 %v536, %v537
        %v539 = vrot.slane %v538, 1
        %v540 = vadd.f32 %v538, %v539
        %v541 = vrot.slane %v534, 4
        %v542 = vadd.f32 %v534, %v541
        %v543 = vrot.slane %v542, 2
        %v544 = vadd.f32 %v542, %v543
        %v545 = vrot.slane %v544, 1
        %v546 = vadd.f32 %v544, %v545
        %v547 = vmax.f32 %v540, 1e-24
        %v548 = vmax.f32 %v546, 1e-24
        %v549 = vrsqrt.pop %v547
        %v550 = vmul.f32 %v549, %v547
        %v551 = vmul.f32 %v550, %v549
        %v552 = vmul.f32 0.5, %v551
        %v553 = vsub.f32 1.5, %v552
        %v554 = vmul.f32 %v549, %v553
        %vm555 = vweird.f32 %v547
        %vm556 = vweird.f32 %v549
        %vm557 = vmor %vm555, %vm556
        %v558 = vsel %vm557, %v549, %v554
        %v559 = vrsqrt.pop %v548
        %v560 = vmul.f32 %v559, %v548
        %v561 = vmul.f32 %v560, %v559
        %v562 = vmul.f32 0.5, %v561
        %v563 = vsub.f32 1.5, %v562
        %v564 = vmul.f32 %v559, %v563
        %vm565 = vweird.f32 %v548
        %vm566 = vweird.f32 %v559
        %vm567 = vmor %vm565, %vm566
        %v568 = vsel %vm567, %v559, %v564
        %s569 = sld [smem:[#allocation10]]
        %v570 = vstv %s569
        %v571 = vmul.f32 %v558, %v570
        %v572 = vmul.f32 %v568, %v570
        %v573 = vmul.f32 %v379, %v571
        %v574 = vmul.f32 %v408, %v572
        %575 = vst [vmem:[#allocation2] sm:$0xff] %v573
        %576 = vst [vmem:[#allocation2 + $0x8] sm:$0xff] %v574
        %v577 = vmul.f32 %v382, %v382
        %v578 = vmul.f32 %v411, %v411
        %v579 = vrot.slane %v577, 4
        %v580 = vadd.f32 %v577, %v579
        %v581 = vrot.slane %v580, 2
        %v582 = vadd.f32 %v580, %v581
        %v583 = vrot.slane %v582, 1
        %v584 = vadd.f32 %v582, %v583
        %v585 = vrot.slane %v578, 4
        %v586 = vadd.f32 %v578, %v585
        %v587 = vrot.slane %v586, 2
        %v588 = vadd.f32 %v586, %v587
        %v589 = vrot.slane %v588, 1
        %v590 = vadd.f32 %v588, %v589
        %v591 = vmax.f32 %v584, 1e-24
        %v592 = vmax.f32 %v590, 1e-24
        %v593 = vrsqrt.pop %v591
        %v594 = vmul.f32 %v593, %v591
        %v595 = vmul.f32 %v594, %v593
        %v596 = vmul.f32 0.5, %v595
        %v597 = vsub.f32 1.5, %v596
        %v598 = vmul.f32 %v593, %v597
        %vm599 = vweird.f32 %v591
        %vm600 = vweird.f32 %v593
        %vm601 = vmor %vm599, %vm600
        %v602 = vsel %vm601, %v593, %v598
        %v603 = vrsqrt.pop %v592
        %v604 = vmul.f32 %v603, %v592
        %v605 = vmul.f32 %v604, %v603
        %v606 = vmul.f32 0.5, %v605
        %v607 = vsub.f32 1.5, %v606
        %v608 = vmul.f32 %v603, %v607
        %vm609 = vweird.f32 %v592
        %vm610 = vweird.f32 %v603
        %vm611 = vmor %vm609, %vm610
        %v612 = vsel %vm611, %v603, %v608
        %s613 = sld [smem:[#allocation10 + $0x1]]
        %v614 = vstv %s613
        %v615 = vmul.f32 %v602, %v614
        %v616 = vmul.f32 %v612, %v614
        %v617 = vmul.f32 %v382, %v615
        %v618 = vmul.f32 %v411, %v616
        %619 = vst [vmem:[#allocation2 + $0x10] sm:$0xff] %v617
        %620 = vst [vmem:[#allocation2 + $0x18] sm:$0xff] %v618
        %v621 = vmul.f32 %v385, %v385
        %v622 = vmul.f32 %v414, %v414
        %v623 = vrot.slane %v621, 4
        %v624 = vadd.f32 %v621, %v623
        %v625 = vrot.slane %v624, 2
        %v626 = vadd.f32 %v624, %v625
        %v627 = vrot.slane %v626, 1
        %v628 = vadd.f32 %v626, %v627
        %v629 = vrot.slane %v622, 4
        %v630 = vadd.f32 %v622, %v629
        %v631 = vrot.slane %v630, 2
        %v632 = vadd.f32 %v630, %v631
        %v633 = vrot.slane %v632, 1
        %v634 = vadd.f32 %v632, %v633
        %v635 = vmax.f32 %v628, 1e-24
        %v636 = vmax.f32 %v634, 1e-24
        %v637 = vrsqrt.pop %v635
        %v638 = vmul.f32 %v637, %v635
        %v639 = vmul.f32 %v638, %v637
        %v640 = vmul.f32 0.5, %v639
        %v641 = vsub.f32 1.5, %v640
        %v642 = vmul.f32 %v637, %v641
        %vm643 = vweird.f32 %v635
        %vm644 = vweird.f32 %v637
        %vm645 = vmor %vm643, %vm644
        %v646 = vsel %vm645, %v637, %v642
        %v647 = vrsqrt.pop %v636
        %v648 = vmul.f32 %v647, %v636
        %v649 = vmul.f32 %v648, %v647
        %v650 = vmul.f32 0.5, %v649
        %v651 = vsub.f32 1.5, %v650
        %v652 = vmul.f32 %v647, %v651
        %vm653 = vweird.f32 %v636
        %vm654 = vweird.f32 %v647
        %vm655 = vmor %vm653, %vm654
        %v656 = vsel %vm655, %v647, %v652
        %s657 = sld [smem:[#allocation10 + $0x2]]
        %v658 = vstv %s657
        %v659 = vmul.f32 %v646, %v658
        %v660 = vmul.f32 %v656, %v658
        %v661 = vmul.f32 %v385, %v659
        %v662 = vmul.f32 %v414, %v660
        %663 = vst [vmem:[#allocation2 + $0x20] sm:$0xff] %v661
        %664 = vst [vmem:[#allocation2 + $0x28] sm:$0xff] %v662
        %v665 = vmul.f32 %v388, %v388
        %v666 = vmul.f32 %v417, %v417
        %v667 = vrot.slane %v665, 4
        %v668 = vadd.f32 %v665, %v667
        %v669 = vrot.slane %v668, 2
        %v670 = vadd.f32 %v668, %v669
        %v671 = vrot.slane %v670, 1
        %v672 = vadd.f32 %v670, %v671
        %v673 = vrot.slane %v666, 4
        %v674 = vadd.f32 %v666, %v673
        %v675 = vrot.slane %v674, 2
        %v676 = vadd.f32 %v674, %v675
        %v677 = vrot.slane %v676, 1
        %v678 = vadd.f32 %v676, %v677
        %v679 = vmax.f32 %v672, 1e-24
        %v680 = vmax.f32 %v678, 1e-24
        %v681 = vrsqrt.pop %v679
        %v682 = vmul.f32 %v681, %v679
        %v683 = vmul.f32 %v682, %v681
        %v684 = vmul.f32 0.5, %v683
        %v685 = vsub.f32 1.5, %v684
        %v686 = vmul.f32 %v681, %v685
        %vm687 = vweird.f32 %v679
        %vm688 = vweird.f32 %v681
        %vm689 = vmor %vm687, %vm688
        %v690 = vsel %vm689, %v681, %v686
        %v691 = vrsqrt.pop %v680
        %v692 = vmul.f32 %v691, %v680
        %v693 = vmul.f32 %v692, %v691
        %v694 = vmul.f32 0.5, %v693
        %v695 = vsub.f32 1.5, %v694
        %v696 = vmul.f32 %v691, %v695
        %vm697 = vweird.f32 %v680
        %vm698 = vweird.f32 %v691
        %vm699 = vmor %vm697, %vm698
        %v700 = vsel %vm699, %v691, %v696
        %s701 = sld [smem:[#allocation10 + $0x3]]
        %v702 = vstv %s701
        %v703 = vmul.f32 %v690, %v702
        %v704 = vmul.f32 %v700, %v702
        %v705 = vmul.f32 %v388, %v703
        %v706 = vmul.f32 %v417, %v704
        %707 = vst [vmem:[#allocation2 + $0x30] sm:$0xff] %v705
        %708 = vst [vmem:[#allocation2 + $0x38] sm:$0xff] %v706
        %v709 = vld [vmem:[#allocation2] sm:$0xff]
        %v710 = vld [vmem:[#allocation2 + $0x8] sm:$0xff]
        %v711 = vld [vmem:[#allocation2 + $0x10] sm:$0xff]
        %v712 = vld [vmem:[#allocation2 + $0x18] sm:$0xff]
        %v713 = vld [vmem:[#allocation2 + $0x20] sm:$0xff]
        %v714 = vld [vmem:[#allocation2 + $0x28] sm:$0xff]
        %v715 = vld [vmem:[#allocation2 + $0x30] sm:$0xff]
        %v716 = vld [vmem:[#allocation2 + $0x38] sm:$0xff]
        %717 = vxpose.xlu0.b32.start [1/16] %v709, 128
        %718 = vxpose.xlu0.b32.cont [2/16] %v711, 128
        %719 = vxpose.xlu0.b32.cont [3/16] %v713, 128
        %720 = vxpose.xlu0.b32.cont [4/16] %v715, 128
        %721 = vxpose.xlu0.b32.cont [5/16] 0.0, 128
        %722 = vxpose.xlu0.b32.cont [6/16] 0.0, 128
        %723 = vxpose.xlu0.b32.cont [7/16] 0.0, 128
        %724 = vxpose.xlu0.b32.cont [8/16] 0.0, 128
        %725 = vxpose.xlu0.b32.cont [9/16] 0.0, 128
        %726 = vxpose.xlu0.b32.cont [10/16] 0.0, 128
        %727 = vxpose.xlu0.b32.cont [11/16] 0.0, 128
        %728 = vxpose.xlu0.b32.cont [12/16] 0.0, 128
        %729 = vxpose.xlu0.b32.cont [13/16] 0.0, 128
        %730 = vxpose.xlu0.b32.cont [14/16] 0.0, 128
        %731 = vxpose.xlu0.b32.cont [15/16] 0.0, 128
        %732 = vxpose.xlu0.b32.end [16/16] 0.0, 128
        %v733 = vpop.trf.xlu0
        %v734 = vpop.trf.xlu0
        %v735 = vpop.trf.xlu0
        %v736 = vpop.trf.xlu0
        %v737 = vpop.trf.xlu0
        %v738 = vpop.trf.xlu0
        %v739 = vpop.trf.xlu0
        %v740 = vpop.trf.xlu0
        %v741 = vpop.trf.xlu0
        %v742 = vpop.trf.xlu0
        %v743 = vpop.trf.xlu0
        %v744 = vpop.trf.xlu0
        %v745 = vpop.trf.xlu0
        %v746 = vpop.trf.xlu0
        %v747 = vpop.trf.xlu0
        %v748 = vpop.trf.xlu0
        %749 = vxpose.xlu0.b32.start [1/16] %v710, 128
        %750 = vxpose.xlu0.b32.cont [2/16] %v712, 128
        %751 = vxpose.xlu0.b32.cont [3/16] %v714, 128
        %752 = vxpose.xlu0.b32.cont [4/16] %v716, 128
        %753 = vxpose.xlu0.b32.cont [5/16] 0.0, 128
        %754 = vxpose.xlu0.b32.cont [6/16] 0.0, 128
        %755 = vxpose.xlu0.b32.cont [7/16] 0.0, 128
        %756 = vxpose.xlu0.b32.cont [8/16] 0.0, 128
        %757 = vxpose.xlu0.b32.cont [9/16] 0.0, 128
        %758 = vxpose.xlu0.b32.cont [10/16] 0.0, 128
        %759 = vxpose.xlu0.b32.cont [11/16] 0.0, 128
        %760 = vxpose.xlu0.b32.cont [12/16] 0.0, 128
        %761 = vxpose.xlu0.b32.cont [13/16] 0.0, 128
        %762 = vxpose.xlu0.b32.cont [14/16] 0.0, 128
        %763 = vxpose.xlu0.b32.cont [15/16] 0.0, 128
        %764 = vxpose.xlu0.b32.end [16/16] 0.0, 128
        %v765 = vpop.trf.xlu0
        %v766 = vpop.trf.xlu0
        %v767 = vpop.trf.xlu0
        %v768 = vpop.trf.xlu0
        %v769 = vpop.trf.xlu0
        %v770 = vpop.trf.xlu0
        %v771 = vpop.trf.xlu0
        %v772 = vpop.trf.xlu0
        %v773 = vpop.trf.xlu0
        %v774 = vpop.trf.xlu0
        %v775 = vpop.trf.xlu0
        %v776 = vpop.trf.xlu0
        %v777 = vpop.trf.xlu0
        %v778 = vpop.trf.xlu0
        %v779 = vpop.trf.xlu0
        %v780 = vpop.trf.xlu0
        %v781 = vmul.f32 %v469, %v469
        %v782 = vmul.f32 %v510, %v510
        %v783 = vrot.slane %v781, 4
        %v784 = vadd.f32 %v781, %v783
        %v785 = vrot.slane %v784, 2
        %v786 = vadd.f32 %v784, %v785
        %v787 = vrot.slane %v786, 1
        %v788 = vadd.f32 %v786, %v787
        %v789 = vrot.slane %v782, 4
        %v790 = vadd.f32 %v782, %v789
        %v791 = vrot.slane %v790, 2
        %v792 = vadd.f32 %v790, %v791
        %v793 = vrot.slane %v792, 1
        %v794 = vadd.f32 %v792, %v793
        %v795 = vmax.f32 %v788, 1e-24
        %v796 = vmax.f32 %v794, 1e-24
        %v797 = vrsqrt.pop %v795
        %v798 = vmul.f32 %v797, %v795
        %v799 = vmul.f32 %v798, %v797
        %v800 = vmul.f32 0.5, %v799
        %v801 = vsub.f32 1.5, %v800
        %v802 = vmul.f32 %v797, %v801
        %vm803 = vweird.f32 %v795
        %vm804 = vweird.f32 %v797
        %vm805 = vmor %vm803, %vm804
        %v806 = vsel %vm805, %v797, %v802
        %v807 = vrsqrt.pop %v796
        %v808 = vmul.f32 %v807, %v796
        %v809 = vmul.f32 %v808, %v807
        %v810 = vmul.f32 0.5, %v809
        %v811 = vsub.f32 1.5, %v810
        %v812 = vmul.f32 %v807, %v811
        %vm813 = vweird.f32 %v796
        %vm814 = vweird.f32 %v807
        %vm815 = vmor %vm813, %vm814
        %v816 = vsel %vm815, %v807, %v812
        %v817 = vmul.f32 %v469, %v806
        %v818 = vmul.f32 %v510, %v816
        %vm819 = vcmask 64512
        %v821 = vsel %vm819, %v733, 0
        %v824 = vsel %vm819, %v734, 0
        %v827 = vsel %vm819, %v735, 0
        %v830 = vsel %vm819, %v736, 0
        %v833 = vsel %vm819, %v737, 0
        %v836 = vsel %vm819, %v738, 0
        %v839 = vsel %vm819, %v739, 0
        %v842 = vsel %vm819, %v740, 0
        %v845 = vsel %vm819, %v741, 0
        %v848 = vsel %vm819, %v742, 0
        %v851 = vsel %vm819, %v743, 0
        %v854 = vsel %vm819, %v744, 0
        %v857 = vsel %vm819, %v745, 0
        %v860 = vsel %vm819, %v746, 0
        %v863 = vsel %vm819, %v747, 0
        %v866 = vsel %vm819, %v748, 0
        %v869 = vsel %vm819, %v765, 0
        %v872 = vsel %vm819, %v766, 0
        %v875 = vsel %vm819, %v767, 0
        %v878 = vsel %vm819, %v768, 0
        %v881 = vsel %vm819, %v769, 0
        %v884 = vsel %vm819, %v770, 0
        %v887 = vsel %vm819, %v771, 0
        %v890 = vsel %vm819, %v772, 0
        %v893 = vsel %vm819, %v773, 0
        %v896 = vsel %vm819, %v774, 0
        %v899 = vsel %vm819, %v775, 0
        %v902 = vsel %vm819, %v776, 0
        %v905 = vsel %vm819, %v777, 0
        %v908 = vsel %vm819, %v778, 0
        %v911 = vsel %vm819, %v779, 0
        %v914 = vsel %vm819, %v780, 0
        %916 = vmatpush.msra.mxu0 0.0
        %917 = vmatpush.msra.mxu0 0.0
        %918 = vmatpush.msra.mxu0 0.0
        %919 = vmatpush.msra.mxu0 0.0
        %920 = vmatpush.msra.mxu0 0.0
        %921 = vmatpush.msra.mxu0 0.0
        %922 = vmatpush.msra.mxu0 0.0
        %923 = vmatpush.msra.mxu0 0.0
        %924 = vmatpush.msra.mxu0 0.0
        %925 = vmatpush.msra.mxu0 0.0
        %926 = vmatpush.msra.mxu0 0.0
        %927 = vmatpush.msra.mxu0 0.0
        %928 = vmatpush.msra.mxu0 0.0
        %929 = vmatpush.msra.mxu0 0.0
        %930 = vmatpush.msra.mxu0 0.0
        %931 = vmatpush.msra.mxu0 %v817
        %932 = vmatmul.f32.gmra.mxu0 %v821
        %v933 = vpop.f32.mrf.mxu0
        %v934 = vadd.f32 0.0, %v933
        %935 = vmatmul.f32.gmra.mxu0 %v824
        %v936 = vpop.f32.mrf.mxu0
        %v937 = vadd.f32 0.0, %v936
        %938 = vmatmul.f32.gmra.mxu0 %v827
        %v939 = vpop.f32.mrf.mxu0
        %v940 = vadd.f32 0.0, %v939
        %941 = vmatmul.f32.gmra.mxu0 %v830
        %v942 = vpop.f32.mrf.mxu0
        %v943 = vadd.f32 0.0, %v942
        %944 = vmatmul.f32.gmra.mxu0 %v833
        %v945 = vpop.f32.mrf.mxu0
        %v946 = vadd.f32 0.0, %v945
        %947 = vmatmul.f32.gmra.mxu0 %v836
        %v948 = vpop.f32.mrf.mxu0
        %v949 = vadd.f32 0.0, %v948
        %950 = vmatmul.f32.gmra.mxu0 %v839
        %v951 = vpop.f32.mrf.mxu0
        %v952 = vadd.f32 0.0, %v951
        %953 = vmatmul.f32.gmra.mxu0 %v842
        %v954 = vpop.f32.mrf.mxu0
        %v955 = vadd.f32 0.0, %v954
        %956 = vmatmul.f32.gmra.mxu0 %v845
        %v957 = vpop.f32.mrf.mxu0
        %v958 = vadd.f32 0.0, %v957
        %959 = vmatmul.f32.gmra.mxu0 %v848
        %v960 = vpop.f32.mrf.mxu0
        %v961 = vadd.f32 0.0, %v960
        %962 = vmatmul.f32.gmra.mxu0 %v851
        %v963 = vpop.f32.mrf.mxu0
        %v964 = vadd.f32 0.0, %v963
        %965 = vmatmul.f32.gmra.mxu0 %v854
        %v966 = vpop.f32.mrf.mxu0
        %v967 = vadd.f32 0.0, %v966
        %968 = vmatmul.f32.gmra.mxu0 %v857
        %v969 = vpop.f32.mrf.mxu0
        %v970 = vadd.f32 0.0, %v969
        %971 = vmatmul.f32.gmra.mxu0 %v860
        %v972 = vpop.f32.mrf.mxu0
        %v973 = vadd.f32 0.0, %v972
        %974 = vmatmul.f32.gmra.mxu0 %v863
        %v975 = vpop.f32.mrf.mxu0
        %v976 = vadd.f32 0.0, %v975
        %977 = vmatmul.f32.gmra.mxu0 %v866
        %v978 = vpop.f32.mrf.mxu0
        %v979 = vadd.f32 0.0, %v978
        %980 = vmatmul.f32.gmra.mxu0 %v869
        %v981 = vpop.f32.mrf.mxu0
        %v982 = vadd.f32 0.0, %v981
        %983 = vmatmul.f32.gmra.mxu0 %v872
        %v984 = vpop.f32.mrf.mxu0
        %v985 = vadd.f32 0.0, %v984
        %986 = vmatmul.f32.gmra.mxu0 %v875
        %v987 = vpop.f32.mrf.mxu0
        %v988 = vadd.f32 0.0, %v987
        %989 = vmatmul.f32.gmra.mxu0 %v878
        %v990 = vpop.f32.mrf.mxu0
        %v991 = vadd.f32 0.0, %v990
        %992 = vmatmul.f32.gmra.mxu0 %v881
        %v993 = vpop.f32.mrf.mxu0
        %v994 = vadd.f32 0.0, %v993
        %995 = vmatmul.f32.gmra.mxu0 %v884
        %v996 = vpop.f32.mrf.mxu0
        %v997 = vadd.f32 0.0, %v996
        %998 = vmatmul.f32.gmra.mxu0 %v887
        %v999 = vpop.f32.mrf.mxu0
        %v1000 = vadd.f32 0.0, %v999
        %1001 = vmatmul.f32.gmra.mxu0 %v890
        %v1002 = vpop.f32.mrf.mxu0
        %v1003 = vadd.f32 0.0, %v1002
        %1004 = vmatmul.f32.gmra.mxu0 %v893
        %v1005 = vpop.f32.mrf.mxu0
        %v1006 = vadd.f32 0.0, %v1005
        %1007 = vmatmul.f32.gmra.mxu0 %v896
        %v1008 = vpop.f32.mrf.mxu0
        %v1009 = vadd.f32 0.0, %v1008
        %1010 = vmatmul.f32.gmra.mxu0 %v899
        %v1011 = vpop.f32.mrf.mxu0
        %v1012 = vadd.f32 0.0, %v1011
        %1013 = vmatmul.f32.gmra.mxu0 %v902
        %v1014 = vpop.f32.mrf.mxu0
        %v1015 = vadd.f32 0.0, %v1014
        %1016 = vmatmul.f32.gmra.mxu0 %v905
        %v1017 = vpop.f32.mrf.mxu0
        %v1018 = vadd.f32 0.0, %v1017
        %1019 = vmatmul.f32.gmra.mxu0 %v908
        %v1020 = vpop.f32.mrf.mxu0
        %v1021 = vadd.f32 0.0, %v1020
        %1022 = vmatmul.f32.gmra.mxu0 %v911
        %v1023 = vpop.f32.mrf.mxu0
        %v1024 = vadd.f32 0.0, %v1023
        %1025 = vmatmul.f32.gmra.mxu0 %v914
        %v1026 = vpop.f32.mrf.mxu0
        %v1027 = vadd.f32 0.0, %v1026
        %1028 = vdwg.mxu0
        %1029 = vmatpush.msra.mxu0 0.0
        %1030 = vmatpush.msra.mxu0 0.0
        %1031 = vmatpush.msra.mxu0 0.0
        %1032 = vmatpush.msra.mxu0 0.0
        %1033 = vmatpush.msra.mxu0 0.0
        %1034 = vmatpush.msra.mxu0 0.0
        %1035 = vmatpush.msra.mxu0 0.0
        %1036 = vmatpush.msra.mxu0 0.0
        %1037 = vmatpush.msra.mxu0 0.0
        %1038 = vmatpush.msra.mxu0 0.0
        %1039 = vmatpush.msra.mxu0 0.0
        %1040 = vmatpush.msra.mxu0 0.0
        %1041 = vmatpush.msra.mxu0 0.0
        %1042 = vmatpush.msra.mxu0 0.0
        %1043 = vmatpush.msra.mxu0 0.0
        %1044 = vmatpush.msra.mxu0 %v818
        %1045 = vmatmul.f32.gmra.mxu0 %v821
        %v1046 = vpop.f32.mrf.mxu0
        %v1047 = vadd.f32 0.0, %v1046
        %1048 = vmatmul.f32.gmra.mxu0 %v824
        %v1049 = vpop.f32.mrf.mxu0
        %v1050 = vadd.f32 0.0, %v1049
        %1051 = vmatmul.f32.gmra.mxu0 %v827
        %v1052 = vpop.f32.mrf.mxu0
        %v1053 = vadd.f32 0.0, %v1052
        %1054 = vmatmul.f32.gmra.mxu0 %v830
        %v1055 = vpop.f32.mrf.mxu0
        %v1056 = vadd.f32 0.0, %v1055
        %1057 = vmatmul.f32.gmra.mxu0 %v833
        %v1058 = vpop.f32.mrf.mxu0
        %v1059 = vadd.f32 0.0, %v1058
        %1060 = vmatmul.f32.gmra.mxu0 %v836
        %v1061 = vpop.f32.mrf.mxu0
        %v1062 = vadd.f32 0.0, %v1061
        %1063 = vmatmul.f32.gmra.mxu0 %v839
        %v1064 = vpop.f32.mrf.mxu0
        %v1065 = vadd.f32 0.0, %v1064
        %1066 = vmatmul.f32.gmra.mxu0 %v842
        %v1067 = vpop.f32.mrf.mxu0
        %v1068 = vadd.f32 0.0, %v1067
        %1069 = vmatmul.f32.gmra.mxu0 %v845
        %v1070 = vpop.f32.mrf.mxu0
        %v1071 = vadd.f32 0.0, %v1070
        %1072 = vmatmul.f32.gmra.mxu0 %v848
        %v1073 = vpop.f32.mrf.mxu0
        %v1074 = vadd.f32 0.0, %v1073
        %1075 = vmatmul.f32.gmra.mxu0 %v851
        %v1076 = vpop.f32.mrf.mxu0
        %v1077 = vadd.f32 0.0, %v1076
        %1078 = vmatmul.f32.gmra.mxu0 %v854
        %v1079 = vpop.f32.mrf.mxu0
        %v1080 = vadd.f32 0.0, %v1079
        %1081 = vmatmul.f32.gmra.mxu0 %v857
        %v1082 = vpop.f32.mrf.mxu0
        %v1083 = vadd.f32 0.0, %v1082
        %1084 = vmatmul.f32.gmra.mxu0 %v860
        %v1085 = vpop.f32.mrf.mxu0
        %v1086 = vadd.f32 0.0, %v1085
        %1087 = vmatmul.f32.gmra.mxu0 %v863
        %v1088 = vpop.f32.mrf.mxu0
        %v1089 = vadd.f32 0.0, %v1088
        %1090 = vmatmul.f32.gmra.mxu0 %v866
        %v1091 = vpop.f32.mrf.mxu0
        %v1092 = vadd.f32 0.0, %v1091
        %1093 = vmatmul.f32.gmra.mxu0 %v869
        %v1094 = vpop.f32.mrf.mxu0
        %v1095 = vadd.f32 0.0, %v1094
        %1096 = vmatmul.f32.gmra.mxu0 %v872
        %v1097 = vpop.f32.mrf.mxu0
        %v1098 = vadd.f32 0.0, %v1097
        %1099 = vmatmul.f32.gmra.mxu0 %v875
        %v1100 = vpop.f32.mrf.mxu0
        %v1101 = vadd.f32 0.0, %v1100
        %1102 = vmatmul.f32.gmra.mxu0 %v878
        %v1103 = vpop.f32.mrf.mxu0
        %v1104 = vadd.f32 0.0, %v1103
        %1105 = vmatmul.f32.gmra.mxu0 %v881
        %v1106 = vpop.f32.mrf.mxu0
        %v1107 = vadd.f32 0.0, %v1106
        %1108 = vmatmul.f32.gmra.mxu0 %v884
        %v1109 = vpop.f32.mrf.mxu0
        %v1110 = vadd.f32 0.0, %v1109
        %1111 = vmatmul.f32.gmra.mxu0 %v887
        %v1112 = vpop.f32.mrf.mxu0
        %v1113 = vadd.f32 0.0, %v1112
        %1114 = vmatmul.f32.gmra.mxu0 %v890
        %v1115 = vpop.f32.mrf.mxu0
        %v1116 = vadd.f32 0.0, %v1115
        %1117 = vmatmul.f32.gmra.mxu0 %v893
        %v1118 = vpop.f32.mrf.mxu0
        %v1119 = vadd.f32 0.0, %v1118
        %1120 = vmatmul.f32.gmra.mxu0 %v896
        %v1121 = vpop.f32.mrf.mxu0
        %v1122 = vadd.f32 0.0, %v1121
        %1123 = vmatmul.f32.gmra.mxu0 %v899
        %v1124 = vpop.f32.mrf.mxu0
        %v1125 = vadd.f32 0.0, %v1124
        %1126 = vmatmul.f32.gmra.mxu0 %v902
        %v1127 = vpop.f32.mrf.mxu0
        %v1128 = vadd.f32 0.0, %v1127
        %1129 = vmatmul.f32.gmra.mxu0 %v905
        %v1130 = vpop.f32.mrf.mxu0
        %v1131 = vadd.f32 0.0, %v1130
        %1132 = vmatmul.f32.gmra.mxu0 %v908
        %v1133 = vpop.f32.mrf.mxu0
        %v1134 = vadd.f32 0.0, %v1133
        %1135 = vmatmul.f32.gmra.mxu0 %v911
        %v1136 = vpop.f32.mrf.mxu0
        %v1137 = vadd.f32 0.0, %v1136
        %1138 = vmatmul.f32.gmra.mxu0 %v914
        %v1139 = vpop.f32.mrf.mxu0
        %v1140 = vadd.f32 0.0, %v1139
        %1141 = vdwg.mxu0
        %v1142 = vmax.f32 %v934, %v1047
        %1143 = vmax.xlane.f32.xlu0 %v1142
        %v1144 = vpop.xlane.xlu0 %1143
        %v1145 = vmax.f32 %v937, %v1050
        %1146 = vmax.xlane.f32.xlu0 %v1145
        %v1147 = vpop.xlane.xlu0 %1146
        %v1148 = vmax.f32 %v940, %v1053
        %1149 = vmax.xlane.f32.xlu0 %v1148
        %v1150 = vpop.xlane.xlu0 %1149
        %v1151 = vmax.f32 %v943, %v1056
        %1152 = vmax.xlane.f32.xlu0 %v1151
        %v1153 = vpop.xlane.xlu0 %1152
        %v1154 = vmax.f32 %v946, %v1059
        %1155 = vmax.xlane.f32.xlu0 %v1154
        %v1156 = vpop.xlane.xlu0 %1155
        %v1157 = vmax.f32 %v949, %v1062
        %1158 = vmax.xlane.f32.xlu0 %v1157
        %v1159 = vpop.xlane.xlu0 %1158
        %v1160 = vmax.f32 %v952, %v1065
        %1161 = vmax.xlane.f32.xlu0 %v1160
        %v1162 = vpop.xlane.xlu0 %1161
        %v1163 = vmax.f32 %v955, %v1068
        %1164 = vmax.xlane.f32.xlu0 %v1163
        %v1165 = vpop.xlane.xlu0 %1164
        %v1166 = vmax.f32 %v958, %v1071
        %1167 = vmax.xlane.f32.xlu0 %v1166
        %v1168 = vpop.xlane.xlu0 %1167
        %v1169 = vmax.f32 %v961, %v1074
        %1170 = vmax.xlane.f32.xlu0 %v1169
        %v1171 = vpop.xlane.xlu0 %1170
        %v1172 = vmax.f32 %v964, %v1077
        %1173 = vmax.xlane.f32.xlu0 %v1172
        %v1174 = vpop.xlane.xlu0 %1173
        %v1175 = vmax.f32 %v967, %v1080
        %1176 = vmax.xlane.f32.xlu0 %v1175
        %v1177 = vpop.xlane.xlu0 %1176
        %v1178 = vmax.f32 %v970, %v1083
        %1179 = vmax.xlane.f32.xlu0 %v1178
        %v1180 = vpop.xlane.xlu0 %1179
        %v1181 = vmax.f32 %v973, %v1086
        %1182 = vmax.xlane.f32.xlu0 %v1181
        %v1183 = vpop.xlane.xlu0 %1182
        %v1184 = vmax.f32 %v976, %v1089
        %1185 = vmax.xlane.f32.xlu0 %v1184
        %v1186 = vpop.xlane.xlu0 %1185
        %v1187 = vmax.f32 %v979, %v1092
        %1188 = vmax.xlane.f32.xlu0 %v1187
        %v1189 = vpop.xlane.xlu0 %1188
        %v1190 = vmax.f32 %v982, %v1095
        %1191 = vmax.xlane.f32.xlu0 %v1190
        %v1192 = vpop.xlane.xlu0 %1191
        %v1193 = vmax.f32 %v985, %v1098
        %1194 = vmax.xlane.f32.xlu0 %v1193
        %v1195 = vpop.xlane.xlu0 %1194
        %v1196 = vmax.f32 %v988, %v1101
        %1197 = vmax.xlane.f32.xlu0 %v1196
        %v1198 = vpop.xlane.xlu0 %1197
        %v1199 = vmax.f32 %v991, %v1104
        %1200 = vmax.xlane.f32.xlu0 %v1199
        %v1201 = vpop.xlane.xlu0 %1200
        %v1202 = vmax.f32 %v994, %v1107
        %1203 = vmax.xlane.f32.xlu0 %v1202
        %v1204 = vpop.xlane.xlu0 %1203
        %v1205 = vmax.f32 %v997, %v1110
        %1206 = vmax.xlane.f32.xlu0 %v1205
        %v1207 = vpop.xlane.xlu0 %1206
        %v1208 = vmax.f32 %v1000, %v1113
        %1209 = vmax.xlane.f32.xlu0 %v1208
        %v1210 = vpop.xlane.xlu0 %1209
        %v1211 = vmax.f32 %v1003, %v1116
        %1212 = vmax.xlane.f32.xlu0 %v1211
        %v1213 = vpop.xlane.xlu0 %1212
        %v1214 = vmax.f32 %v1006, %v1119
        %1215 = vmax.xlane.f32.xlu0 %v1214
        %v1216 = vpop.xlane.xlu0 %1215
        %v1217 = vmax.f32 %v1009, %v1122
        %1218 = vmax.xlane.f32.xlu0 %v1217
        %v1219 = vpop.xlane.xlu0 %1218
        %v1220 = vmax.f32 %v1012, %v1125
        %1221 = vmax.xlane.f32.xlu0 %v1220
        %v1222 = vpop.xlane.xlu0 %1221
        %v1223 = vmax.f32 %v1015, %v1128
        %1224 = vmax.xlane.f32.xlu0 %v1223
        %v1225 = vpop.xlane.xlu0 %1224
        %v1226 = vmax.f32 %v1018, %v1131
        %1227 = vmax.xlane.f32.xlu0 %v1226
        %v1228 = vpop.xlane.xlu0 %1227
        %v1229 = vmax.f32 %v1021, %v1134
        %1230 = vmax.xlane.f32.xlu0 %v1229
        %v1231 = vpop.xlane.xlu0 %1230
        %v1232 = vmax.f32 %v1024, %v1137
        %1233 = vmax.xlane.f32.xlu0 %v1232
        %v1234 = vpop.xlane.xlu0 %1233
        %v1235 = vmax.f32 %v1027, %v1140
        %1236 = vmax.xlane.f32.xlu0 %v1235
        %v1237 = vpop.xlane.xlu0 %1236
        %v1238 = vsub.f32 %v934, %v1144
        %v1239 = vsub.f32 %v1047, %v1144
        %v1240 = vsub.f32 %v937, %v1147
        %v1241 = vsub.f32 %v1050, %v1147
        %v1242 = vsub.f32 %v940, %v1150
        %v1243 = vsub.f32 %v1053, %v1150
        %v1244 = vsub.f32 %v943, %v1153
        %v1245 = vsub.f32 %v1056, %v1153
        %v1246 = vsub.f32 %v946, %v1156
        %v1247 = vsub.f32 %v1059, %v1156
        %v1248 = vsub.f32 %v949, %v1159
        %v1249 = vsub.f32 %v1062, %v1159
        %v1250 = vsub.f32 %v952, %v1162
        %v1251 = vsub.f32 %v1065, %v1162
        %v1252 = vsub.f32 %v955, %v1165
        %v1253 = vsub.f32 %v1068, %v1165
        %v1254 = vsub.f32 %v958, %v1168
        %v1255 = vsub.f32 %v1071, %v1168
        %v1256 = vsub.f32 %v961, %v1171
        %v1257 = vsub.f32 %v1074, %v1171
        %v1258 = vsub.f32 %v964, %v1174
        %v1259 = vsub.f32 %v1077, %v1174
        %v1260 = vsub.f32 %v967, %v1177
        %v1261 = vsub.f32 %v1080, %v1177
        %v1262 = vsub.f32 %v970, %v1180
        %v1263 = vsub.f32 %v1083, %v1180
        %v1264 = vsub.f32 %v973, %v1183
        %v1265 = vsub.f32 %v1086, %v1183
        %v1266 = vsub.f32 %v976, %v1186
        %v1267 = vsub.f32 %v1089, %v1186
        %v1268 = vsub.f32 %v979, %v1189
        %v1269 = vsub.f32 %v1092, %v1189
        %v1270 = vsub.f32 %v982, %v1192
        %v1271 = vsub.f32 %v1095, %v1192
        %v1272 = vsub.f32 %v985, %v1195
        %v1273 = vsub.f32 %v1098, %v1195
        %v1274 = vsub.f32 %v988, %v1198
        %v1275 = vsub.f32 %v1101, %v1198
        %v1276 = vsub.f32 %v991, %v1201
        %v1277 = vsub.f32 %v1104, %v1201
        %v1278 = vsub.f32 %v994, %v1204
        %v1279 = vsub.f32 %v1107, %v1204
        %v1280 = vsub.f32 %v997, %v1207
        %v1281 = vsub.f32 %v1110, %v1207
        %v1282 = vsub.f32 %v1000, %v1210
        %v1283 = vsub.f32 %v1113, %v1210
        %v1284 = vsub.f32 %v1003, %v1213
        %v1285 = vsub.f32 %v1116, %v1213
        %v1286 = vsub.f32 %v1006, %v1216
        %v1287 = vsub.f32 %v1119, %v1216
        %v1288 = vsub.f32 %v1009, %v1219
        %v1289 = vsub.f32 %v1122, %v1219
        %v1290 = vsub.f32 %v1012, %v1222
        %v1291 = vsub.f32 %v1125, %v1222
        %v1292 = vsub.f32 %v1015, %v1225
        %v1293 = vsub.f32 %v1128, %v1225
        %v1294 = vsub.f32 %v1018, %v1228
        %v1295 = vsub.f32 %v1131, %v1228
        %v1296 = vsub.f32 %v1021, %v1231
        %v1297 = vsub.f32 %v1134, %v1231
        %v1298 = vsub.f32 %v1024, %v1234
        %v1299 = vsub.f32 %v1137, %v1234
        %v1300 = vsub.f32 %v1027, %v1237
        %v1301 = vsub.f32 %v1140, %v1237
        %v1302 = vmul.f32 %v1238, 1.442695
        %v1303 = vpow.pop %v1302
        %v1304 = vmul.f32 %v1239, 1.442695
        %v1305 = vpow.pop %v1304
        %v1306 = vmul.f32 %v1240, 1.442695
        %v1307 = vpow.pop %v1306
        %v1308 = vmul.f32 %v1241, 1.442695
        %v1309 = vpow.pop %v1308
        %v1310 = vmul.f32 %v1242, 1.442695
        %v1311 = vpow.pop %v1310
        %v1312 = vmul.f32 %v1243, 1.442695
        %v1313 = vpow.pop %v1312
        %v1314 = vmul.f32 %v1244, 1.442695
        %v1315 = vpow.pop %v1314
        %v1316 = vmul.f32 %v1245, 1.442695
        %v1317 = vpow.pop %v1316
        %v1318 = vmul.f32 %v1246, 1.442695
        %v1319 = vpow.pop %v1318
        %v1320 = vmul.f32 %v1247, 1.442695
        %v1321 = vpow.pop %v1320
        %v1322 = vmul.f32 %v1248, 1.442695
        %v1323 = vpow.pop %v1322
        %v1324 = vmul.f32 %v1249, 1.442695
        %v1325 = vpow.pop %v1324
        %v1326 = vmul.f32 %v1250, 1.442695
        %v1327 = vpow.pop %v1326
        %v1328 = vmul.f32 %v1251, 1.442695
        %v1329 = vpow.pop %v1328
        %v1330 = vmul.f32 %v1252, 1.442695
        %v1331 = vpow.pop %v1330
        %v1332 = vmul.f32 %v1253, 1.442695
        %v1333 = vpow.pop %v1332
        %v1334 = vmul.f32 %v1254, 1.442695
        %v1335 = vpow.pop %v1334
        %v1336 = vmul.f32 %v1255, 1.442695
        %v1337 = vpow.pop %v1336
        %v1338 = vmul.f32 %v1256, 1.442695
        %v1339 = vpow.pop %v1338
        %v1340 = vmul.f32 %v1257, 1.442695
        %v1341 = vpow.pop %v1340
        %v1342 = vmul.f32 %v1258, 1.442695
        %v1343 = vpow.pop %v1342
        %v1344 = vmul.f32 %v1259, 1.442695
        %v1345 = vpow.pop %v1344
        %v1346 = vmul.f32 %v1260, 1.442695
        %v1347 = vpow.pop %v1346
        %v1348 = vmul.f32 %v1261, 1.442695
        %v1349 = vpow.pop %v1348
        %v1350 = vmul.f32 %v1262, 1.442695
        %v1351 = vpow.pop %v1350
        %v1352 = vmul.f32 %v1263, 1.442695
        %v1353 = vpow.pop %v1352
        %v1354 = vmul.f32 %v1264, 1.442695
        %v1355 = vpow.pop %v1354
        %v1356 = vmul.f32 %v1265, 1.442695
        %v1357 = vpow.pop %v1356
        %v1358 = vmul.f32 %v1266, 1.442695
        %v1359 = vpow.pop %v1358
        %v1360 = vmul.f32 %v1267, 1.442695
        %v1361 = vpow.pop %v1360
        %v1362 = vmul.f32 %v1268, 1.442695
        %v1363 = vpow.pop %v1362
        %v1364 = vmul.f32 %v1269, 1.442695
        %v1365 = vpow.pop %v1364
        %v1366 = vmul.f32 %v1270, 1.442695
        %v1367 = vpow.pop %v1366
        %v1368 = vmul.f32 %v1271, 1.442695
        %v1369 = vpow.pop %v1368
        %v1370 = vmul.f32 %v1272, 1.442695
        %v1371 = vpow.pop %v1370
        %v1372 = vmul.f32 %v1273, 1.442695
        %v1373 = vpow.pop %v1372
        %v1374 = vmul.f32 %v1274, 1.442695
        %v1375 = vpow.pop %v1374
        %v1376 = vmul.f32 %v1275, 1.442695
        %v1377 = vpow.pop %v1376
        %v1378 = vmul.f32 %v1276, 1.442695
        %v1379 = vpow.pop %v1378
        %v1380 = vmul.f32 %v1277, 1.442695
        %v1381 = vpow.pop %v1380
        %v1382 = vmul.f32 %v1278, 1.442695
        %v1383 = vpow.pop %v1382
        %v1384 = vmul.f32 %v1279, 1.442695
        %v1385 = vpow.pop %v1384
        %v1386 = vmul.f32 %v1280, 1.442695
        %v1387 = vpow.pop %v1386
        %v1388 = vmul.f32 %v1281, 1.442695
        %v1389 = vpow.pop %v1388
        %v1390 = vmul.f32 %v1282, 1.442695
        %v1391 = vpow.pop %v1390
        %v1392 = vmul.f32 %v1283, 1.442695
        %v1393 = vpow.pop %v1392
        %v1394 = vmul.f32 %v1284, 1.442695
        %v1395 = vpow.pop %v1394
        %v1396 = vmul.f32 %v1285, 1.442695
        %v1397 = vpow.pop %v1396
        %v1398 = vmul.f32 %v1286, 1.442695
        %v1399 = vpow.pop %v1398
        %v1400 = vmul.f32 %v1287, 1.442695
        %v1401 = vpow.pop %v1400
        %v1402 = vmul.f32 %v1288, 1.442695
        %v1403 = vpow.pop %v1402
        %v1404 = vmul.f32 %v1289, 1.442695
        %v1405 = vpow.pop %v1404
        %v1406 = vmul.f32 %v1290, 1.442695
        %v1407 = vpow.pop %v1406
        %v1408 = vmul.f32 %v1291, 1.442695
        %v1409 = vpow.pop %v1408
        %v1410 = vmul.f32 %v1292, 1.442695
        %v1411 = vpow.pop %v1410
        %v1412 = vmul.f32 %v1293, 1.442695
        %v1413 = vpow.pop %v1412
        %v1414 = vmul.f32 %v1294, 1.442695
        %v1415 = vpow.pop %v1414
        %v1416 = vmul.f32 %v1295, 1.442695
        %v1417 = vpow.pop %v1416
        %v1418 = vmul.f32 %v1296, 1.442695
        %v1419 = vpow.pop %v1418
        %v1420 = vmul.f32 %v1297, 1.442695
        %v1421 = vpow.pop %v1420
        %v1422 = vmul.f32 %v1298, 1.442695
        %v1423 = vpow.pop %v1422
        %v1424 = vmul.f32 %v1299, 1.442695
        %v1425 = vpow.pop %v1424
        %v1426 = vmul.f32 %v1300, 1.442695
        %v1427 = vpow.pop %v1426
        %v1428 = vmul.f32 %v1301, 1.442695
        %v1429 = vpow.pop %v1428
        %v1430 = vadd.f32 %v1303, %v1305
        %1431 = vadd.xlane.f32.xlu0 %v1430
        %v1432 = vpop.xlane.xlu0 %1431
        %v1433 = vadd.f32 %v1307, %v1309
        %1434 = vadd.xlane.f32.xlu0 %v1433
        %v1435 = vpop.xlane.xlu0 %1434
        %v1436 = vadd.f32 %v1311, %v1313
        %1437 = vadd.xlane.f32.xlu0 %v1436
        %v1438 = vpop.xlane.xlu0 %1437
        %v1439 = vadd.f32 %v1315, %v1317
        %1440 = vadd.xlane.f32.xlu0 %v1439
        %v1441 = vpop.xlane.xlu0 %1440
        %v1442 = vadd.f32 %v1319, %v1321
        %1443 = vadd.xlane.f32.xlu0 %v1442
        %v1444 = vpop.xlane.xlu0 %1443
        %v1445 = vadd.f32 %v1323, %v1325
        %1446 = vadd.xlane.f32.xlu0 %v1445
        %v1447 = vpop.xlane.xlu0 %1446
        %v1448 = vadd.f32 %v1327, %v1329
        %1449 = vadd.xlane.f32.xlu0 %v1448
        %v1450 = vpop.xlane.xlu0 %1449
        %v1451 = vadd.f32 %v1331, %v1333
        %1452 = vadd.xlane.f32.xlu0 %v1451
        %v1453 = vpop.xlane.xlu0 %1452
        %v1454 = vadd.f32 %v1335, %v1337
        %1455 = vadd.xlane.f32.xlu0 %v1454
        %v1456 = vpop.xlane.xlu0 %1455
        %v1457 = vadd.f32 %v1339, %v1341
        %1458 = vadd.xlane.f32.xlu0 %v1457
        %v1459 = vpop.xlane.xlu0 %1458
        %v1460 = vadd.f32 %v1343, %v1345
        %1461 = vadd.xlane.f32.xlu0 %v1460
        %v1462 = vpop.xlane.xlu0 %1461
        %v1463 = vadd.f32 %v1347, %v1349
        %1464 = vadd.xlane.f32.xlu0 %v1463
        %v1465 = vpop.xlane.xlu0 %1464
        %v1466 = vadd.f32 %v1351, %v1353
        %1467 = vadd.xlane.f32.xlu0 %v1466
        %v1468 = vpop.xlane.xlu0 %1467
        %v1469 = vadd.f32 %v1355, %v1357
        %1470 = vadd.xlane.f32.xlu0 %v1469
        %v1471 = vpop.xlane.xlu0 %1470
        %v1472 = vadd.f32 %v1359, %v1361
        %1473 = vadd.xlane.f32.xlu0 %v1472
        %v1474 = vpop.xlane.xlu0 %1473
        %v1475 = vadd.f32 %v1363, %v1365
        %1476 = vadd.xlane.f32.xlu0 %v1475
        %v1477 = vpop.xlane.xlu0 %1476
        %v1478 = vadd.f32 %v1367, %v1369
        %1479 = vadd.xlane.f32.xlu0 %v1478
        %v1480 = vpop.xlane.xlu0 %1479
        %v1481 = vadd.f32 %v1371, %v1373
        %1482 = vadd.xlane.f32.xlu0 %v1481
        %v1483 = vpop.xlane.xlu0 %1482
        %v1484 = vadd.f32 %v1375, %v1377
        %1485 = vadd.xlane.f32.xlu0 %v1484
        %v1486 = vpop.xlane.xlu0 %1485
        %v1487 = vadd.f32 %v1379, %v1381
        %1488 = vadd.xlane.f32.xlu0 %v1487
        %v1489 = vpop.xlane.xlu0 %1488
        %v1490 = vadd.f32 %v1383, %v1385
        %1491 = vadd.xlane.f32.xlu0 %v1490
        %v1492 = vpop.xlane.xlu0 %1491
        %v1493 = vadd.f32 %v1387, %v1389
        %1494 = vadd.xlane.f32.xlu0 %v1493
        %v1495 = vpop.xlane.xlu0 %1494
        %v1496 = vadd.f32 %v1391, %v1393
        %1497 = vadd.xlane.f32.xlu0 %v1496
        %v1498 = vpop.xlane.xlu0 %1497
        %v1499 = vadd.f32 %v1395, %v1397
        %1500 = vadd.xlane.f32.xlu0 %v1499
        %v1501 = vpop.xlane.xlu0 %1500
        %v1502 = vadd.f32 %v1399, %v1401
        %1503 = vadd.xlane.f32.xlu0 %v1502
        %v1504 = vpop.xlane.xlu0 %1503
        %v1505 = vadd.f32 %v1403, %v1405
        %1506 = vadd.xlane.f32.xlu0 %v1505
        %v1507 = vpop.xlane.xlu0 %1506
        %v1508 = vadd.f32 %v1407, %v1409
        %1509 = vadd.xlane.f32.xlu0 %v1508
        %v1510 = vpop.xlane.xlu0 %1509
        %v1511 = vadd.f32 %v1411, %v1413
        %1512 = vadd.xlane.f32.xlu0 %v1511
        %v1513 = vpop.xlane.xlu0 %1512
        %v1514 = vadd.f32 %v1415, %v1417
        %1515 = vadd.xlane.f32.xlu0 %v1514
        %v1516 = vpop.xlane.xlu0 %1515
        %v1517 = vadd.f32 %v1419, %v1421
        %1518 = vadd.xlane.f32.xlu0 %v1517
        %v1519 = vpop.xlane.xlu0 %1518
        %v1520 = vadd.f32 %v1423, %v1425
        %1521 = vadd.xlane.f32.xlu0 %v1520
        %v1522 = vpop.xlane.xlu0 %1521
        %v1523 = vadd.f32 %v1427, %v1429
        %1524 = vadd.xlane.f32.xlu0 %v1523
        %v1525 = vpop.xlane.xlu0 %1524
        %1526 = vmatpush.xpose.msra.mxu0 0.0
        %1527 = vmatpush.xpose.msra.mxu0 0.0
        %1528 = vmatpush.xpose.msra.mxu0 0.0
        %1529 = vmatpush.xpose.msra.mxu0 0.0
        %1530 = vmatpush.xpose.msra.mxu0 0.0
        %1531 = vmatpush.xpose.msra.mxu0 0.0
        %1532 = vmatpush.xpose.msra.mxu0 0.0
        %1533 = vmatpush.xpose.msra.mxu0 0.0
        %1534 = vmatpush.xpose.msra.mxu0 0.0
        %1535 = vmatpush.xpose.msra.mxu0 0.0
        %1536 = vmatpush.xpose.msra.mxu0 0.0
        %1537 = vmatpush.xpose.msra.mxu0 0.0
        %1538 = vmatpush.xpose.msra.mxu0 0.0
        %1539 = vmatpush.xpose.msra.mxu0 0.0
        %1540 = vmatpush.xpose.msra.mxu0 0.0
        %1541 = vmatpush.xpose.msra.mxu0 %v481
        %1542 = vmatmul.f32.gmra.mxu0 %v1303
        %v1543 = vpop.f32.mrf.mxu0
        %v1544 = vadd.f32 0.0, %v1543
        %1545 = vmatmul.f32.gmra.mxu0 %v1307
        %v1546 = vpop.f32.mrf.mxu0
        %v1547 = vadd.f32 0.0, %v1546
        %1548 = vmatmul.f32.gmra.mxu0 %v1311
        %v1549 = vpop.f32.mrf.mxu0
        %v1550 = vadd.f32 0.0, %v1549
        %1551 = vmatmul.f32.gmra.mxu0 %v1315
        %v1552 = vpop.f32.mrf.mxu0
        %v1553 = vadd.f32 0.0, %v1552
        %1554 = vmatmul.f32.gmra.mxu0 %v1319
        %v1555 = vpop.f32.mrf.mxu0
        %v1556 = vadd.f32 0.0, %v1555
        %1557 = vmatmul.f32.gmra.mxu0 %v1323
        %v1558 = vpop.f32.mrf.mxu0
        %v1559 = vadd.f32 0.0, %v1558
        %1560 = vmatmul.f32.gmra.mxu0 %v1327
        %v1561 = vpop.f32.mrf.mxu0
        %v1562 = vadd.f32 0.0, %v1561
        %1563 = vmatmul.f32.gmra.mxu0 %v1331
        %v1564 = vpop.f32.mrf.mxu0
        %v1565 = vadd.f32 0.0, %v1564
        %1566 = vmatmul.f32.gmra.mxu0 %v1335
        %v1567 = vpop.f32.mrf.mxu0
        %v1568 = vadd.f32 0.0, %v1567
        %1569 = vmatmul.f32.gmra.mxu0 %v1339
        %v1570 = vpop.f32.mrf.mxu0
        %v1571 = vadd.f32 0.0, %v1570
        %1572 = vmatmul.f32.gmra.mxu0 %v1343
        %v1573 = vpop.f32.mrf.mxu0
        %v1574 = vadd.f32 0.0, %v1573
        %1575 = vmatmul.f32.gmra.mxu0 %v1347
        %v1576 = vpop.f32.mrf.mxu0
        %v1577 = vadd.f32 0.0, %v1576
        %1578 = vmatmul.f32.gmra.mxu0 %v1351
        %v1579 = vpop.f32.mrf.mxu0
        %v1580 = vadd.f32 0.0, %v1579
        %1581 = vmatmul.f32.gmra.mxu0 %v1355
        %v1582 = vpop.f32.mrf.mxu0
        %v1583 = vadd.f32 0.0, %v1582
        %1584 = vmatmul.f32.gmra.mxu0 %v1359
        %v1585 = vpop.f32.mrf.mxu0
        %v1586 = vadd.f32 0.0, %v1585
        %1587 = vmatmul.f32.gmra.mxu0 %v1363
        %v1588 = vpop.f32.mrf.mxu0
        %v1589 = vadd.f32 0.0, %v1588
        %1590 = vmatmul.f32.gmra.mxu0 %v1367
        %v1591 = vpop.f32.mrf.mxu0
        %v1592 = vadd.f32 0.0, %v1591
        %1593 = vmatmul.f32.gmra.mxu0 %v1371
        %v1594 = vpop.f32.mrf.mxu0
        %v1595 = vadd.f32 0.0, %v1594
        %1596 = vmatmul.f32.gmra.mxu0 %v1375
        %v1597 = vpop.f32.mrf.mxu0
        %v1598 = vadd.f32 0.0, %v1597
        %1599 = vmatmul.f32.gmra.mxu0 %v1379
        %v1600 = vpop.f32.mrf.mxu0
        %v1601 = vadd.f32 0.0, %v1600
        %1602 = vmatmul.f32.gmra.mxu0 %v1383
        %v1603 = vpop.f32.mrf.mxu0
        %v1604 = vadd.f32 0.0, %v1603
        %1605 = vmatmul.f32.gmra.mxu0 %v1387
        %v1606 = vpop.f32.mrf.mxu0
        %v1607 = vadd.f32 0.0, %v1606
        %1608 = vmatmul.f32.gmra.mxu0 %v1391
        %v1609 = vpop.f32.mrf.mxu0
        %v1610 = vadd.f32 0.0, %v1609
        %1611 = vmatmul.f32.gmra.mxu0 %v1395
        %v1612 = vpop.f32.mrf.mxu0
        %v1613 = vadd.f32 0.0, %v1612
        %1614 = vmatmul.f32.gmra.mxu0 %v1399
        %v1615 = vpop.f32.mrf.mxu0
        %v1616 = vadd.f32 0.0, %v1615
        %1617 = vmatmul.f32.gmra.mxu0 %v1403
        %v1618 = vpop.f32.mrf.mxu0
        %v1619 = vadd.f32 0.0, %v1618
        %1620 = vmatmul.f32.gmra.mxu0 %v1407
        %v1621 = vpop.f32.mrf.mxu0
        %v1622 = vadd.f32 0.0, %v1621
        %1623 = vmatmul.f32.gmra.mxu0 %v1411
        %v1624 = vpop.f32.mrf.mxu0
        %v1625 = vadd.f32 0.0, %v1624
        %1626 = vmatmul.f32.gmra.mxu0 %v1415
        %v1627 = vpop.f32.mrf.mxu0
        %v1628 = vadd.f32 0.0, %v1627
        %1629 = vmatmul.f32.gmra.mxu0 %v1419
        %v1630 = vpop.f32.mrf.mxu0
        %v1631 = vadd.f32 0.0, %v1630
        %1632 = vmatmul.f32.gmra.mxu0 %v1423
        %v1633 = vpop.f32.mrf.mxu0
        %v1634 = vadd.f32 0.0, %v1633
        %1635 = vmatmul.f32.gmra.mxu0 %v1427
        %v1636 = vpop.f32.mrf.mxu0
        %v1637 = vadd.f32 0.0, %v1636
        %1638 = vdwg.mxu0
        %1639 = vmatpush.xpose.msra.mxu0 0.0
        %1640 = vmatpush.xpose.msra.mxu0 0.0
        %1641 = vmatpush.xpose.msra.mxu0 0.0
        %1642 = vmatpush.xpose.msra.mxu0 0.0
        %1643 = vmatpush.xpose.msra.mxu0 0.0
        %1644 = vmatpush.xpose.msra.mxu0 0.0
        %1645 = vmatpush.xpose.msra.mxu0 0.0
        %1646 = vmatpush.xpose.msra.mxu0 0.0
        %1647 = vmatpush.xpose.msra.mxu0 0.0
        %1648 = vmatpush.xpose.msra.mxu0 0.0
        %1649 = vmatpush.xpose.msra.mxu0 0.0
        %1650 = vmatpush.xpose.msra.mxu0 0.0
        %1651 = vmatpush.xpose.msra.mxu0 0.0
        %1652 = vmatpush.xpose.msra.mxu0 0.0
        %1653 = vmatpush.xpose.msra.mxu0 0.0
        %1654 = vmatpush.xpose.msra.mxu0 %v522
        %1655 = vmatmul.f32.gmra.mxu0 %v1305
        %v1656 = vpop.f32.mrf.mxu0
        %v1657 = vadd.f32 %v1544, %v1656
        %1658 = vmatmul.f32.gmra.mxu0 %v1309
        %v1659 = vpop.f32.mrf.mxu0
        %v1660 = vadd.f32 %v1547, %v1659
        %1661 = vmatmul.f32.gmra.mxu0 %v1313
        %v1662 = vpop.f32.mrf.mxu0
        %v1663 = vadd.f32 %v1550, %v1662
        %1664 = vmatmul.f32.gmra.mxu0 %v1317
        %v1665 = vpop.f32.mrf.mxu0
        %v1666 = vadd.f32 %v1553, %v1665
        %1667 = vmatmul.f32.gmra.mxu0 %v1321
        %v1668 = vpop.f32.mrf.mxu0
        %v1669 = vadd.f32 %v1556, %v1668
        %1670 = vmatmul.f32.gmra.mxu0 %v1325
        %v1671 = vpop.f32.mrf.mxu0
        %v1672 = vadd.f32 %v1559, %v1671
        %1673 = vmatmul.f32.gmra.mxu0 %v1329
        %v1674 = vpop.f32.mrf.mxu0
        %v1675 = vadd.f32 %v1562, %v1674
        %1676 = vmatmul.f32.gmra.mxu0 %v1333
        %v1677 = vpop.f32.mrf.mxu0
        %v1678 = vadd.f32 %v1565, %v1677
        %1679 = vmatmul.f32.gmra.mxu0 %v1337
        %v1680 = vpop.f32.mrf.mxu0
        %v1681 = vadd.f32 %v1568, %v1680
        %1682 = vmatmul.f32.gmra.mxu0 %v1341
        %v1683 = vpop.f32.mrf.mxu0
        %v1684 = vadd.f32 %v1571, %v1683
        %1685 = vmatmul.f32.gmra.mxu0 %v1345
        %v1686 = vpop.f32.mrf.mxu0
        %v1687 = vadd.f32 %v1574, %v1686
        %1688 = vmatmul.f32.gmra.mxu0 %v1349
        %v1689 = vpop.f32.mrf.mxu0
        %v1690 = vadd.f32 %v1577, %v1689
        %1691 = vmatmul.f32.gmra.mxu0 %v1353
        %v1692 = vpop.f32.mrf.mxu0
        %v1693 = vadd.f32 %v1580, %v1692
        %1694 = vmatmul.f32.gmra.mxu0 %v1357
        %v1695 = vpop.f32.mrf.mxu0
        %v1696 = vadd.f32 %v1583, %v1695
        %1697 = vmatmul.f32.gmra.mxu0 %v1361
        %v1698 = vpop.f32.mrf.mxu0
        %v1699 = vadd.f32 %v1586, %v1698
        %1700 = vmatmul.f32.gmra.mxu0 %v1365
        %v1701 = vpop.f32.mrf.mxu0
        %v1702 = vadd.f32 %v1589, %v1701
        %1703 = vmatmul.f32.gmra.mxu0 %v1369
        %v1704 = vpop.f32.mrf.mxu0
        %v1705 = vadd.f32 %v1592, %v1704
        %1706 = vmatmul.f32.gmra.mxu0 %v1373
        %v1707 = vpop.f32.mrf.mxu0
        %v1708 = vadd.f32 %v1595, %v1707
        %1709 = vmatmul.f32.gmra.mxu0 %v1377
        %v1710 = vpop.f32.mrf.mxu0
        %v1711 = vadd.f32 %v1598, %v1710
        %1712 = vmatmul.f32.gmra.mxu0 %v1381
        %v1713 = vpop.f32.mrf.mxu0
        %v1714 = vadd.f32 %v1601, %v1713
        %1715 = vmatmul.f32.gmra.mxu0 %v1385
        %v1716 = vpop.f32.mrf.mxu0
        %v1717 = vadd.f32 %v1604, %v1716
        %1718 = vmatmul.f32.gmra.mxu0 %v1389
        %v1719 = vpop.f32.mrf.mxu0
        %v1720 = vadd.f32 %v1607, %v1719
        %1721 = vmatmul.f32.gmra.mxu0 %v1393
        %v1722 = vpop.f32.mrf.mxu0
        %v1723 = vadd.f32 %v1610, %v1722
        %1724 = vmatmul.f32.gmra.mxu0 %v1397
        %v1725 = vpop.f32.mrf.mxu0
        %v1726 = vadd.f32 %v1613, %v1725
        %1727 = vmatmul.f32.gmra.mxu0 %v1401
        %v1728 = vpop.f32.mrf.mxu0
        %v1729 = vadd.f32 %v1616, %v1728
        %1730 = vmatmul.f32.gmra.mxu0 %v1405
        %v1731 = vpop.f32.mrf.mxu0
        %v1732 = vadd.f32 %v1619, %v1731
        %1733 = vmatmul.f32.gmra.mxu0 %v1409
        %v1734 = vpop.f32.mrf.mxu0
        %v1735 = vadd.f32 %v1622, %v1734
        %1736 = vmatmul.f32.gmra.mxu0 %v1413
        %v1737 = vpop.f32.mrf.mxu0
        %v1738 = vadd.f32 %v1625, %v1737
        %1739 = vmatmul.f32.gmra.mxu0 %v1417
        %v1740 = vpop.f32.mrf.mxu0
        %v1741 = vadd.f32 %v1628, %v1740
        %1742 = vmatmul.f32.gmra.mxu0 %v1421
        %v1743 = vpop.f32.mrf.mxu0
        %v1744 = vadd.f32 %v1631, %v1743
        %1745 = vmatmul.f32.gmra.mxu0 %v1425
        %v1746 = vpop.f32.mrf.mxu0
        %v1747 = vadd.f32 %v1634, %v1746
        %1748 = vmatmul.f32.gmra.mxu0 %v1429
        %v1749 = vpop.f32.mrf.mxu0
        %v1750 = vadd.f32 %v1637, %v1749
        %1751 = vdwg.mxu0
        %v1752 = vrcp.pop %v1432
        %v1753 = vrcp.pop %v1435
        %v1754 = vrcp.pop %v1438
        %v1755 = vrcp.pop %v1441
        %v1756 = vrcp.pop %v1444
        %v1757 = vrcp.pop %v1447
        %v1758 = vrcp.pop %v1450
        %v1759 = vrcp.pop %v1453
        %v1760 = vrcp.pop %v1456
        %v1761 = vrcp.pop %v1459
        %v1762 = vrcp.pop %v1462
        %v1763 = vrcp.pop %v1465
        %v1764 = vrcp.pop %v1468
        %v1765 = vrcp.pop %v1471
        %v1766 = vrcp.pop %v1474
        %v1767 = vrcp.pop %v1477
        %v1768 = vrcp.pop %v1480
        %v1769 = vrcp.pop %v1483
        %v1770 = vrcp.pop %v1486
        %v1771 = vrcp.pop %v1489
        %v1772 = vrcp.pop %v1492
        %v1773 = vrcp.pop %v1495
        %v1774 = vrcp.pop %v1498
        %v1775 = vrcp.pop %v1501
        %v1776 = vrcp.pop %v1504
        %v1777 = vrcp.pop %v1507
        %v1778 = vrcp.pop %v1510
        %v1779 = vrcp.pop %v1513
        %v1780 = vrcp.pop %v1516
        %v1781 = vrcp.pop %v1519
        %v1782 = vrcp.pop %v1522
        %v1783 = vrcp.pop %v1525
        %v1784 = vmul.f32 %v1657, %v1752
        %v1785 = vmul.f32 %v1660, %v1753
        %v1786 = vmul.f32 %v1663, %v1754
        %v1787 = vmul.f32 %v1666, %v1755
        %v1788 = vmul.f32 %v1669, %v1756
        %v1789 = vmul.f32 %v1672, %v1757
        %v1790 = vmul.f32 %v1675, %v1758
        %v1791 = vmul.f32 %v1678, %v1759
        %v1792 = vmul.f32 %v1681, %v1760
        %v1793 = vmul.f32 %v1684, %v1761
        %v1794 = vmul.f32 %v1687, %v1762
        %v1795 = vmul.f32 %v1690, %v1763
        %v1796 = vmul.f32 %v1693, %v1764
        %v1797 = vmul.f32 %v1696, %v1765
        %v1798 = vmul.f32 %v1699, %v1766
        %v1799 = vmul.f32 %v1702, %v1767
        %v1800 = vmul.f32 %v1705, %v1768
        %v1801 = vmul.f32 %v1708, %v1769
        %v1802 = vmul.f32 %v1711, %v1770
        %v1803 = vmul.f32 %v1714, %v1771
        %v1804 = vmul.f32 %v1717, %v1772
        %v1805 = vmul.f32 %v1720, %v1773
        %v1806 = vmul.f32 %v1723, %v1774
        %v1807 = vmul.f32 %v1726, %v1775
        %v1808 = vmul.f32 %v1729, %v1776
        %v1809 = vmul.f32 %v1732, %v1777
        %v1810 = vmul.f32 %v1735, %v1778
        %v1811 = vmul.f32 %v1738, %v1779
        %v1812 = vmul.f32 %v1741, %v1780
        %v1813 = vmul.f32 %v1744, %v1781
        %v1814 = vmul.f32 %v1747, %v1782
        %v1815 = vmul.f32 %v1750, %v1783
        %1816 = vst.msk [vmem:[#allocation3] sm:$0xff] %vm819, %v1784
        %1817 = vst.msk [vmem:[#allocation3 + $0x8] sm:$0xff] %vm819, %v1785
        %1818 = vst.msk [vmem:[#allocation3 + $0x10] sm:$0xff] %vm819, %v1786
        %1819 = vst.msk [vmem:[#allocation3 + $0x18] sm:$0xff] %vm819, %v1787
        %1820 = vst.msk [vmem:[#allocation3 + $0x20] sm:$0xff] %vm819, %v1788
        %1821 = vst.msk [vmem:[#allocation3 + $0x28] sm:$0xff] %vm819, %v1789
        %1822 = vst.msk [vmem:[#allocation3 + $0x30] sm:$0xff] %vm819, %v1790
        %1823 = vst.msk [vmem:[#allocation3 + $0x38] sm:$0xff] %vm819, %v1791
        %1824 = vst.msk [vmem:[#allocation3 + $0x40] sm:$0xff] %vm819, %v1792
        %1825 = vst.msk [vmem:[#allocation3 + $0x48] sm:$0xff] %vm819, %v1793
        %1826 = vst.msk [vmem:[#allocation3 + $0x50] sm:$0xff] %vm819, %v1794
        %1827 = vst.msk [vmem:[#allocation3 + $0x58] sm:$0xff] %vm819, %v1795
        %1828 = vst.msk [vmem:[#allocation3 + $0x60] sm:$0xff] %vm819, %v1796
        %1829 = vst.msk [vmem:[#allocation3 + $0x68] sm:$0xff] %vm819, %v1797
        %1830 = vst.msk [vmem:[#allocation3 + $0x70] sm:$0xff] %vm819, %v1798
        %1831 = vst.msk [vmem:[#allocation3 + $0x78] sm:$0xff] %vm819, %v1799
        %1832 = vst.msk [vmem:[#allocation3 + $0x80] sm:$0xff] %vm819, %v1800
        %1833 = vst.msk [vmem:[#allocation3 + $0x88] sm:$0xff] %vm819, %v1801
        %1834 = vst.msk [vmem:[#allocation3 + $0x90] sm:$0xff] %vm819, %v1802
        %1835 = vst.msk [vmem:[#allocation3 + $0x98] sm:$0xff] %vm819, %v1803
        %1836 = vst.msk [vmem:[#allocation3 + $0xa0] sm:$0xff] %vm819, %v1804
        %1837 = vst.msk [vmem:[#allocation3 + $0xa8] sm:$0xff] %vm819, %v1805
        %1838 = vst.msk [vmem:[#allocation3 + $0xb0] sm:$0xff] %vm819, %v1806
        %1839 = vst.msk [vmem:[#allocation3 + $0xb8] sm:$0xff] %vm819, %v1807
        %1840 = vst.msk [vmem:[#allocation3 + $0xc0] sm:$0xff] %vm819, %v1808
        %1841 = vst.msk [vmem:[#allocation3 + $0xc8] sm:$0xff] %vm819, %v1809
        %1842 = vst.msk [vmem:[#allocation3 + $0xd0] sm:$0xff] %vm819, %v1810
        %1843 = vst.msk [vmem:[#allocation3 + $0xd8] sm:$0xff] %vm819, %v1811
        %1844 = vst.msk [vmem:[#allocation3 + $0xe0] sm:$0xff] %vm819, %v1812
        %1845 = vst.msk [vmem:[#allocation3 + $0xe8] sm:$0xff] %vm819, %v1813
        %1846 = vst.msk [vmem:[#allocation3 + $0xf0] sm:$0xff] %vm819, %v1814
        %1847 = vst.msk [vmem:[#allocation3 + $0xf8] sm:$0xff] %vm819, %v1815
        %v1848 = vmul.f32 %v472, %v472
        %v1849 = vmul.f32 %v513, %v513
        %v1850 = vrot.slane %v1848, 4
        %v1851 = vadd.f32 %v1848, %v1850
        %v1852 = vrot.slane %v1851, 2
        %v1853 = vadd.f32 %v1851, %v1852
        %v1854 = vrot.slane %v1853, 1
        %v1855 = vadd.f32 %v1853, %v1854
        %v1856 = vrot.slane %v1849, 4
        %v1857 = vadd.f32 %v1849, %v1856
        %v1858 = vrot.slane %v1857, 2
        %v1859 = vadd.f32 %v1857, %v1858
        %v1860 = vrot.slane %v1859, 1
        %v1861 = vadd.f32 %v1859, %v1860
        %v1862 = vmax.f32 %v1855, 1e-24
        %v1863 = vmax.f32 %v1861, 1e-24
        %v1864 = vrsqrt.pop %v1862
        %v1865 = vmul.f32 %v1864, %v1862
        %v1866 = vmul.f32 %v1865, %v1864
        %v1867 = vmul.f32 0.5, %v1866
        %v1868 = vsub.f32 1.5, %v1867
        %v1869 = vmul.f32 %v1864, %v1868
        %vm1870 = vweird.f32 %v1862
        %vm1871 = vweird.f32 %v1864
        %vm1872 = vmor %vm1870, %vm1871
        %v1873 = vsel %vm1872, %v1864, %v1869
        %v1874 = vrsqrt.pop %v1863
        %v1875 = vmul.f32 %v1874, %v1863
        %v1876 = vmul.f32 %v1875, %v1874
        %v1877 = vmul.f32 0.5, %v1876
        %v1878 = vsub.f32 1.5, %v1877
        %v1879 = vmul.f32 %v1874, %v1878
        %vm1880 = vweird.f32 %v1863
        %vm1881 = vweird.f32 %v1874
        %vm1882 = vmor %vm1880, %vm1881
        %v1883 = vsel %vm1882, %v1874, %v1879
        %v1884 = vmul.f32 %v472, %v1873
        %v1885 = vmul.f32 %v513, %v1883
        %1886 = vrot.lane.b32.xlu0 %v733, 120
        %v1887 = vpop.permute.xlu0 %1886
        %1888 = vrot.lane.b32.xlu0 %v734, 120
        %v1889 = vpop.permute.xlu0 %1888
        %1890 = vrot.lane.b32.xlu0 %v735, 120
        %v1891 = vpop.permute.xlu0 %1890
        %1892 = vrot.lane.b32.xlu0 %v736, 120
        %v1893 = vpop.permute.xlu0 %1892
        %1894 = vrot.lane.b32.xlu0 %v737, 120
        %v1895 = vpop.permute.xlu0 %1894
        %1896 = vrot.lane.b32.xlu0 %v738, 120
        %v1897 = vpop.permute.xlu0 %1896
        %1898 = vrot.lane.b32.xlu0 %v739, 120
        %v1899 = vpop.permute.xlu0 %1898
        %1900 = vrot.lane.b32.xlu0 %v740, 120
        %v1901 = vpop.permute.xlu0 %1900
        %1902 = vrot.lane.b32.xlu0 %v741, 120
        %v1903 = vpop.permute.xlu0 %1902
        %1904 = vrot.lane.b32.xlu0 %v742, 120
        %v1905 = vpop.permute.xlu0 %1904
        %1906 = vrot.lane.b32.xlu0 %v743, 120
        %v1907 = vpop.permute.xlu0 %1906
        %1908 = vrot.lane.b32.xlu0 %v744, 120
        %v1909 = vpop.permute.xlu0 %1908
        %1910 = vrot.lane.b32.xlu0 %v745, 120
        %v1911 = vpop.permute.xlu0 %1910
        %1912 = vrot.lane.b32.xlu0 %v746, 120
        %v1913 = vpop.permute.xlu0 %1912
        %1914 = vrot.lane.b32.xlu0 %v747, 120
        %v1915 = vpop.permute.xlu0 %1914
        %1916 = vrot.lane.b32.xlu0 %v748, 120
        %v1917 = vpop.permute.xlu0 %1916
        %1918 = vrot.lane.b32.xlu0 %v765, 120
        %v1919 = vpop.permute.xlu0 %1918
        %1920 = vrot.lane.b32.xlu0 %v766, 120
        %v1921 = vpop.permute.xlu0 %1920
        %1922 = vrot.lane.b32.xlu0 %v767, 120
        %v1923 = vpop.permute.xlu0 %1922
        %1924 = vrot.lane.b32.xlu0 %v768, 120
        %v1925 = vpop.permute.xlu0 %1924
        %1926 = vrot.lane.b32.xlu0 %v769, 120
        %v1927 = vpop.permute.xlu0 %1926
        %1928 = vrot.lane.b32.xlu0 %v770, 120
        %v1929 = vpop.permute.xlu0 %1928
        %1930 = vrot.lane.b32.xlu0 %v771, 120
        %v1931 = vpop.permute.xlu0 %1930
        %1932 = vrot.lane.b32.xlu0 %v772, 120
        %v1933 = vpop.permute.xlu0 %1932
        %1934 = vrot.lane.b32.xlu0 %v773, 120
        %v1935 = vpop.permute.xlu0 %1934
        %1936 = vrot.lane.b32.xlu0 %v774, 120
        %v1937 = vpop.permute.xlu0 %1936
        %1938 = vrot.lane.b32.xlu0 %v775, 120
        %v1939 = vpop.permute.xlu0 %1938
        %1940 = vrot.lane.b32.xlu0 %v776, 120
        %v1941 = vpop.permute.xlu0 %1940
        %1942 = vrot.lane.b32.xlu0 %v777, 120
        %v1943 = vpop.permute.xlu0 %1942
        %1944 = vrot.lane.b32.xlu0 %v778, 120
        %v1945 = vpop.permute.xlu0 %1944
        %1946 = vrot.lane.b32.xlu0 %v779, 120
        %v1947 = vpop.permute.xlu0 %1946
        %1948 = vrot.lane.b32.xlu0 %v780, 120
        %v1949 = vpop.permute.xlu0 %1948
        %v1950 = vsel %vm819, %v1887, 0
        %v1952 = vsel %vm819, %v1889, 0
        %v1954 = vsel %vm819, %v1891, 0
        %v1956 = vsel %vm819, %v1893, 0
        %v1958 = vsel %vm819, %v1895, 0
        %v1960 = vsel %vm819, %v1897, 0
        %v1962 = vsel %vm819, %v1899, 0
        %v1964 = vsel %vm819, %v1901, 0
        %v1966 = vsel %vm819, %v1903, 0
        %v1968 = vsel %vm819, %v1905, 0
        %v1970 = vsel %vm819, %v1907, 0
        %v1972 = vsel %vm819, %v1909, 0
        %v1974 = vsel %vm819, %v1911, 0
        %v1976 = vsel %vm819, %v1913, 0
        %v1978 = vsel %vm819, %v1915, 0
        %v1980 = vsel %vm819, %v1917, 0
        %v1982 = vsel %vm819, %v1919, 0
        %v1984 = vsel %vm819, %v1921, 0
        %v1986 = vsel %vm819, %v1923, 0
        %v1988 = vsel %vm819, %v1925, 0
        %v1990 = vsel %vm819, %v1927, 0
        %v1992 = vsel %vm819, %v1929, 0
        %v1994 = vsel %vm819, %v1931, 0
        %v1996 = vsel %vm819, %v1933, 0
        %v1998 = vsel %vm819, %v1935, 0
        %v2000 = vsel %vm819, %v1937, 0
        %v2002 = vsel %vm819, %v1939, 0
        %v2004 = vsel %vm819, %v1941, 0
        %v2006 = vsel %vm819, %v1943, 0
        %v2008 = vsel %vm819, %v1945, 0
        %v2010 = vsel %vm819, %v1947, 0
        %v2012 = vsel %vm819, %v1949, 0
        %2014 = vmatpush.msra.mxu0 0.0
        %2015 = vmatpush.msra.mxu0 0.0
        %2016 = vmatpush.msra.mxu0 0.0
        %2017 = vmatpush.msra.mxu0 0.0
        %2018 = vmatpush.msra.mxu0 0.0
        %2019 = vmatpush.msra.mxu0 0.0
        %2020 = vmatpush.msra.mxu0 0.0
        %2021 = vmatpush.msra.mxu0 0.0
        %2022 = vmatpush.msra.mxu0 0.0
        %2023 = vmatpush.msra.mxu0 0.0
        %2024 = vmatpush.msra.mxu0 0.0
        %2025 = vmatpush.msra.mxu0 0.0
        %2026 = vmatpush.msra.mxu0 0.0
        %2027 = vmatpush.msra.mxu0 0.0
        %2028 = vmatpush.msra.mxu0 0.0
        %2029 = vmatpush.msra.mxu0 %v1884
        %2030 = vmatmul.f32.gmra.mxu0 %v1950
        %v2031 = vpop.f32.mrf.mxu0
        %v2032 = vadd.f32 0.0, %v2031
        %2033 = vmatmul.f32.gmra.mxu0 %v1952
        %v2034 = vpop.f32.mrf.mxu0
        %v2035 = vadd.f32 0.0, %v2034
        %2036 = vmatmul.f32.gmra.mxu0 %v1954
        %v2037 = vpop.f32.mrf.mxu0
        %v2038 = vadd.f32 0.0, %v2037
        %2039 = vmatmul.f32.gmra.mxu0 %v1956
        %v2040 = vpop.f32.mrf.mxu0
        %v2041 = vadd.f32 0.0, %v2040
        %2042 = vmatmul.f32.gmra.mxu0 %v1958
        %v2043 = vpop.f32.mrf.mxu0
        %v2044 = vadd.f32 0.0, %v2043
        %2045 = vmatmul.f32.gmra.mxu0 %v1960
        %v2046 = vpop.f32.mrf.mxu0
        %v2047 = vadd.f32 0.0, %v2046
        %2048 = vmatmul.f32.gmra.mxu0 %v1962
        %v2049 = vpop.f32.mrf.mxu0
        %v2050 = vadd.f32 0.0, %v2049
        %2051 = vmatmul.f32.gmra.mxu0 %v1964
        %v2052 = vpop.f32.mrf.mxu0
        %v2053 = vadd.f32 0.0, %v2052
        %2054 = vmatmul.f32.gmra.mxu0 %v1966
        %v2055 = vpop.f32.mrf.mxu0
        %v2056 = vadd.f32 0.0, %v2055
        %2057 = vmatmul.f32.gmra.mxu0 %v1968
        %v2058 = vpop.f32.mrf.mxu0
        %v2059 = vadd.f32 0.0, %v2058
        %2060 = vmatmul.f32.gmra.mxu0 %v1970
        %v2061 = vpop.f32.mrf.mxu0
        %v2062 = vadd.f32 0.0, %v2061
        %2063 = vmatmul.f32.gmra.mxu0 %v1972
        %v2064 = vpop.f32.mrf.mxu0
        %v2065 = vadd.f32 0.0, %v2064
        %2066 = vmatmul.f32.gmra.mxu0 %v1974
        %v2067 = vpop.f32.mrf.mxu0
        %v2068 = vadd.f32 0.0, %v2067
        %2069 = vmatmul.f32.gmra.mxu0 %v1976
        %v2070 = vpop.f32.mrf.mxu0
        %v2071 = vadd.f32 0.0, %v2070
        %2072 = vmatmul.f32.gmra.mxu0 %v1978
        %v2073 = vpop.f32.mrf.mxu0
        %v2074 = vadd.f32 0.0, %v2073
        %2075 = vmatmul.f32.gmra.mxu0 %v1980
        %v2076 = vpop.f32.mrf.mxu0
        %v2077 = vadd.f32 0.0, %v2076
        %2078 = vmatmul.f32.gmra.mxu0 %v1982
        %v2079 = vpop.f32.mrf.mxu0
        %v2080 = vadd.f32 0.0, %v2079
        %2081 = vmatmul.f32.gmra.mxu0 %v1984
        %v2082 = vpop.f32.mrf.mxu0
        %v2083 = vadd.f32 0.0, %v2082
        %2084 = vmatmul.f32.gmra.mxu0 %v1986
        %v2085 = vpop.f32.mrf.mxu0
        %v2086 = vadd.f32 0.0, %v2085
        %2087 = vmatmul.f32.gmra.mxu0 %v1988
        %v2088 = vpop.f32.mrf.mxu0
        %v2089 = vadd.f32 0.0, %v2088
        %2090 = vmatmul.f32.gmra.mxu0 %v1990
        %v2091 = vpop.f32.mrf.mxu0
        %v2092 = vadd.f32 0.0, %v2091
        %2093 = vmatmul.f32.gmra.mxu0 %v1992
        %v2094 = vpop.f32.mrf.mxu0
        %v2095 = vadd.f32 0.0, %v2094
        %2096 = vmatmul.f32.gmra.mxu0 %v1994
        %v2097 = vpop.f32.mrf.mxu0
        %v2098 = vadd.f32 0.0, %v2097
        %2099 = vmatmul.f32.gmra.mxu0 %v1996
        %v2100 = vpop.f32.mrf.mxu0
        %v2101 = vadd.f32 0.0, %v2100
        %2102 = vmatmul.f32.gmra.mxu0 %v1998
        %v2103 = vpop.f32.mrf.mxu0
        %v2104 = vadd.f32 0.0, %v2103
        %2105 = vmatmul.f32.gmra.mxu0 %v2000
        %v2106 = vpop.f32.mrf.mxu0
        %v2107 = vadd.f32 0.0, %v2106
        %2108 = vmatmul.f32.gmra.mxu0 %v2002
        %v2109 = vpop.f32.mrf.mxu0
        %v2110 = vadd.f32 0.0, %v2109
        %2111 = vmatmul.f32.gmra.mxu0 %v2004
        %v2112 = vpop.f32.mrf.mxu0
        %v2113 = vadd.f32 0.0, %v2112
        %2114 = vmatmul.f32.gmra.mxu0 %v2006
        %v2115 = vpop.f32.mrf.mxu0
        %v2116 = vadd.f32 0.0, %v2115
        %2117 = vmatmul.f32.gmra.mxu0 %v2008
        %v2118 = vpop.f32.mrf.mxu0
        %v2119 = vadd.f32 0.0, %v2118
        %2120 = vmatmul.f32.gmra.mxu0 %v2010
        %v2121 = vpop.f32.mrf.mxu0
        %v2122 = vadd.f32 0.0, %v2121
        %2123 = vmatmul.f32.gmra.mxu0 %v2012
        %v2124 = vpop.f32.mrf.mxu0
        %v2125 = vadd.f32 0.0, %v2124
        %2126 = vdwg.mxu0
        %2127 = vmatpush.msra.mxu0 0.0
        %2128 = vmatpush.msra.mxu0 0.0
        %2129 = vmatpush.msra.mxu0 0.0
        %2130 = vmatpush.msra.mxu0 0.0
        %2131 = vmatpush.msra.mxu0 0.0
        %2132 = vmatpush.msra.mxu0 0.0
        %2133 = vmatpush.msra.mxu0 0.0
        %2134 = vmatpush.msra.mxu0 0.0
        %2135 = vmatpush.msra.mxu0 0.0
        %2136 = vmatpush.msra.mxu0 0.0
        %2137 = vmatpush.msra.mxu0 0.0
        %2138 = vmatpush.msra.mxu0 0.0
        %2139 = vmatpush.msra.mxu0 0.0
        %2140 = vmatpush.msra.mxu0 0.0
        %2141 = vmatpush.msra.mxu0 0.0
        %2142 = vmatpush.msra.mxu0 %v1885
        %2143 = vmatmul.f32.gmra.mxu0 %v1950
        %v2144 = vpop.f32.mrf.mxu0
        %v2145 = vadd.f32 0.0, %v2144
        %2146 = vmatmul.f32.gmra.mxu0 %v1952
        %v2147 = vpop.f32.mrf.mxu0
        %v2148 = vadd.f32 0.0, %v2147
        %2149 = vmatmul.f32.gmra.mxu0 %v1954
        %v2150 = vpop.f32.mrf.mxu0
        %v2151 = vadd.f32 0.0, %v2150
        %2152 = vmatmul.f32.gmra.mxu0 %v1956
        %v2153 = vpop.f32.mrf.mxu0
        %v2154 = vadd.f32 0.0, %v2153
        %2155 = vmatmul.f32.gmra.mxu0 %v1958
        %v2156 = vpop.f32.mrf.mxu0
        %v2157 = vadd.f32 0.0, %v2156
        %2158 = vmatmul.f32.gmra.mxu0 %v1960
        %v2159 = vpop.f32.mrf.mxu0
        %v2160 = vadd.f32 0.0, %v2159
        %2161 = vmatmul.f32.gmra.mxu0 %v1962
        %v2162 = vpop.f32.mrf.mxu0
        %v2163 = vadd.f32 0.0, %v2162
        %2164 = vmatmul.f32.gmra.mxu0 %v1964
        %v2165 = vpop.f32.mrf.mxu0
        %v2166 = vadd.f32 0.0, %v2165
        %2167 = vmatmul.f32.gmra.mxu0 %v1966
        %v2168 = vpop.f32.mrf.mxu0
        %v2169 = vadd.f32 0.0, %v2168
        %2170 = vmatmul.f32.gmra.mxu0 %v1968
        %v2171 = vpop.f32.mrf.mxu0
        %v2172 = vadd.f32 0.0, %v2171
        %2173 = vmatmul.f32.gmra.mxu0 %v1970
        %v2174 = vpop.f32.mrf.mxu0
        %v2175 = vadd.f32 0.0, %v2174
        %2176 = vmatmul.f32.gmra.mxu0 %v1972
        %v2177 = vpop.f32.mrf.mxu0
        %v2178 = vadd.f32 0.0, %v2177
        %2179 = vmatmul.f32.gmra.mxu0 %v1974
        %v2180 = vpop.f32.mrf.mxu0
        %v2181 = vadd.f32 0.0, %v2180
        %2182 = vmatmul.f32.gmra.mxu0 %v1976
        %v2183 = vpop.f32.mrf.mxu0
        %v2184 = vadd.f32 0.0, %v2183
        %2185 = vmatmul.f32.gmra.mxu0 %v1978
        %v2186 = vpop.f32.mrf.mxu0
        %v2187 = vadd.f32 0.0, %v2186
        %2188 = vmatmul.f32.gmra.mxu0 %v1980
        %v2189 = vpop.f32.mrf.mxu0
        %v2190 = vadd.f32 0.0, %v2189
        %2191 = vmatmul.f32.gmra.mxu0 %v1982
        %v2192 = vpop.f32.mrf.mxu0
        %v2193 = vadd.f32 0.0, %v2192
        %2194 = vmatmul.f32.gmra.mxu0 %v1984
        %v2195 = vpop.f32.mrf.mxu0
        %v2196 = vadd.f32 0.0, %v2195
        %2197 = vmatmul.f32.gmra.mxu0 %v1986
        %v2198 = vpop.f32.mrf.mxu0
        %v2199 = vadd.f32 0.0, %v2198
        %2200 = vmatmul.f32.gmra.mxu0 %v1988
        %v2201 = vpop.f32.mrf.mxu0
        %v2202 = vadd.f32 0.0, %v2201
        %2203 = vmatmul.f32.gmra.mxu0 %v1990
        %v2204 = vpop.f32.mrf.mxu0
        %v2205 = vadd.f32 0.0, %v2204
        %2206 = vmatmul.f32.gmra.mxu0 %v1992
        %v2207 = vpop.f32.mrf.mxu0
        %v2208 = vadd.f32 0.0, %v2207
        %2209 = vmatmul.f32.gmra.mxu0 %v1994
        %v2210 = vpop.f32.mrf.mxu0
        %v2211 = vadd.f32 0.0, %v2210
        %2212 = vmatmul.f32.gmra.mxu0 %v1996
        %v2213 = vpop.f32.mrf.mxu0
        %v2214 = vadd.f32 0.0, %v2213
        %2215 = vmatmul.f32.gmra.mxu0 %v1998
        %v2216 = vpop.f32.mrf.mxu0
        %v2217 = vadd.f32 0.0, %v2216
        %2218 = vmatmul.f32.gmra.mxu0 %v2000
        %v2219 = vpop.f32.mrf.mxu0
        %v2220 = vadd.f32 0.0, %v2219
        %2221 = vmatmul.f32.gmra.mxu0 %v2002
        %v2222 = vpop.f32.mrf.mxu0
        %v2223 = vadd.f32 0.0, %v2222
        %2224 = vmatmul.f32.gmra.mxu0 %v2004
        %v2225 = vpop.f32.mrf.mxu0
        %v2226 = vadd.f32 0.0, %v2225
        %2227 = vmatmul.f32.gmra.mxu0 %v2006
        %v2228 = vpop.f32.mrf.mxu0
        %v2229 = vadd.f32 0.0, %v2228
        %2230 = vmatmul.f32.gmra.mxu0 %v2008
        %v2231 = vpop.f32.mrf.mxu0
        %v2232 = vadd.f32 0.0, %v2231
        %2233 = vmatmul.f32.gmra.mxu0 %v2010
        %v2234 = vpop.f32.mrf.mxu0
        %v2235 = vadd.f32 0.0, %v2234
        %2236 = vmatmul.f32.gmra.mxu0 %v2012
        %v2237 = vpop.f32.mrf.mxu0
        %v2238 = vadd.f32 0.0, %v2237
        %2239 = vdwg.mxu0
        %v2240 = vmax.f32 %v2032, %v2145
        %2241 = vmax.xlane.f32.xlu0 %v2240
        %v2242 = vpop.xlane.xlu0 %2241
        %v2243 = vmax.f32 %v2035, %v2148
        %2244 = vmax.xlane.f32.xlu0 %v2243
        %v2245 = vpop.xlane.xlu0 %2244
        %v2246 = vmax.f32 %v2038, %v2151
        %2247 = vmax.xlane.f32.xlu0 %v2246
        %v2248 = vpop.xlane.xlu0 %2247
        %v2249 = vmax.f32 %v2041, %v2154
        %2250 = vmax.xlane.f32.xlu0 %v2249
        %v2251 = vpop.xlane.xlu0 %2250
        %v2252 = vmax.f32 %v2044, %v2157
        %2253 = vmax.xlane.f32.xlu0 %v2252
        %v2254 = vpop.xlane.xlu0 %2253
        %v2255 = vmax.f32 %v2047, %v2160
        %2256 = vmax.xlane.f32.xlu0 %v2255
        %v2257 = vpop.xlane.xlu0 %2256
        %v2258 = vmax.f32 %v2050, %v2163
        %2259 = vmax.xlane.f32.xlu0 %v2258
        %v2260 = vpop.xlane.xlu0 %2259
        %v2261 = vmax.f32 %v2053, %v2166
        %2262 = vmax.xlane.f32.xlu0 %v2261
        %v2263 = vpop.xlane.xlu0 %2262
        %v2264 = vmax.f32 %v2056, %v2169
        %2265 = vmax.xlane.f32.xlu0 %v2264
        %v2266 = vpop.xlane.xlu0 %2265
        %v2267 = vmax.f32 %v2059, %v2172
        %2268 = vmax.xlane.f32.xlu0 %v2267
        %v2269 = vpop.xlane.xlu0 %2268
        %v2270 = vmax.f32 %v2062, %v2175
        %2271 = vmax.xlane.f32.xlu0 %v2270
        %v2272 = vpop.xlane.xlu0 %2271
        %v2273 = vmax.f32 %v2065, %v2178
        %2274 = vmax.xlane.f32.xlu0 %v2273
        %v2275 = vpop.xlane.xlu0 %2274
        %v2276 = vmax.f32 %v2068, %v2181
        %2277 = vmax.xlane.f32.xlu0 %v2276
        %v2278 = vpop.xlane.xlu0 %2277
        %v2279 = vmax.f32 %v2071, %v2184
        %2280 = vmax.xlane.f32.xlu0 %v2279
        %v2281 = vpop.xlane.xlu0 %2280
        %v2282 = vmax.f32 %v2074, %v2187
        %2283 = vmax.xlane.f32.xlu0 %v2282
        %v2284 = vpop.xlane.xlu0 %2283
        %v2285 = vmax.f32 %v2077, %v2190
        %2286 = vmax.xlane.f32.xlu0 %v2285
        %v2287 = vpop.xlane.xlu0 %2286
        %v2288 = vmax.f32 %v2080, %v2193
        %2289 = vmax.xlane.f32.xlu0 %v2288
        %v2290 = vpop.xlane.xlu0 %2289
        %v2291 = vmax.f32 %v2083, %v2196
        %2292 = vmax.xlane.f32.xlu0 %v2291
        %v2293 = vpop.xlane.xlu0 %2292
        %v2294 = vmax.f32 %v2086, %v2199
        %2295 = vmax.xlane.f32.xlu0 %v2294
        %v2296 = vpop.xlane.xlu0 %2295
        %v2297 = vmax.f32 %v2089, %v2202
        %2298 = vmax.xlane.f32.xlu0 %v2297
        %v2299 = vpop.xlane.xlu0 %2298
        %v2300 = vmax.f32 %v2092, %v2205
        %2301 = vmax.xlane.f32.xlu0 %v2300
        %v2302 = vpop.xlane.xlu0 %2301
        %v2303 = vmax.f32 %v2095, %v2208
        %2304 = vmax.xlane.f32.xlu0 %v2303
        %v2305 = vpop.xlane.xlu0 %2304
        %v2306 = vmax.f32 %v2098, %v2211
        %2307 = vmax.xlane.f32.xlu0 %v2306
        %v2308 = vpop.xlane.xlu0 %2307
        %v2309 = vmax.f32 %v2101, %v2214
        %2310 = vmax.xlane.f32.xlu0 %v2309
        %v2311 = vpop.xlane.xlu0 %2310
        %v2312 = vmax.f32 %v2104, %v2217
        %2313 = vmax.xlane.f32.xlu0 %v2312
        %v2314 = vpop.xlane.xlu0 %2313
        %v2315 = vmax.f32 %v2107, %v2220
        %2316 = vmax.xlane.f32.xlu0 %v2315
        %v2317 = vpop.xlane.xlu0 %2316
        %v2318 = vmax.f32 %v2110, %v2223
        %2319 = vmax.xlane.f32.xlu0 %v2318
        %v2320 = vpop.xlane.xlu0 %2319
        %v2321 = vmax.f32 %v2113, %v2226
        %2322 = vmax.xlane.f32.xlu0 %v2321
        %v2323 = vpop.xlane.xlu0 %2322
        %v2324 = vmax.f32 %v2116, %v2229
        %2325 = vmax.xlane.f32.xlu0 %v2324
        %v2326 = vpop.xlane.xlu0 %2325
        %v2327 = vmax.f32 %v2119, %v2232
        %2328 = vmax.xlane.f32.xlu0 %v2327
        %v2329 = vpop.xlane.xlu0 %2328
        %v2330 = vmax.f32 %v2122, %v2235
        %2331 = vmax.xlane.f32.xlu0 %v2330
        %v2332 = vpop.xlane.xlu0 %2331
        %v2333 = vmax.f32 %v2125, %v2238
        %2334 = vmax.xlane.f32.xlu0 %v2333
        %v2335 = vpop.xlane.xlu0 %2334
        %v2336 = vsub.f32 %v2032, %v2242
        %v2337 = vsub.f32 %v2145, %v2242
        %v2338 = vsub.f32 %v2035, %v2245
        %v2339 = vsub.f32 %v2148, %v2245
        %v2340 = vsub.f32 %v2038, %v2248
        %v2341 = vsub.f32 %v2151, %v2248
        %v2342 = vsub.f32 %v2041, %v2251
        %v2343 = vsub.f32 %v2154, %v2251
        %v2344 = vsub.f32 %v2044, %v2254
        %v2345 = vsub.f32 %v2157, %v2254
        %v2346 = vsub.f32 %v2047, %v2257
        %v2347 = vsub.f32 %v2160, %v2257
        %v2348 = vsub.f32 %v2050, %v2260
        %v2349 = vsub.f32 %v2163, %v2260
        %v2350 = vsub.f32 %v2053, %v2263
        %v2351 = vsub.f32 %v2166, %v2263
        %v2352 = vsub.f32 %v2056, %v2266
        %v2353 = vsub.f32 %v2169, %v2266
        %v2354 = vsub.f32 %v2059, %v2269
        %v2355 = vsub.f32 %v2172, %v2269
        %v2356 = vsub.f32 %v2062, %v2272
        %v2357 = vsub.f32 %v2175, %v2272
        %v2358 = vsub.f32 %v2065, %v2275
        %v2359 = vsub.f32 %v2178, %v2275
        %v2360 = vsub.f32 %v2068, %v2278
        %v2361 = vsub.f32 %v2181, %v2278
        %v2362 = vsub.f32 %v2071, %v2281
        %v2363 = vsub.f32 %v2184, %v2281
        %v2364 = vsub.f32 %v2074, %v2284
        %v2365 = vsub.f32 %v2187, %v2284
        %v2366 = vsub.f32 %v2077, %v2287
        %v2367 = vsub.f32 %v2190, %v2287
        %v2368 = vsub.f32 %v2080, %v2290
        %v2369 = vsub.f32 %v2193, %v2290
        %v2370 = vsub.f32 %v2083, %v2293
        %v2371 = vsub.f32 %v2196, %v2293
        %v2372 = vsub.f32 %v2086, %v2296
        %v2373 = vsub.f32 %v2199, %v2296
        %v2374 = vsub.f32 %v2089, %v2299
        %v2375 = vsub.f32 %v2202, %v2299
        %v2376 = vsub.f32 %v2092, %v2302
        %v2377 = vsub.f32 %v2205, %v2302
        %v2378 = vsub.f32 %v2095, %v2305
        %v2379 = vsub.f32 %v2208, %v2305
        %v2380 = vsub.f32 %v2098, %v2308
        %v2381 = vsub.f32 %v2211, %v2308
        %v2382 = vsub.f32 %v2101, %v2311
        %v2383 = vsub.f32 %v2214, %v2311
        %v2384 = vsub.f32 %v2104, %v2314
        %v2385 = vsub.f32 %v2217, %v2314
        %v2386 = vsub.f32 %v2107, %v2317
        %v2387 = vsub.f32 %v2220, %v2317
        %v2388 = vsub.f32 %v2110, %v2320
        %v2389 = vsub.f32 %v2223, %v2320
        %v2390 = vsub.f32 %v2113, %v2323
        %v2391 = vsub.f32 %v2226, %v2323
        %v2392 = vsub.f32 %v2116, %v2326
        %v2393 = vsub.f32 %v2229, %v2326
        %v2394 = vsub.f32 %v2119, %v2329
        %v2395 = vsub.f32 %v2232, %v2329
        %v2396 = vsub.f32 %v2122, %v2332
        %v2397 = vsub.f32 %v2235, %v2332
        %v2398 = vsub.f32 %v2125, %v2335
        %v2399 = vsub.f32 %v2238, %v2335
        %v2400 = vmul.f32 %v2336, 1.442695
        %v2401 = vpow.pop %v2400
        %v2402 = vmul.f32 %v2337, 1.442695
        %v2403 = vpow.pop %v2402
        %v2404 = vmul.f32 %v2338, 1.442695
        %v2405 = vpow.pop %v2404
        %v2406 = vmul.f32 %v2339, 1.442695
        %v2407 = vpow.pop %v2406
        %v2408 = vmul.f32 %v2340, 1.442695
        %v2409 = vpow.pop %v2408
        %v2410 = vmul.f32 %v2341, 1.442695
        %v2411 = vpow.pop %v2410
        %v2412 = vmul.f32 %v2342, 1.442695
        %v2413 = vpow.pop %v2412
        %v2414 = vmul.f32 %v2343, 1.442695
        %v2415 = vpow.pop %v2414
        %v2416 = vmul.f32 %v2344, 1.442695
        %v2417 = vpow.pop %v2416
        %v2418 = vmul.f32 %v2345, 1.442695
        %v2419 = vpow.pop %v2418
        %v2420 = vmul.f32 %v2346, 1.442695
        %v2421 = vpow.pop %v2420
        %v2422 = vmul.f32 %v2347, 1.442695
        %v2423 = vpow.pop %v2422
        %v2424 = vmul.f32 %v2348, 1.442695
        %v2425 = vpow.pop %v2424
        %v2426 = vmul.f32 %v2349, 1.442695
        %v2427 = vpow.pop %v2426
        %v2428 = vmul.f32 %v2350, 1.442695
        %v2429 = vpow.pop %v2428
        %v2430 = vmul.f32 %v2351, 1.442695
        %v2431 = vpow.pop %v2430
        %v2432 = vmul.f32 %v2352, 1.442695
        %v2433 = vpow.pop %v2432
        %v2434 = vmul.f32 %v2353, 1.442695
        %v2435 = vpow.pop %v2434
        %v2436 = vmul.f32 %v2354, 1.442695
        %v2437 = vpow.pop %v2436
        %v2438 = vmul.f32 %v2355, 1.442695
        %v2439 = vpow.pop %v2438
        %v2440 = vmul.f32 %v2356, 1.442695
        %v2441 = vpow.pop %v2440
        %v2442 = vmul.f32 %v2357, 1.442695
        %v2443 = vpow.pop %v2442
        %v2444 = vmul.f32 %v2358, 1.442695
        %v2445 = vpow.pop %v2444
        %v2446 = vmul.f32 %v2359, 1.442695
        %v2447 = vpow.pop %v2446
        %v2448 = vmul.f32 %v2360, 1.442695
        %v2449 = vpow.pop %v2448
        %v2450 = vmul.f32 %v2361, 1.442695
        %v2451 = vpow.pop %v2450
        %v2452 = vmul.f32 %v2362, 1.442695
        %v2453 = vpow.pop %v2452
        %v2454 = vmul.f32 %v2363, 1.442695
        %v2455 = vpow.pop %v2454
        %v2456 = vmul.f32 %v2364, 1.442695
        %v2457 = vpow.pop %v2456
        %v2458 = vmul.f32 %v2365, 1.442695
        %v2459 = vpow.pop %v2458
        %v2460 = vmul.f32 %v2366, 1.442695
        %v2461 = vpow.pop %v2460
        %v2462 = vmul.f32 %v2367, 1.442695
        %v2463 = vpow.pop %v2462
        %v2464 = vmul.f32 %v2368, 1.442695
        %v2465 = vpow.pop %v2464
        %v2466 = vmul.f32 %v2369, 1.442695
        %v2467 = vpow.pop %v2466
        %v2468 = vmul.f32 %v2370, 1.442695
        %v2469 = vpow.pop %v2468
        %v2470 = vmul.f32 %v2371, 1.442695
        %v2471 = vpow.pop %v2470
        %v2472 = vmul.f32 %v2372, 1.442695
        %v2473 = vpow.pop %v2472
        %v2474 = vmul.f32 %v2373, 1.442695
        %v2475 = vpow.pop %v2474
        %v2476 = vmul.f32 %v2374, 1.442695
        %v2477 = vpow.pop %v2476
        %v2478 = vmul.f32 %v2375, 1.442695
        %v2479 = vpow.pop %v2478
        %v2480 = vmul.f32 %v2376, 1.442695
        %v2481 = vpow.pop %v2480
        %v2482 = vmul.f32 %v2377, 1.442695
        %v2483 = vpow.pop %v2482
        %v2484 = vmul.f32 %v2378, 1.442695
        %v2485 = vpow.pop %v2484
        %v2486 = vmul.f32 %v2379, 1.442695
        %v2487 = vpow.pop %v2486
        %v2488 = vmul.f32 %v2380, 1.442695
        %v2489 = vpow.pop %v2488
        %v2490 = vmul.f32 %v2381, 1.442695
        %v2491 = vpow.pop %v2490
        %v2492 = vmul.f32 %v2382, 1.442695
        %v2493 = vpow.pop %v2492
        %v2494 = vmul.f32 %v2383, 1.442695
        %v2495 = vpow.pop %v2494
        %v2496 = vmul.f32 %v2384, 1.442695
        %v2497 = vpow.pop %v2496
        %v2498 = vmul.f32 %v2385, 1.442695
        %v2499 = vpow.pop %v2498
        %v2500 = vmul.f32 %v2386, 1.442695
        %v2501 = vpow.pop %v2500
        %v2502 = vmul.f32 %v2387, 1.442695
        %v2503 = vpow.pop %v2502
        %v2504 = vmul.f32 %v2388, 1.442695
        %v2505 = vpow.pop %v2504
        %v2506 = vmul.f32 %v2389, 1.442695
        %v2507 = vpow.pop %v2506
        %v2508 = vmul.f32 %v2390, 1.442695
        %v2509 = vpow.pop %v2508
        %v2510 = vmul.f32 %v2391, 1.442695
        %v2511 = vpow.pop %v2510
        %v2512 = vmul.f32 %v2392, 1.442695
        %v2513 = vpow.pop %v2512
        %v2514 = vmul.f32 %v2393, 1.442695
        %v2515 = vpow.pop %v2514
        %v2516 = vmul.f32 %v2394, 1.442695
        %v2517 = vpow.pop %v2516
        %v2518 = vmul.f32 %v2395, 1.442695
        %v2519 = vpow.pop %v2518
        %v2520 = vmul.f32 %v2396, 1.442695
        %v2521 = vpow.pop %v2520
        %v2522 = vmul.f32 %v2397, 1.442695
        %v2523 = vpow.pop %v2522
        %v2524 = vmul.f32 %v2398, 1.442695
        %v2525 = vpow.pop %v2524
        %v2526 = vmul.f32 %v2399, 1.442695
        %v2527 = vpow.pop %v2526
        %v2528 = vadd.f32 %v2401, %v2403
        %2529 = vadd.xlane.f32.xlu0 %v2528
        %v2530 = vpop.xlane.xlu0 %2529
        %v2531 = vadd.f32 %v2405, %v2407
        %2532 = vadd.xlane.f32.xlu0 %v2531
        %v2533 = vpop.xlane.xlu0 %2532
        %v2534 = vadd.f32 %v2409, %v2411
        %2535 = vadd.xlane.f32.xlu0 %v2534
        %v2536 = vpop.xlane.xlu0 %2535
        %v2537 = vadd.f32 %v2413, %v2415
        %2538 = vadd.xlane.f32.xlu0 %v2537
        %v2539 = vpop.xlane.xlu0 %2538
        %v2540 = vadd.f32 %v2417, %v2419
        %2541 = vadd.xlane.f32.xlu0 %v2540
        %v2542 = vpop.xlane.xlu0 %2541
        %v2543 = vadd.f32 %v2421, %v2423
        %2544 = vadd.xlane.f32.xlu0 %v2543
        %v2545 = vpop.xlane.xlu0 %2544
        %v2546 = vadd.f32 %v2425, %v2427
        %2547 = vadd.xlane.f32.xlu0 %v2546
        %v2548 = vpop.xlane.xlu0 %2547
        %v2549 = vadd.f32 %v2429, %v2431
        %2550 = vadd.xlane.f32.xlu0 %v2549
        %v2551 = vpop.xlane.xlu0 %2550
        %v2552 = vadd.f32 %v2433, %v2435
        %2553 = vadd.xlane.f32.xlu0 %v2552
        %v2554 = vpop.xlane.xlu0 %2553
        %v2555 = vadd.f32 %v2437, %v2439
        %2556 = vadd.xlane.f32.xlu0 %v2555
        %v2557 = vpop.xlane.xlu0 %2556
        %v2558 = vadd.f32 %v2441, %v2443
        %2559 = vadd.xlane.f32.xlu0 %v2558
        %v2560 = vpop.xlane.xlu0 %2559
        %v2561 = vadd.f32 %v2445, %v2447
        %2562 = vadd.xlane.f32.xlu0 %v2561
        %v2563 = vpop.xlane.xlu0 %2562
        %v2564 = vadd.f32 %v2449, %v2451
        %2565 = vadd.xlane.f32.xlu0 %v2564
        %v2566 = vpop.xlane.xlu0 %2565
        %v2567 = vadd.f32 %v2453, %v2455
        %2568 = vadd.xlane.f32.xlu0 %v2567
        %v2569 = vpop.xlane.xlu0 %2568
        %v2570 = vadd.f32 %v2457, %v2459
        %2571 = vadd.xlane.f32.xlu0 %v2570
        %v2572 = vpop.xlane.xlu0 %2571
        %v2573 = vadd.f32 %v2461, %v2463
        %2574 = vadd.xlane.f32.xlu0 %v2573
        %v2575 = vpop.xlane.xlu0 %2574
        %v2576 = vadd.f32 %v2465, %v2467
        %2577 = vadd.xlane.f32.xlu0 %v2576
        %v2578 = vpop.xlane.xlu0 %2577
        %v2579 = vadd.f32 %v2469, %v2471
        %2580 = vadd.xlane.f32.xlu0 %v2579
        %v2581 = vpop.xlane.xlu0 %2580
        %v2582 = vadd.f32 %v2473, %v2475
        %2583 = vadd.xlane.f32.xlu0 %v2582
        %v2584 = vpop.xlane.xlu0 %2583
        %v2585 = vadd.f32 %v2477, %v2479
        %2586 = vadd.xlane.f32.xlu0 %v2585
        %v2587 = vpop.xlane.xlu0 %2586
        %v2588 = vadd.f32 %v2481, %v2483
        %2589 = vadd.xlane.f32.xlu0 %v2588
        %v2590 = vpop.xlane.xlu0 %2589
        %v2591 = vadd.f32 %v2485, %v2487
        %2592 = vadd.xlane.f32.xlu0 %v2591
        %v2593 = vpop.xlane.xlu0 %2592
        %v2594 = vadd.f32 %v2489, %v2491
        %2595 = vadd.xlane.f32.xlu0 %v2594
        %v2596 = vpop.xlane.xlu0 %2595
        %v2597 = vadd.f32 %v2493, %v2495
        %2598 = vadd.xlane.f32.xlu0 %v2597
        %v2599 = vpop.xlane.xlu0 %2598
        %v2600 = vadd.f32 %v2497, %v2499
        %2601 = vadd.xlane.f32.xlu0 %v2600
        %v2602 = vpop.xlane.xlu0 %2601
        %v2603 = vadd.f32 %v2501, %v2503
        %2604 = vadd.xlane.f32.xlu0 %v2603
        %v2605 = vpop.xlane.xlu0 %2604
        %v2606 = vadd.f32 %v2505, %v2507
        %2607 = vadd.xlane.f32.xlu0 %v2606
        %v2608 = vpop.xlane.xlu0 %2607
        %v2609 = vadd.f32 %v2509, %v2511
        %2610 = vadd.xlane.f32.xlu0 %v2609
        %v2611 = vpop.xlane.xlu0 %2610
        %v2612 = vadd.f32 %v2513, %v2515
        %2613 = vadd.xlane.f32.xlu0 %v2612
        %v2614 = vpop.xlane.xlu0 %2613
        %v2615 = vadd.f32 %v2517, %v2519
        %2616 = vadd.xlane.f32.xlu0 %v2615
        %v2617 = vpop.xlane.xlu0 %2616
        %v2618 = vadd.f32 %v2521, %v2523
        %2619 = vadd.xlane.f32.xlu0 %v2618
        %v2620 = vpop.xlane.xlu0 %2619
        %v2621 = vadd.f32 %v2525, %v2527
        %2622 = vadd.xlane.f32.xlu0 %v2621
        %v2623 = vpop.xlane.xlu0 %2622
        %2624 = vmatpush.xpose.msra.mxu0 0.0
        %2625 = vmatpush.xpose.msra.mxu0 0.0
        %2626 = vmatpush.xpose.msra.mxu0 0.0
        %2627 = vmatpush.xpose.msra.mxu0 0.0
        %2628 = vmatpush.xpose.msra.mxu0 0.0
        %2629 = vmatpush.xpose.msra.mxu0 0.0
        %2630 = vmatpush.xpose.msra.mxu0 0.0
        %2631 = vmatpush.xpose.msra.mxu0 0.0
        %2632 = vmatpush.xpose.msra.mxu0 0.0
        %2633 = vmatpush.xpose.msra.mxu0 0.0
        %2634 = vmatpush.xpose.msra.mxu0 0.0
        %2635 = vmatpush.xpose.msra.mxu0 0.0
        %2636 = vmatpush.xpose.msra.mxu0 0.0
        %2637 = vmatpush.xpose.msra.mxu0 0.0
        %2638 = vmatpush.xpose.msra.mxu0 0.0
        %2639 = vmatpush.xpose.msra.mxu0 %v484
        %2640 = vmatmul.f32.gmra.mxu0 %v2401
        %v2641 = vpop.f32.mrf.mxu0
        %v2642 = vadd.f32 0.0, %v2641
        %2643 = vmatmul.f32.gmra.mxu0 %v2405
        %v2644 = vpop.f32.mrf.mxu0
        %v2645 = vadd.f32 0.0, %v2644
        %2646 = vmatmul.f32.gmra.mxu0 %v2409
        %v2647 = vpop.f32.mrf.mxu0
        %v2648 = vadd.f32 0.0, %v2647
        %2649 = vmatmul.f32.gmra.mxu0 %v2413
        %v2650 = vpop.f32.mrf.mxu0
        %v2651 = vadd.f32 0.0, %v2650
        %2652 = vmatmul.f32.gmra.mxu0 %v2417
        %v2653 = vpop.f32.mrf.mxu0
        %v2654 = vadd.f32 0.0, %v2653
        %2655 = vmatmul.f32.gmra.mxu0 %v2421
        %v2656 = vpop.f32.mrf.mxu0
        %v2657 = vadd.f32 0.0, %v2656
        %2658 = vmatmul.f32.gmra.mxu0 %v2425
        %v2659 = vpop.f32.mrf.mxu0
        %v2660 = vadd.f32 0.0, %v2659
        %2661 = vmatmul.f32.gmra.mxu0 %v2429
        %v2662 = vpop.f32.mrf.mxu0
        %v2663 = vadd.f32 0.0, %v2662
        %2664 = vmatmul.f32.gmra.mxu0 %v2433
        %v2665 = vpop.f32.mrf.mxu0
        %v2666 = vadd.f32 0.0, %v2665
        %2667 = vmatmul.f32.gmra.mxu0 %v2437
        %v2668 = vpop.f32.mrf.mxu0
        %v2669 = vadd.f32 0.0, %v2668
        %2670 = vmatmul.f32.gmra.mxu0 %v2441
        %v2671 = vpop.f32.mrf.mxu0
        %v2672 = vadd.f32 0.0, %v2671
        %2673 = vmatmul.f32.gmra.mxu0 %v2445
        %v2674 = vpop.f32.mrf.mxu0
        %v2675 = vadd.f32 0.0, %v2674
        %2676 = vmatmul.f32.gmra.mxu0 %v2449
        %v2677 = vpop.f32.mrf.mxu0
        %v2678 = vadd.f32 0.0, %v2677
        %2679 = vmatmul.f32.gmra.mxu0 %v2453
        %v2680 = vpop.f32.mrf.mxu0
        %v2681 = vadd.f32 0.0, %v2680
        %2682 = vmatmul.f32.gmra.mxu0 %v2457
        %v2683 = vpop.f32.mrf.mxu0
        %v2684 = vadd.f32 0.0, %v2683
        %2685 = vmatmul.f32.gmra.mxu0 %v2461
        %v2686 = vpop.f32.mrf.mxu0
        %v2687 = vadd.f32 0.0, %v2686
        %2688 = vmatmul.f32.gmra.mxu0 %v2465
        %v2689 = vpop.f32.mrf.mxu0
        %v2690 = vadd.f32 0.0, %v2689
        %2691 = vmatmul.f32.gmra.mxu0 %v2469
        %v2692 = vpop.f32.mrf.mxu0
        %v2693 = vadd.f32 0.0, %v2692
        %2694 = vmatmul.f32.gmra.mxu0 %v2473
        %v2695 = vpop.f32.mrf.mxu0
        %v2696 = vadd.f32 0.0, %v2695
        %2697 = vmatmul.f32.gmra.mxu0 %v2477
        %v2698 = vpop.f32.mrf.mxu0
        %v2699 = vadd.f32 0.0, %v2698
        %2700 = vmatmul.f32.gmra.mxu0 %v2481
        %v2701 = vpop.f32.mrf.mxu0
        %v2702 = vadd.f32 0.0, %v2701
        %2703 = vmatmul.f32.gmra.mxu0 %v2485
        %v2704 = vpop.f32.mrf.mxu0
        %v2705 = vadd.f32 0.0, %v2704
        %2706 = vmatmul.f32.gmra.mxu0 %v2489
        %v2707 = vpop.f32.mrf.mxu0
        %v2708 = vadd.f32 0.0, %v2707
        %2709 = vmatmul.f32.gmra.mxu0 %v2493
        %v2710 = vpop.f32.mrf.mxu0
        %v2711 = vadd.f32 0.0, %v2710
        %2712 = vmatmul.f32.gmra.mxu0 %v2497
        %v2713 = vpop.f32.mrf.mxu0
        %v2714 = vadd.f32 0.0, %v2713
        %2715 = vmatmul.f32.gmra.mxu0 %v2501
        %v2716 = vpop.f32.mrf.mxu0
        %v2717 = vadd.f32 0.0, %v2716
        %2718 = vmatmul.f32.gmra.mxu0 %v2505
        %v2719 = vpop.f32.mrf.mxu0
        %v2720 = vadd.f32 0.0, %v2719
        %2721 = vmatmul.f32.gmra.mxu0 %v2509
        %v2722 = vpop.f32.mrf.mxu0
        %v2723 = vadd.f32 0.0, %v2722
        %2724 = vmatmul.f32.gmra.mxu0 %v2513
        %v2725 = vpop.f32.mrf.mxu0
        %v2726 = vadd.f32 0.0, %v2725
        %2727 = vmatmul.f32.gmra.mxu0 %v2517
        %v2728 = vpop.f32.mrf.mxu0
        %v2729 = vadd.f32 0.0, %v2728
        %2730 = vmatmul.f32.gmra.mxu0 %v2521
        %v2731 = vpop.f32.mrf.mxu0
        %v2732 = vadd.f32 0.0, %v2731
        %2733 = vmatmul.f32.gmra.mxu0 %v2525
        %v2734 = vpop.f32.mrf.mxu0
        %v2735 = vadd.f32 0.0, %v2734
        %2736 = vdwg.mxu0
        %2737 = vmatpush.xpose.msra.mxu0 0.0
        %2738 = vmatpush.xpose.msra.mxu0 0.0
        %2739 = vmatpush.xpose.msra.mxu0 0.0
        %2740 = vmatpush.xpose.msra.mxu0 0.0
        %2741 = vmatpush.xpose.msra.mxu0 0.0
        %2742 = vmatpush.xpose.msra.mxu0 0.0
        %2743 = vmatpush.xpose.msra.mxu0 0.0
        %2744 = vmatpush.xpose.msra.mxu0 0.0
        %2745 = vmatpush.xpose.msra.mxu0 0.0
        %2746 = vmatpush.xpose.msra.mxu0 0.0
        %2747 = vmatpush.xpose.msra.mxu0 0.0
        %2748 = vmatpush.xpose.msra.mxu0 0.0
        %2749 = vmatpush.xpose.msra.mxu0 0.0
        %2750 = vmatpush.xpose.msra.mxu0 0.0
        %2751 = vmatpush.xpose.msra.mxu0 0.0
        %2752 = vmatpush.xpose.msra.mxu0 %v525
        %2753 = vmatmul.f32.gmra.mxu0 %v2403
        %v2754 = vpop.f32.mrf.mxu0
        %v2755 = vadd.f32 %v2642, %v2754
        %2756 = vmatmul.f32.gmra.mxu0 %v2407
        %v2757 = vpop.f32.mrf.mxu0
        %v2758 = vadd.f32 %v2645, %v2757
        %2759 = vmatmul.f32.gmra.mxu0 %v2411
        %v2760 = vpop.f32.mrf.mxu0
        %v2761 = vadd.f32 %v2648, %v2760
        %2762 = vmatmul.f32.gmra.mxu0 %v2415
        %v2763 = vpop.f32.mrf.mxu0
        %v2764 = vadd.f32 %v2651, %v2763
        %2765 = vmatmul.f32.gmra.mxu0 %v2419
        %v2766 = vpop.f32.mrf.mxu0
        %v2767 = vadd.f32 %v2654, %v2766
        %2768 = vmatmul.f32.gmra.mxu0 %v2423
        %v2769 = vpop.f32.mrf.mxu0
        %v2770 = vadd.f32 %v2657, %v2769
        %2771 = vmatmul.f32.gmra.mxu0 %v2427
        %v2772 = vpop.f32.mrf.mxu0
        %v2773 = vadd.f32 %v2660, %v2772
        %2774 = vmatmul.f32.gmra.mxu0 %v2431
        %v2775 = vpop.f32.mrf.mxu0
        %v2776 = vadd.f32 %v2663, %v2775
        %2777 = vmatmul.f32.gmra.mxu0 %v2435
        %v2778 = vpop.f32.mrf.mxu0
        %v2779 = vadd.f32 %v2666, %v2778
        %2780 = vmatmul.f32.gmra.mxu0 %v2439
        %v2781 = vpop.f32.mrf.mxu0
        %v2782 = vadd.f32 %v2669, %v2781
        %2783 = vmatmul.f32.gmra.mxu0 %v2443
        %v2784 = vpop.f32.mrf.mxu0
        %v2785 = vadd.f32 %v2672, %v2784
        %2786 = vmatmul.f32.gmra.mxu0 %v2447
        %v2787 = vpop.f32.mrf.mxu0
        %v2788 = vadd.f32 %v2675, %v2787
        %2789 = vmatmul.f32.gmra.mxu0 %v2451
        %v2790 = vpop.f32.mrf.mxu0
        %v2791 = vadd.f32 %v2678, %v2790
        %2792 = vmatmul.f32.gmra.mxu0 %v2455
        %v2793 = vpop.f32.mrf.mxu0
        %v2794 = vadd.f32 %v2681, %v2793
        %2795 = vmatmul.f32.gmra.mxu0 %v2459
        %v2796 = vpop.f32.mrf.mxu0
        %v2797 = vadd.f32 %v2684, %v2796
        %2798 = vmatmul.f32.gmra.mxu0 %v2463
        %v2799 = vpop.f32.mrf.mxu0
        %v2800 = vadd.f32 %v2687, %v2799
        %2801 = vmatmul.f32.gmra.mxu0 %v2467
        %v2802 = vpop.f32.mrf.mxu0
        %v2803 = vadd.f32 %v2690, %v2802
        %2804 = vmatmul.f32.gmra.mxu0 %v2471
        %v2805 = vpop.f32.mrf.mxu0
        %v2806 = vadd.f32 %v2693, %v2805
        %2807 = vmatmul.f32.gmra.mxu0 %v2475
        %v2808 = vpop.f32.mrf.mxu0
        %v2809 = vadd.f32 %v2696, %v2808
        %2810 = vmatmul.f32.gmra.mxu0 %v2479
        %v2811 = vpop.f32.mrf.mxu0
        %v2812 = vadd.f32 %v2699, %v2811
        %2813 = vmatmul.f32.gmra.mxu0 %v2483
        %v2814 = vpop.f32.mrf.mxu0
        %v2815 = vadd.f32 %v2702, %v2814
        %2816 = vmatmul.f32.gmra.mxu0 %v2487
        %v2817 = vpop.f32.mrf.mxu0
        %v2818 = vadd.f32 %v2705, %v2817
        %2819 = vmatmul.f32.gmra.mxu0 %v2491
        %v2820 = vpop.f32.mrf.mxu0
        %v2821 = vadd.f32 %v2708, %v2820
        %2822 = vmatmul.f32.gmra.mxu0 %v2495
        %v2823 = vpop.f32.mrf.mxu0
        %v2824 = vadd.f32 %v2711, %v2823
        %2825 = vmatmul.f32.gmra.mxu0 %v2499
        %v2826 = vpop.f32.mrf.mxu0
        %v2827 = vadd.f32 %v2714, %v2826
        %2828 = vmatmul.f32.gmra.mxu0 %v2503
        %v2829 = vpop.f32.mrf.mxu0
        %v2830 = vadd.f32 %v2717, %v2829
        %2831 = vmatmul.f32.gmra.mxu0 %v2507
        %v2832 = vpop.f32.mrf.mxu0
        %v2833 = vadd.f32 %v2720, %v2832
        %2834 = vmatmul.f32.gmra.mxu0 %v2511
        %v2835 = vpop.f32.mrf.mxu0
        %v2836 = vadd.f32 %v2723, %v2835
        %2837 = vmatmul.f32.gmra.mxu0 %v2515
        %v2838 = vpop.f32.mrf.mxu0
        %v2839 = vadd.f32 %v2726, %v2838
        %2840 = vmatmul.f32.gmra.mxu0 %v2519
        %v2841 = vpop.f32.mrf.mxu0
        %v2842 = vadd.f32 %v2729, %v2841
        %2843 = vmatmul.f32.gmra.mxu0 %v2523
        %v2844 = vpop.f32.mrf.mxu0
        %v2845 = vadd.f32 %v2732, %v2844
        %2846 = vmatmul.f32.gmra.mxu0 %v2527
        %v2847 = vpop.f32.mrf.mxu0
        %v2848 = vadd.f32 %v2735, %v2847
        %2849 = vdwg.mxu0
        %v2850 = vrcp.pop %v2530
        %v2851 = vrcp.pop %v2533
        %v2852 = vrcp.pop %v2536
        %v2853 = vrcp.pop %v2539
        %v2854 = vrcp.pop %v2542
        %v2855 = vrcp.pop %v2545
        %v2856 = vrcp.pop %v2548
        %v2857 = vrcp.pop %v2551
        %v2858 = vrcp.pop %v2554
        %v2859 = vrcp.pop %v2557
        %v2860 = vrcp.pop %v2560
        %v2861 = vrcp.pop %v2563
        %v2862 = vrcp.pop %v2566
        %v2863 = vrcp.pop %v2569
        %v2864 = vrcp.pop %v2572
        %v2865 = vrcp.pop %v2575
        %v2866 = vrcp.pop %v2578
        %v2867 = vrcp.pop %v2581
        %v2868 = vrcp.pop %v2584
        %v2869 = vrcp.pop %v2587
        %v2870 = vrcp.pop %v2590
        %v2871 = vrcp.pop %v2593
        %v2872 = vrcp.pop %v2596
        %v2873 = vrcp.pop %v2599
        %v2874 = vrcp.pop %v2602
        %v2875 = vrcp.pop %v2605
        %v2876 = vrcp.pop %v2608
        %v2877 = vrcp.pop %v2611
        %v2878 = vrcp.pop %v2614
        %v2879 = vrcp.pop %v2617
        %v2880 = vrcp.pop %v2620
        %v2881 = vrcp.pop %v2623
        %v2882 = vmul.f32 %v2755, %v2850
        %v2883 = vmul.f32 %v2758, %v2851
        %v2884 = vmul.f32 %v2761, %v2852
        %v2885 = vmul.f32 %v2764, %v2853
        %v2886 = vmul.f32 %v2767, %v2854
        %v2887 = vmul.f32 %v2770, %v2855
        %v2888 = vmul.f32 %v2773, %v2856
        %v2889 = vmul.f32 %v2776, %v2857
        %v2890 = vmul.f32 %v2779, %v2858
        %v2891 = vmul.f32 %v2782, %v2859
        %v2892 = vmul.f32 %v2785, %v2860
        %v2893 = vmul.f32 %v2788, %v2861
        %v2894 = vmul.f32 %v2791, %v2862
        %v2895 = vmul.f32 %v2794, %v2863
        %v2896 = vmul.f32 %v2797, %v2864
        %v2897 = vmul.f32 %v2800, %v2865
        %v2898 = vmul.f32 %v2803, %v2866
        %v2899 = vmul.f32 %v2806, %v2867
        %v2900 = vmul.f32 %v2809, %v2868
        %v2901 = vmul.f32 %v2812, %v2869
        %v2902 = vmul.f32 %v2815, %v2870
        %v2903 = vmul.f32 %v2818, %v2871
        %v2904 = vmul.f32 %v2821, %v2872
        %v2905 = vmul.f32 %v2824, %v2873
        %v2906 = vmul.f32 %v2827, %v2874
        %v2907 = vmul.f32 %v2830, %v2875
        %v2908 = vmul.f32 %v2833, %v2876
        %v2909 = vmul.f32 %v2836, %v2877
        %v2910 = vmul.f32 %v2839, %v2878
        %v2911 = vmul.f32 %v2842, %v2879
        %v2912 = vmul.f32 %v2845, %v2880
        %v2913 = vmul.f32 %v2848, %v2881
        %2946 = vrot.lane.b32.xlu0 %v2882, 8
        %v2947 = vpop.permute.xlu0 %2946
        %2948 = vrot.lane.b32.xlu0 %v2883, 8
        %v2949 = vpop.permute.xlu0 %2948
        %2950 = vrot.lane.b32.xlu0 %v2884, 8
        %v2951 = vpop.permute.xlu0 %2950
        %2952 = vrot.lane.b32.xlu0 %v2885, 8
        %v2953 = vpop.permute.xlu0 %2952
        %2954 = vrot.lane.b32.xlu0 %v2886, 8
        %v2955 = vpop.permute.xlu0 %2954
        %2956 = vrot.lane.b32.xlu0 %v2887, 8
        %v2957 = vpop.permute.xlu0 %2956
        %2958 = vrot.lane.b32.xlu0 %v2888, 8
        %v2959 = vpop.permute.xlu0 %2958
        %2960 = vrot.lane.b32.xlu0 %v2889, 8
        %v2961 = vpop.permute.xlu0 %2960
        %2962 = vrot.lane.b32.xlu0 %v2890, 8
        %v2963 = vpop.permute.xlu0 %2962
        %2964 = vrot.lane.b32.xlu0 %v2891, 8
        %v2965 = vpop.permute.xlu0 %2964
        %2966 = vrot.lane.b32.xlu0 %v2892, 8
        %v2967 = vpop.permute.xlu0 %2966
        %2968 = vrot.lane.b32.xlu0 %v2893, 8
        %v2969 = vpop.permute.xlu0 %2968
        %2970 = vrot.lane.b32.xlu0 %v2894, 8
        %v2971 = vpop.permute.xlu0 %2970
        %2972 = vrot.lane.b32.xlu0 %v2895, 8
        %v2973 = vpop.permute.xlu0 %2972
        %2974 = vrot.lane.b32.xlu0 %v2896, 8
        %v2975 = vpop.permute.xlu0 %2974
        %2976 = vrot.lane.b32.xlu0 %v2897, 8
        %v2977 = vpop.permute.xlu0 %2976
        %2978 = vrot.lane.b32.xlu0 %v2898, 8
        %v2979 = vpop.permute.xlu0 %2978
        %2980 = vrot.lane.b32.xlu0 %v2899, 8
        %v2981 = vpop.permute.xlu0 %2980
        %2982 = vrot.lane.b32.xlu0 %v2900, 8
        %v2983 = vpop.permute.xlu0 %2982
        %2984 = vrot.lane.b32.xlu0 %v2901, 8
        %v2985 = vpop.permute.xlu0 %2984
        %2986 = vrot.lane.b32.xlu0 %v2902, 8
        %v2987 = vpop.permute.xlu0 %2986
        %2988 = vrot.lane.b32.xlu0 %v2903, 8
        %v2989 = vpop.permute.xlu0 %2988
        %2990 = vrot.lane.b32.xlu0 %v2904, 8
        %v2991 = vpop.permute.xlu0 %2990
        %2992 = vrot.lane.b32.xlu0 %v2905, 8
        %v2993 = vpop.permute.xlu0 %2992
        %2994 = vrot.lane.b32.xlu0 %v2906, 8
        %v2995 = vpop.permute.xlu0 %2994
        %2996 = vrot.lane.b32.xlu0 %v2907, 8
        %v2997 = vpop.permute.xlu0 %2996
        %2998 = vrot.lane.b32.xlu0 %v2908, 8
        %v2999 = vpop.permute.xlu0 %2998
        %3000 = vrot.lane.b32.xlu0 %v2909, 8
        %v3001 = vpop.permute.xlu0 %3000
        %3002 = vrot.lane.b32.xlu0 %v2910, 8
        %v3003 = vpop.permute.xlu0 %3002
        %3004 = vrot.lane.b32.xlu0 %v2911, 8
        %v3005 = vpop.permute.xlu0 %3004
        %3006 = vrot.lane.b32.xlu0 %v2912, 8
        %v3007 = vpop.permute.xlu0 %3006
        %3008 = vrot.lane.b32.xlu0 %v2913, 8
        %v3009 = vpop.permute.xlu0 %3008
        %vm3042 = vcmask 130112
        %3043 = vst.msk [vmem:[#allocation3] sm:$0xff] %vm3042, %v2947
        %3044 = vst.msk [vmem:[#allocation3 + $0x8] sm:$0xff] %vm3042, %v2949
        %3045 = vst.msk [vmem:[#allocation3 + $0x10] sm:$0xff] %vm3042, %v2951
        %3046 = vst.msk [vmem:[#allocation3 + $0x18] sm:$0xff] %vm3042, %v2953
        %3047 = vst.msk [vmem:[#allocation3 + $0x20] sm:$0xff] %vm3042, %v2955
        %3048 = vst.msk [vmem:[#allocation3 + $0x28] sm:$0xff] %vm3042, %v2957
        %3049 = vst.msk [vmem:[#allocation3 + $0x30] sm:$0xff] %vm3042, %v2959
        %3050 = vst.msk [vmem:[#allocation3 + $0x38] sm:$0xff] %vm3042, %v2961
        %3051 = vst.msk [vmem:[#allocation3 + $0x40] sm:$0xff] %vm3042, %v2963
        %3052 = vst.msk [vmem:[#allocation3 + $0x48] sm:$0xff] %vm3042, %v2965
        %3053 = vst.msk [vmem:[#allocation3 + $0x50] sm:$0xff] %vm3042, %v2967
        %3054 = vst.msk [vmem:[#allocation3 + $0x58] sm:$0xff] %vm3042, %v2969
        %3055 = vst.msk [vmem:[#allocation3 + $0x60] sm:$0xff] %vm3042, %v2971
        %3056 = vst.msk [vmem:[#allocation3 + $0x68] sm:$0xff] %vm3042, %v2973
        %3057 = vst.msk [vmem:[#allocation3 + $0x70] sm:$0xff] %vm3042, %v2975
        %3058 = vst.msk [vmem:[#allocation3 + $0x78] sm:$0xff] %vm3042, %v2977
        %3059 = vst.msk [vmem:[#allocation3 + $0x80] sm:$0xff] %vm3042, %v2979
        %3060 = vst.msk [vmem:[#allocation3 + $0x88] sm:$0xff] %vm3042, %v2981
        %3061 = vst.msk [vmem:[#allocation3 + $0x90] sm:$0xff] %vm3042, %v2983
        %3062 = vst.msk [vmem:[#allocation3 + $0x98] sm:$0xff] %vm3042, %v2985
        %3063 = vst.msk [vmem:[#allocation3 + $0xa0] sm:$0xff] %vm3042, %v2987
        %3064 = vst.msk [vmem:[#allocation3 + $0xa8] sm:$0xff] %vm3042, %v2989
        %3065 = vst.msk [vmem:[#allocation3 + $0xb0] sm:$0xff] %vm3042, %v2991
        %3066 = vst.msk [vmem:[#allocation3 + $0xb8] sm:$0xff] %vm3042, %v2993
        %3067 = vst.msk [vmem:[#allocation3 + $0xc0] sm:$0xff] %vm3042, %v2995
        %3068 = vst.msk [vmem:[#allocation3 + $0xc8] sm:$0xff] %vm3042, %v2997
        %3069 = vst.msk [vmem:[#allocation3 + $0xd0] sm:$0xff] %vm3042, %v2999
        %3070 = vst.msk [vmem:[#allocation3 + $0xd8] sm:$0xff] %vm3042, %v3001
        %3071 = vst.msk [vmem:[#allocation3 + $0xe0] sm:$0xff] %vm3042, %v3003
        %3072 = vst.msk [vmem:[#allocation3 + $0xe8] sm:$0xff] %vm3042, %v3005
        %3073 = vst.msk [vmem:[#allocation3 + $0xf0] sm:$0xff] %vm3042, %v3007
        %3074 = vst.msk [vmem:[#allocation3 + $0xf8] sm:$0xff] %vm3042, %v3009
        %v3075 = vmul.f32 %v475, %v475
        %v3076 = vmul.f32 %v516, %v516
        %v3077 = vrot.slane %v3075, 4
        %v3078 = vadd.f32 %v3075, %v3077
        %v3079 = vrot.slane %v3078, 2
        %v3080 = vadd.f32 %v3078, %v3079
        %v3081 = vrot.slane %v3080, 1
        %v3082 = vadd.f32 %v3080, %v3081
        %v3083 = vrot.slane %v3076, 4
        %v3084 = vadd.f32 %v3076, %v3083
        %v3085 = vrot.slane %v3084, 2
        %v3086 = vadd.f32 %v3084, %v3085
        %v3087 = vrot.slane %v3086, 1
        %v3088 = vadd.f32 %v3086, %v3087
        %v3089 = vmax.f32 %v3082, 1e-24
        %v3090 = vmax.f32 %v3088, 1e-24
        %v3091 = vrsqrt.pop %v3089
        %v3092 = vmul.f32 %v3091, %v3089
        %v3093 = vmul.f32 %v3092, %v3091
        %v3094 = vmul.f32 0.5, %v3093
        %v3095 = vsub.f32 1.5, %v3094
        %v3096 = vmul.f32 %v3091, %v3095
        %vm3097 = vweird.f32 %v3089
        %vm3098 = vweird.f32 %v3091
        %vm3099 = vmor %vm3097, %vm3098
        %v3100 = vsel %vm3099, %v3091, %v3096
        %v3101 = vrsqrt.pop %v3090
        %v3102 = vmul.f32 %v3101, %v3090
        %v3103 = vmul.f32 %v3102, %v3101
        %v3104 = vmul.f32 0.5, %v3103
        %v3105 = vsub.f32 1.5, %v3104
        %v3106 = vmul.f32 %v3101, %v3105
        %vm3107 = vweird.f32 %v3090
        %vm3108 = vweird.f32 %v3101
        %vm3109 = vmor %vm3107, %vm3108
        %v3110 = vsel %vm3109, %v3101, %v3106
        %v3111 = vmul.f32 %v475, %v3100
        %v3112 = vmul.f32 %v516, %v3110
        %3113 = vrot.lane.b32.xlu0 %v733, 112
        %v3114 = vpop.permute.xlu0 %3113
        %3115 = vrot.lane.b32.xlu0 %v734, 112
        %v3116 = vpop.permute.xlu0 %3115
        %3117 = vrot.lane.b32.xlu0 %v735, 112
        %v3118 = vpop.permute.xlu0 %3117
        %3119 = vrot.lane.b32.xlu0 %v736, 112
        %v3120 = vpop.permute.xlu0 %3119
        %3121 = vrot.lane.b32.xlu0 %v737, 112
        %v3122 = vpop.permute.xlu0 %3121
        %3123 = vrot.lane.b32.xlu0 %v738, 112
        %v3124 = vpop.permute.xlu0 %3123
        %3125 = vrot.lane.b32.xlu0 %v739, 112
        %v3126 = vpop.permute.xlu0 %3125
        %3127 = vrot.lane.b32.xlu0 %v740, 112
        %v3128 = vpop.permute.xlu0 %3127
        %3129 = vrot.lane.b32.xlu0 %v741, 112
        %v3130 = vpop.permute.xlu0 %3129
        %3131 = vrot.lane.b32.xlu0 %v742, 112
        %v3132 = vpop.permute.xlu0 %3131
        %3133 = vrot.lane.b32.xlu0 %v743, 112
        %v3134 = vpop.permute.xlu0 %3133
        %3135 = vrot.lane.b32.xlu0 %v744, 112
        %v3136 = vpop.permute.xlu0 %3135
        %3137 = vrot.lane.b32.xlu0 %v745, 112
        %v3138 = vpop.permute.xlu0 %3137
        %3139 = vrot.lane.b32.xlu0 %v746, 112
        %v3140 = vpop.permute.xlu0 %3139
        %3141 = vrot.lane.b32.xlu0 %v747, 112
        %v3142 = vpop.permute.xlu0 %3141
        %3143 = vrot.lane.b32.xlu0 %v748, 112
        %v3144 = vpop.permute.xlu0 %3143
        %3145 = vrot.lane.b32.xlu0 %v765, 112
        %v3146 = vpop.permute.xlu0 %3145
        %3147 = vrot.lane.b32.xlu0 %v766, 112
        %v3148 = vpop.permute.xlu0 %3147
        %3149 = vrot.lane.b32.xlu0 %v767, 112
        %v3150 = vpop.permute.xlu0 %3149
        %3151 = vrot.lane.b32.xlu0 %v768, 112
        %v3152 = vpop.permute.xlu0 %3151
        %3153 = vrot.lane.b32.xlu0 %v769, 112
        %v3154 = vpop.permute.xlu0 %3153
        %3155 = vrot.lane.b32.xlu0 %v770, 112
        %v3156 = vpop.permute.xlu0 %3155
        %3157 = vrot.lane.b32.xlu0 %v771, 112
        %v3158 = vpop.permute.xlu0 %3157
        %3159 = vrot.lane.b32.xlu0 %v772, 112
        %v3160 = vpop.permute.xlu0 %3159
        %3161 = vrot.lane.b32.xlu0 %v773, 112
        %v3162 = vpop.permute.xlu0 %3161
        %3163 = vrot.lane.b32.xlu0 %v774, 112
        %v3164 = vpop.permute.xlu0 %3163
        %3165 = vrot.lane.b32.xlu0 %v775, 112
        %v3166 = vpop.permute.xlu0 %3165
        %3167 = vrot.lane.b32.xlu0 %v776, 112
        %v3168 = vpop.permute.xlu0 %3167
        %3169 = vrot.lane.b32.xlu0 %v777, 112
        %v3170 = vpop.permute.xlu0 %3169
        %3171 = vrot.lane.b32.xlu0 %v778, 112
        %v3172 = vpop.permute.xlu0 %3171
        %3173 = vrot.lane.b32.xlu0 %v779, 112
        %v3174 = vpop.permute.xlu0 %3173
        %3175 = vrot.lane.b32.xlu0 %v780, 112
        %v3176 = vpop.permute.xlu0 %3175
        %v3177 = vsel %vm819, %v3114, 0
        %v3179 = vsel %vm819, %v3116, 0
        %v3181 = vsel %vm819, %v3118, 0
        %v3183 = vsel %vm819, %v3120, 0
        %v3185 = vsel %vm819, %v3122, 0
        %v3187 = vsel %vm819, %v3124, 0
        %v3189 = vsel %vm819, %v3126, 0
        %v3191 = vsel %vm819, %v3128, 0
        %v3193 = vsel %vm819, %v3130, 0
        %v3195 = vsel %vm819, %v3132, 0
        %v3197 = vsel %vm819, %v3134, 0
        %v3199 = vsel %vm819, %v3136, 0
        %v3201 = vsel %vm819, %v3138, 0
        %v3203 = vsel %vm819, %v3140, 0
        %v3205 = vsel %vm819, %v3142, 0
        %v3207 = vsel %vm819, %v3144, 0
        %v3209 = vsel %vm819, %v3146, 0
        %v3211 = vsel %vm819, %v3148, 0
        %v3213 = vsel %vm819, %v3150, 0
        %v3215 = vsel %vm819, %v3152, 0
        %v3217 = vsel %vm819, %v3154, 0
        %v3219 = vsel %vm819, %v3156, 0
        %v3221 = vsel %vm819, %v3158, 0
        %v3223 = vsel %vm819, %v3160, 0
        %v3225 = vsel %vm819, %v3162, 0
        %v3227 = vsel %vm819, %v3164, 0
        %v3229 = vsel %vm819, %v3166, 0
        %v3231 = vsel %vm819, %v3168, 0
        %v3233 = vsel %vm819, %v3170, 0
        %v3235 = vsel %vm819, %v3172, 0
        %v3237 = vsel %vm819, %v3174, 0
        %v3239 = vsel %vm819, %v3176, 0
        %3241 = vmatpush.msra.mxu0 0.0
        %3242 = vmatpush.msra.mxu0 0.0
        %3243 = vmatpush.msra.mxu0 0.0
        %3244 = vmatpush.msra.mxu0 0.0
        %3245 = vmatpush.msra.mxu0 0.0
        %3246 = vmatpush.msra.mxu0 0.0
        %3247 = vmatpush.msra.mxu0 0.0
        %3248 = vmatpush.msra.mxu0 0.0
        %3249 = vmatpush.msra.mxu0 0.0
        %3250 = vmatpush.msra.mxu0 0.0
        %3251 = vmatpush.msra.mxu0 0.0
        %3252 = vmatpush.msra.mxu0 0.0
        %3253 = vmatpush.msra.mxu0 0.0
        %3254 = vmatpush.msra.mxu0 0.0
        %3255 = vmatpush.msra.mxu0 0.0
        %3256 = vmatpush.msra.mxu0 %v3111
        %3257 = vmatmul.f32.gmra.mxu0 %v3177
        %v3258 = vpop.f32.mrf.mxu0
        %v3259 = vadd.f32 0.0, %v3258
        %3260 = vmatmul.f32.gmra.mxu0 %v3179
        %v3261 = vpop.f32.mrf.mxu0
        %v3262 = vadd.f32 0.0, %v3261
        %3263 = vmatmul.f32.gmra.mxu0 %v3181
        %v3264 = vpop.f32.mrf.mxu0
        %v3265 = vadd.f32 0.0, %v3264
        %3266 = vmatmul.f32.gmra.mxu0 %v3183
        %v3267 = vpop.f32.mrf.mxu0
        %v3268 = vadd.f32 0.0, %v3267
        %3269 = vmatmul.f32.gmra.mxu0 %v3185
        %v3270 = vpop.f32.mrf.mxu0
        %v3271 = vadd.f32 0.0, %v3270
        %3272 = vmatmul.f32.gmra.mxu0 %v3187
        %v3273 = vpop.f32.mrf.mxu0
        %v3274 = vadd.f32 0.0, %v3273
        %3275 = vmatmul.f32.gmra.mxu0 %v3189
        %v3276 = vpop.f32.mrf.mxu0
        %v3277 = vadd.f32 0.0, %v3276
        %3278 = vmatmul.f32.gmra.mxu0 %v3191
        %v3279 = vpop.f32.mrf.mxu0
        %v3280 = vadd.f32 0.0, %v3279
        %3281 = vmatmul.f32.gmra.mxu0 %v3193
        %v3282 = vpop.f32.mrf.mxu0
        %v3283 = vadd.f32 0.0, %v3282
        %3284 = vmatmul.f32.gmra.mxu0 %v3195
        %v3285 = vpop.f32.mrf.mxu0
        %v3286 = vadd.f32 0.0, %v3285
        %3287 = vmatmul.f32.gmra.mxu0 %v3197
        %v3288 = vpop.f32.mrf.mxu0
        %v3289 = vadd.f32 0.0, %v3288
        %3290 = vmatmul.f32.gmra.mxu0 %v3199
        %v3291 = vpop.f32.mrf.mxu0
        %v3292 = vadd.f32 0.0, %v3291
        %3293 = vmatmul.f32.gmra.mxu0 %v3201
        %v3294 = vpop.f32.mrf.mxu0
        %v3295 = vadd.f32 0.0, %v3294
        %3296 = vmatmul.f32.gmra.mxu0 %v3203
        %v3297 = vpop.f32.mrf.mxu0
        %v3298 = vadd.f32 0.0, %v3297
        %3299 = vmatmul.f32.gmra.mxu0 %v3205
        %v3300 = vpop.f32.mrf.mxu0
        %v3301 = vadd.f32 0.0, %v3300
        %3302 = vmatmul.f32.gmra.mxu0 %v3207
        %v3303 = vpop.f32.mrf.mxu0
        %v3304 = vadd.f32 0.0, %v3303
        %3305 = vmatmul.f32.gmra.mxu0 %v3209
        %v3306 = vpop.f32.mrf.mxu0
        %v3307 = vadd.f32 0.0, %v3306
        %3308 = vmatmul.f32.gmra.mxu0 %v3211
        %v3309 = vpop.f32.mrf.mxu0
        %v3310 = vadd.f32 0.0, %v3309
        %3311 = vmatmul.f32.gmra.mxu0 %v3213
        %v3312 = vpop.f32.mrf.mxu0
        %v3313 = vadd.f32 0.0, %v3312
        %3314 = vmatmul.f32.gmra.mxu0 %v3215
        %v3315 = vpop.f32.mrf.mxu0
        %v3316 = vadd.f32 0.0, %v3315
        %3317 = vmatmul.f32.gmra.mxu0 %v3217
        %v3318 = vpop.f32.mrf.mxu0
        %v3319 = vadd.f32 0.0, %v3318
        %3320 = vmatmul.f32.gmra.mxu0 %v3219
        %v3321 = vpop.f32.mrf.mxu0
        %v3322 = vadd.f32 0.0, %v3321
        %3323 = vmatmul.f32.gmra.mxu0 %v3221
        %v3324 = vpop.f32.mrf.mxu0
        %v3325 = vadd.f32 0.0, %v3324
        %3326 = vmatmul.f32.gmra.mxu0 %v3223
        %v3327 = vpop.f32.mrf.mxu0
        %v3328 = vadd.f32 0.0, %v3327
        %3329 = vmatmul.f32.gmra.mxu0 %v3225
        %v3330 = vpop.f32.mrf.mxu0
        %v3331 = vadd.f32 0.0, %v3330
        %3332 = vmatmul.f32.gmra.mxu0 %v3227
        %v3333 = vpop.f32.mrf.mxu0
        %v3334 = vadd.f32 0.0, %v3333
        %3335 = vmatmul.f32.gmra.mxu0 %v3229
        %v3336 = vpop.f32.mrf.mxu0
        %v3337 = vadd.f32 0.0, %v3336
        %3338 = vmatmul.f32.gmra.mxu0 %v3231
        %v3339 = vpop.f32.mrf.mxu0
        %v3340 = vadd.f32 0.0, %v3339
        %3341 = vmatmul.f32.gmra.mxu0 %v3233
        %v3342 = vpop.f32.mrf.mxu0
        %v3343 = vadd.f32 0.0, %v3342
        %3344 = vmatmul.f32.gmra.mxu0 %v3235
        %v3345 = vpop.f32.mrf.mxu0
        %v3346 = vadd.f32 0.0, %v3345
        %3347 = vmatmul.f32.gmra.mxu0 %v3237
        %v3348 = vpop.f32.mrf.mxu0
        %v3349 = vadd.f32 0.0, %v3348
        %3350 = vmatmul.f32.gmra.mxu0 %v3239
        %v3351 = vpop.f32.mrf.mxu0
        %v3352 = vadd.f32 0.0, %v3351
        %3353 = vdwg.mxu0
        %3354 = vmatpush.msra.mxu0 0.0
        %3355 = vmatpush.msra.mxu0 0.0
        %3356 = vmatpush.msra.mxu0 0.0
        %3357 = vmatpush.msra.mxu0 0.0
        %3358 = vmatpush.msra.mxu0 0.0
        %3359 = vmatpush.msra.mxu0 0.0
        %3360 = vmatpush.msra.mxu0 0.0
        %3361 = vmatpush.msra.mxu0 0.0
        %3362 = vmatpush.msra.mxu0 0.0
        %3363 = vmatpush.msra.mxu0 0.0
        %3364 = vmatpush.msra.mxu0 0.0
        %3365 = vmatpush.msra.mxu0 0.0
        %3366 = vmatpush.msra.mxu0 0.0
        %3367 = vmatpush.msra.mxu0 0.0
        %3368 = vmatpush.msra.mxu0 0.0
        %3369 = vmatpush.msra.mxu0 %v3112
        %3370 = vmatmul.f32.gmra.mxu0 %v3177
        %v3371 = vpop.f32.mrf.mxu0
        %v3372 = vadd.f32 0.0, %v3371
        %3373 = vmatmul.f32.gmra.mxu0 %v3179
        %v3374 = vpop.f32.mrf.mxu0
        %v3375 = vadd.f32 0.0, %v3374
        %3376 = vmatmul.f32.gmra.mxu0 %v3181
        %v3377 = vpop.f32.mrf.mxu0
        %v3378 = vadd.f32 0.0, %v3377
        %3379 = vmatmul.f32.gmra.mxu0 %v3183
        %v3380 = vpop.f32.mrf.mxu0
        %v3381 = vadd.f32 0.0, %v3380
        %3382 = vmatmul.f32.gmra.mxu0 %v3185
        %v3383 = vpop.f32.mrf.mxu0
        %v3384 = vadd.f32 0.0, %v3383
        %3385 = vmatmul.f32.gmra.mxu0 %v3187
        %v3386 = vpop.f32.mrf.mxu0
        %v3387 = vadd.f32 0.0, %v3386
        %3388 = vmatmul.f32.gmra.mxu0 %v3189
        %v3389 = vpop.f32.mrf.mxu0
        %v3390 = vadd.f32 0.0, %v3389
        %3391 = vmatmul.f32.gmra.mxu0 %v3191
        %v3392 = vpop.f32.mrf.mxu0
        %v3393 = vadd.f32 0.0, %v3392
        %3394 = vmatmul.f32.gmra.mxu0 %v3193
        %v3395 = vpop.f32.mrf.mxu0
        %v3396 = vadd.f32 0.0, %v3395
        %3397 = vmatmul.f32.gmra.mxu0 %v3195
        %v3398 = vpop.f32.mrf.mxu0
        %v3399 = vadd.f32 0.0, %v3398
        %3400 = vmatmul.f32.gmra.mxu0 %v3197
        %v3401 = vpop.f32.mrf.mxu0
        %v3402 = vadd.f32 0.0, %v3401
        %3403 = vmatmul.f32.gmra.mxu0 %v3199
        %v3404 = vpop.f32.mrf.mxu0
        %v3405 = vadd.f32 0.0, %v3404
        %3406 = vmatmul.f32.gmra.mxu0 %v3201
        %v3407 = vpop.f32.mrf.mxu0
        %v3408 = vadd.f32 0.0, %v3407
        %3409 = vmatmul.f32.gmra.mxu0 %v3203
        %v3410 = vpop.f32.mrf.mxu0
        %v3411 = vadd.f32 0.0, %v3410
        %3412 = vmatmul.f32.gmra.mxu0 %v3205
        %v3413 = vpop.f32.mrf.mxu0
        %v3414 = vadd.f32 0.0, %v3413
        %3415 = vmatmul.f32.gmra.mxu0 %v3207
        %v3416 = vpop.f32.mrf.mxu0
        %v3417 = vadd.f32 0.0, %v3416
        %3418 = vmatmul.f32.gmra.mxu0 %v3209
        %v3419 = vpop.f32.mrf.mxu0
        %v3420 = vadd.f32 0.0, %v3419
        %3421 = vmatmul.f32.gmra.mxu0 %v3211
        %v3422 = vpop.f32.mrf.mxu0
        %v3423 = vadd.f32 0.0, %v3422
        %3424 = vmatmul.f32.gmra.mxu0 %v3213
        %v3425 = vpop.f32.mrf.mxu0
        %v3426 = vadd.f32 0.0, %v3425
        %3427 = vmatmul.f32.gmra.mxu0 %v3215
        %v3428 = vpop.f32.mrf.mxu0
        %v3429 = vadd.f32 0.0, %v3428
        %3430 = vmatmul.f32.gmra.mxu0 %v3217
        %v3431 = vpop.f32.mrf.mxu0
        %v3432 = vadd.f32 0.0, %v3431
        %3433 = vmatmul.f32.gmra.mxu0 %v3219
        %v3434 = vpop.f32.mrf.mxu0
        %v3435 = vadd.f32 0.0, %v3434
        %3436 = vmatmul.f32.gmra.mxu0 %v3221
        %v3437 = vpop.f32.mrf.mxu0
        %v3438 = vadd.f32 0.0, %v3437
        %3439 = vmatmul.f32.gmra.mxu0 %v3223
        %v3440 = vpop.f32.mrf.mxu0
        %v3441 = vadd.f32 0.0, %v3440
        %3442 = vmatmul.f32.gmra.mxu0 %v3225
        %v3443 = vpop.f32.mrf.mxu0
        %v3444 = vadd.f32 0.0, %v3443
        %3445 = vmatmul.f32.gmra.mxu0 %v3227
        %v3446 = vpop.f32.mrf.mxu0
        %v3447 = vadd.f32 0.0, %v3446
        %3448 = vmatmul.f32.gmra.mxu0 %v3229
        %v3449 = vpop.f32.mrf.mxu0
        %v3450 = vadd.f32 0.0, %v3449
        %3451 = vmatmul.f32.gmra.mxu0 %v3231
        %v3452 = vpop.f32.mrf.mxu0
        %v3453 = vadd.f32 0.0, %v3452
        %3454 = vmatmul.f32.gmra.mxu0 %v3233
        %v3455 = vpop.f32.mrf.mxu0
        %v3456 = vadd.f32 0.0, %v3455
        %3457 = vmatmul.f32.gmra.mxu0 %v3235
        %v3458 = vpop.f32.mrf.mxu0
        %v3459 = vadd.f32 0.0, %v3458
        %3460 = vmatmul.f32.gmra.mxu0 %v3237
        %v3461 = vpop.f32.mrf.mxu0
        %v3462 = vadd.f32 0.0, %v3461
        %3463 = vmatmul.f32.gmra.mxu0 %v3239
        %v3464 = vpop.f32.mrf.mxu0
        %v3465 = vadd.f32 0.0, %v3464
        %3466 = vdwg.mxu0
        %v3467 = vmax.f32 %v3259, %v3372
        %3468 = vmax.xlane.f32.xlu0 %v3467
        %v3469 = vpop.xlane.xlu0 %3468
        %v3470 = vmax.f32 %v3262, %v3375
        %3471 = vmax.xlane.f32.xlu0 %v3470
        %v3472 = vpop.xlane.xlu0 %3471
        %v3473 = vmax.f32 %v3265, %v3378
        %3474 = vmax.xlane.f32.xlu0 %v3473
        %v3475 = vpop.xlane.xlu0 %3474
        %v3476 = vmax.f32 %v3268, %v3381
        %3477 = vmax.xlane.f32.xlu0 %v3476
        %v3478 = vpop.xlane.xlu0 %3477
        %v3479 = vmax.f32 %v3271, %v3384
        %3480 = vmax.xlane.f32.xlu0 %v3479
        %v3481 = vpop.xlane.xlu0 %3480
        %v3482 = vmax.f32 %v3274, %v3387
        %3483 = vmax.xlane.f32.xlu0 %v3482
        %v3484 = vpop.xlane.xlu0 %3483
        %v3485 = vmax.f32 %v3277, %v3390
        %3486 = vmax.xlane.f32.xlu0 %v3485
        %v3487 = vpop.xlane.xlu0 %3486
        %v3488 = vmax.f32 %v3280, %v3393
        %3489 = vmax.xlane.f32.xlu0 %v3488
        %v3490 = vpop.xlane.xlu0 %3489
        %v3491 = vmax.f32 %v3283, %v3396
        %3492 = vmax.xlane.f32.xlu0 %v3491
        %v3493 = vpop.xlane.xlu0 %3492
        %v3494 = vmax.f32 %v3286, %v3399
        %3495 = vmax.xlane.f32.xlu0 %v3494
        %v3496 = vpop.xlane.xlu0 %3495
        %v3497 = vmax.f32 %v3289, %v3402
        %3498 = vmax.xlane.f32.xlu0 %v3497
        %v3499 = vpop.xlane.xlu0 %3498
        %v3500 = vmax.f32 %v3292, %v3405
        %3501 = vmax.xlane.f32.xlu0 %v3500
        %v3502 = vpop.xlane.xlu0 %3501
        %v3503 = vmax.f32 %v3295, %v3408
        %3504 = vmax.xlane.f32.xlu0 %v3503
        %v3505 = vpop.xlane.xlu0 %3504
        %v3506 = vmax.f32 %v3298, %v3411
        %3507 = vmax.xlane.f32.xlu0 %v3506
        %v3508 = vpop.xlane.xlu0 %3507
        %v3509 = vmax.f32 %v3301, %v3414
        %3510 = vmax.xlane.f32.xlu0 %v3509
        %v3511 = vpop.xlane.xlu0 %3510
        %v3512 = vmax.f32 %v3304, %v3417
        %3513 = vmax.xlane.f32.xlu0 %v3512
        %v3514 = vpop.xlane.xlu0 %3513
        %v3515 = vmax.f32 %v3307, %v3420
        %3516 = vmax.xlane.f32.xlu0 %v3515
        %v3517 = vpop.xlane.xlu0 %3516
        %v3518 = vmax.f32 %v3310, %v3423
        %3519 = vmax.xlane.f32.xlu0 %v3518
        %v3520 = vpop.xlane.xlu0 %3519
        %v3521 = vmax.f32 %v3313, %v3426
        %3522 = vmax.xlane.f32.xlu0 %v3521
        %v3523 = vpop.xlane.xlu0 %3522
        %v3524 = vmax.f32 %v3316, %v3429
        %3525 = vmax.xlane.f32.xlu0 %v3524
        %v3526 = vpop.xlane.xlu0 %3525
        %v3527 = vmax.f32 %v3319, %v3432
        %3528 = vmax.xlane.f32.xlu0 %v3527
        %v3529 = vpop.xlane.xlu0 %3528
        %v3530 = vmax.f32 %v3322, %v3435
        %3531 = vmax.xlane.f32.xlu0 %v3530
        %v3532 = vpop.xlane.xlu0 %3531
        %v3533 = vmax.f32 %v3325, %v3438
        %3534 = vmax.xlane.f32.xlu0 %v3533
        %v3535 = vpop.xlane.xlu0 %3534
        %v3536 = vmax.f32 %v3328, %v3441
        %3537 = vmax.xlane.f32.xlu0 %v3536
        %v3538 = vpop.xlane.xlu0 %3537
        %v3539 = vmax.f32 %v3331, %v3444
        %3540 = vmax.xlane.f32.xlu0 %v3539
        %v3541 = vpop.xlane.xlu0 %3540
        %v3542 = vmax.f32 %v3334, %v3447
        %3543 = vmax.xlane.f32.xlu0 %v3542
        %v3544 = vpop.xlane.xlu0 %3543
        %v3545 = vmax.f32 %v3337, %v3450
        %3546 = vmax.xlane.f32.xlu0 %v3545
        %v3547 = vpop.xlane.xlu0 %3546
        %v3548 = vmax.f32 %v3340, %v3453
        %3549 = vmax.xlane.f32.xlu0 %v3548
        %v3550 = vpop.xlane.xlu0 %3549
        %v3551 = vmax.f32 %v3343, %v3456
        %3552 = vmax.xlane.f32.xlu0 %v3551
        %v3553 = vpop.xlane.xlu0 %3552
        %v3554 = vmax.f32 %v3346, %v3459
        %3555 = vmax.xlane.f32.xlu0 %v3554
        %v3556 = vpop.xlane.xlu0 %3555
        %v3557 = vmax.f32 %v3349, %v3462
        %3558 = vmax.xlane.f32.xlu0 %v3557
        %v3559 = vpop.xlane.xlu0 %3558
        %v3560 = vmax.f32 %v3352, %v3465
        %3561 = vmax.xlane.f32.xlu0 %v3560
        %v3562 = vpop.xlane.xlu0 %3561
        %v3563 = vsub.f32 %v3259, %v3469
        %v3564 = vsub.f32 %v3372, %v3469
        %v3565 = vsub.f32 %v3262, %v3472
        %v3566 = vsub.f32 %v3375, %v3472
        %v3567 = vsub.f32 %v3265, %v3475
        %v3568 = vsub.f32 %v3378, %v3475
        %v3569 = vsub.f32 %v3268, %v3478
        %v3570 = vsub.f32 %v3381, %v3478
        %v3571 = vsub.f32 %v3271, %v3481
        %v3572 = vsub.f32 %v3384, %v3481
        %v3573 = vsub.f32 %v3274, %v3484
        %v3574 = vsub.f32 %v3387, %v3484
        %v3575 = vsub.f32 %v3277, %v3487
        %v3576 = vsub.f32 %v3390, %v3487
        %v3577 = vsub.f32 %v3280, %v3490
        %v3578 = vsub.f32 %v3393, %v3490
        %v3579 = vsub.f32 %v3283, %v3493
        %v3580 = vsub.f32 %v3396, %v3493
        %v3581 = vsub.f32 %v3286, %v3496
        %v3582 = vsub.f32 %v3399, %v3496
        %v3583 = vsub.f32 %v3289, %v3499
        %v3584 = vsub.f32 %v3402, %v3499
        %v3585 = vsub.f32 %v3292, %v3502
        %v3586 = vsub.f32 %v3405, %v3502
        %v3587 = vsub.f32 %v3295, %v3505
        %v3588 = vsub.f32 %v3408, %v3505
        %v3589 = vsub.f32 %v3298, %v3508
        %v3590 = vsub.f32 %v3411, %v3508
        %v3591 = vsub.f32 %v3301, %v3511
        %v3592 = vsub.f32 %v3414, %v3511
        %v3593 = vsub.f32 %v3304, %v3514
        %v3594 = vsub.f32 %v3417, %v3514
        %v3595 = vsub.f32 %v3307, %v3517
        %v3596 = vsub.f32 %v3420, %v3517
        %v3597 = vsub.f32 %v3310, %v3520
        %v3598 = vsub.f32 %v3423, %v3520
        %v3599 = vsub.f32 %v3313, %v3523
        %v3600 = vsub.f32 %v3426, %v3523
        %v3601 = vsub.f32 %v3316, %v3526
        %v3602 = vsub.f32 %v3429, %v3526
        %v3603 = vsub.f32 %v3319, %v3529
        %v3604 = vsub.f32 %v3432, %v3529
        %v3605 = vsub.f32 %v3322, %v3532
        %v3606 = vsub.f32 %v3435, %v3532
        %v3607 = vsub.f32 %v3325, %v3535
        %v3608 = vsub.f32 %v3438, %v3535
        %v3609 = vsub.f32 %v3328, %v3538
        %v3610 = vsub.f32 %v3441, %v3538
        %v3611 = vsub.f32 %v3331, %v3541
        %v3612 = vsub.f32 %v3444, %v3541
        %v3613 = vsub.f32 %v3334, %v3544
        %v3614 = vsub.f32 %v3447, %v3544
        %v3615 = vsub.f32 %v3337, %v3547
        %v3616 = vsub.f32 %v3450, %v3547
        %v3617 = vsub.f32 %v3340, %v3550
        %v3618 = vsub.f32 %v3453, %v3550
        %v3619 = vsub.f32 %v3343, %v3553
        %v3620 = vsub.f32 %v3456, %v3553
        %v3621 = vsub.f32 %v3346, %v3556
        %v3622 = vsub.f32 %v3459, %v3556
        %v3623 = vsub.f32 %v3349, %v3559
        %v3624 = vsub.f32 %v3462, %v3559
        %v3625 = vsub.f32 %v3352, %v3562
        %v3626 = vsub.f32 %v3465, %v3562
        %v3627 = vmul.f32 %v3563, 1.442695
        %v3628 = vpow.pop %v3627
        %v3629 = vmul.f32 %v3564, 1.442695
        %v3630 = vpow.pop %v3629
        %v3631 = vmul.f32 %v3565, 1.442695
        %v3632 = vpow.pop %v3631
        %v3633 = vmul.f32 %v3566, 1.442695
        %v3634 = vpow.pop %v3633
        %v3635 = vmul.f32 %v3567, 1.442695
        %v3636 = vpow.pop %v3635
        %v3637 = vmul.f32 %v3568, 1.442695
        %v3638 = vpow.pop %v3637
        %v3639 = vmul.f32 %v3569, 1.442695
        %v3640 = vpow.pop %v3639
        %v3641 = vmul.f32 %v3570, 1.442695
        %v3642 = vpow.pop %v3641
        %v3643 = vmul.f32 %v3571, 1.442695
        %v3644 = vpow.pop %v3643
        %v3645 = vmul.f32 %v3572, 1.442695
        %v3646 = vpow.pop %v3645
        %v3647 = vmul.f32 %v3573, 1.442695
        %v3648 = vpow.pop %v3647
        %v3649 = vmul.f32 %v3574, 1.442695
        %v3650 = vpow.pop %v3649
        %v3651 = vmul.f32 %v3575, 1.442695
        %v3652 = vpow.pop %v3651
        %v3653 = vmul.f32 %v3576, 1.442695
        %v3654 = vpow.pop %v3653
        %v3655 = vmul.f32 %v3577, 1.442695
        %v3656 = vpow.pop %v3655
        %v3657 = vmul.f32 %v3578, 1.442695
        %v3658 = vpow.pop %v3657
        %v3659 = vmul.f32 %v3579, 1.442695
        %v3660 = vpow.pop %v3659
        %v3661 = vmul.f32 %v3580, 1.442695
        %v3662 = vpow.pop %v3661
        %v3663 = vmul.f32 %v3581, 1.442695
        %v3664 = vpow.pop %v3663
        %v3665 = vmul.f32 %v3582, 1.442695
        %v3666 = vpow.pop %v3665
        %v3667 = vmul.f32 %v3583, 1.442695
        %v3668 = vpow.pop %v3667
        %v3669 = vmul.f32 %v3584, 1.442695
        %v3670 = vpow.pop %v3669
        %v3671 = vmul.f32 %v3585, 1.442695
        %v3672 = vpow.pop %v3671
        %v3673 = vmul.f32 %v3586, 1.442695
        %v3674 = vpow.pop %v3673
        %v3675 = vmul.f32 %v3587, 1.442695
        %v3676 = vpow.pop %v3675
        %v3677 = vmul.f32 %v3588, 1.442695
        %v3678 = vpow.pop %v3677
        %v3679 = vmul.f32 %v3589, 1.442695
        %v3680 = vpow.pop %v3679
        %v3681 = vmul.f32 %v3590, 1.442695
        %v3682 = vpow.pop %v3681
        %v3683 = vmul.f32 %v3591, 1.442695
        %v3684 = vpow.pop %v3683
        %v3685 = vmul.f32 %v3592, 1.442695
        %v3686 = vpow.pop %v3685
        %v3687 = vmul.f32 %v3593, 1.442695
        %v3688 = vpow.pop %v3687
        %v3689 = vmul.f32 %v3594, 1.442695
        %v3690 = vpow.pop %v3689
        %v3691 = vmul.f32 %v3595, 1.442695
        %v3692 = vpow.pop %v3691
        %v3693 = vmul.f32 %v3596, 1.442695
        %v3694 = vpow.pop %v3693
        %v3695 = vmul.f32 %v3597, 1.442695
        %v3696 = vpow.pop %v3695
        %v3697 = vmul.f32 %v3598, 1.442695
        %v3698 = vpow.pop %v3697
        %v3699 = vmul.f32 %v3599, 1.442695
        %v3700 = vpow.pop %v3699
        %v3701 = vmul.f32 %v3600, 1.442695
        %v3702 = vpow.pop %v3701
        %v3703 = vmul.f32 %v3601, 1.442695
        %v3704 = vpow.pop %v3703
        %v3705 = vmul.f32 %v3602, 1.442695
        %v3706 = vpow.pop %v3705
        %v3707 = vmul.f32 %v3603, 1.442695
        %v3708 = vpow.pop %v3707
        %v3709 = vmul.f32 %v3604, 1.442695
        %v3710 = vpow.pop %v3709
        %v3711 = vmul.f32 %v3605, 1.442695
        %v3712 = vpow.pop %v3711
        %v3713 = vmul.f32 %v3606, 1.442695
        %v3714 = vpow.pop %v3713
        %v3715 = vmul.f32 %v3607, 1.442695
        %v3716 = vpow.pop %v3715
        %v3717 = vmul.f32 %v3608, 1.442695
        %v3718 = vpow.pop %v3717
        %v3719 = vmul.f32 %v3609, 1.442695
        %v3720 = vpow.pop %v3719
        %v3721 = vmul.f32 %v3610, 1.442695
        %v3722 = vpow.pop %v3721
        %v3723 = vmul.f32 %v3611, 1.442695
        %v3724 = vpow.pop %v3723
        %v3725 = vmul.f32 %v3612, 1.442695
        %v3726 = vpow.pop %v3725
        %v3727 = vmul.f32 %v3613, 1.442695
        %v3728 = vpow.pop %v3727
        %v3729 = vmul.f32 %v3614, 1.442695
        %v3730 = vpow.pop %v3729
        %v3731 = vmul.f32 %v3615, 1.442695
        %v3732 = vpow.pop %v3731
        %v3733 = vmul.f32 %v3616, 1.442695
        %v3734 = vpow.pop %v3733
        %v3735 = vmul.f32 %v3617, 1.442695
        %v3736 = vpow.pop %v3735
        %v3737 = vmul.f32 %v3618, 1.442695
        %v3738 = vpow.pop %v3737
        %v3739 = vmul.f32 %v3619, 1.442695
        %v3740 = vpow.pop %v3739
        %v3741 = vmul.f32 %v3620, 1.442695
        %v3742 = vpow.pop %v3741
        %v3743 = vmul.f32 %v3621, 1.442695
        %v3744 = vpow.pop %v3743
        %v3745 = vmul.f32 %v3622, 1.442695
        %v3746 = vpow.pop %v3745
        %v3747 = vmul.f32 %v3623, 1.442695
        %v3748 = vpow.pop %v3747
        %v3749 = vmul.f32 %v3624, 1.442695
        %v3750 = vpow.pop %v3749
        %v3751 = vmul.f32 %v3625, 1.442695
        %v3752 = vpow.pop %v3751
        %v3753 = vmul.f32 %v3626, 1.442695
        %v3754 = vpow.pop %v3753
        %v3755 = vadd.f32 %v3628, %v3630
        %3756 = vadd.xlane.f32.xlu0 %v3755
        %v3757 = vpop.xlane.xlu0 %3756
        %v3758 = vadd.f32 %v3632, %v3634
        %3759 = vadd.xlane.f32.xlu0 %v3758
        %v3760 = vpop.xlane.xlu0 %3759
        %v3761 = vadd.f32 %v3636, %v3638
        %3762 = vadd.xlane.f32.xlu0 %v3761
        %v3763 = vpop.xlane.xlu0 %3762
        %v3764 = vadd.f32 %v3640, %v3642
        %3765 = vadd.xlane.f32.xlu0 %v3764
        %v3766 = vpop.xlane.xlu0 %3765
        %v3767 = vadd.f32 %v3644, %v3646
        %3768 = vadd.xlane.f32.xlu0 %v3767
        %v3769 = vpop.xlane.xlu0 %3768
        %v3770 = vadd.f32 %v3648, %v3650
        %3771 = vadd.xlane.f32.xlu0 %v3770
        %v3772 = vpop.xlane.xlu0 %3771
        %v3773 = vadd.f32 %v3652, %v3654
        %3774 = vadd.xlane.f32.xlu0 %v3773
        %v3775 = vpop.xlane.xlu0 %3774
        %v3776 = vadd.f32 %v3656, %v3658
        %3777 = vadd.xlane.f32.xlu0 %v3776
        %v3778 = vpop.xlane.xlu0 %3777
        %v3779 = vadd.f32 %v3660, %v3662
        %3780 = vadd.xlane.f32.xlu0 %v3779
        %v3781 = vpop.xlane.xlu0 %3780
        %v3782 = vadd.f32 %v3664, %v3666
        %3783 = vadd.xlane.f32.xlu0 %v3782
        %v3784 = vpop.xlane.xlu0 %3783
        %v3785 = vadd.f32 %v3668, %v3670
        %3786 = vadd.xlane.f32.xlu0 %v3785
        %v3787 = vpop.xlane.xlu0 %3786
        %v3788 = vadd.f32 %v3672, %v3674
        %3789 = vadd.xlane.f32.xlu0 %v3788
        %v3790 = vpop.xlane.xlu0 %3789
        %v3791 = vadd.f32 %v3676, %v3678
        %3792 = vadd.xlane.f32.xlu0 %v3791
        %v3793 = vpop.xlane.xlu0 %3792
        %v3794 = vadd.f32 %v3680, %v3682
        %3795 = vadd.xlane.f32.xlu0 %v3794
        %v3796 = vpop.xlane.xlu0 %3795
        %v3797 = vadd.f32 %v3684, %v3686
        %3798 = vadd.xlane.f32.xlu0 %v3797
        %v3799 = vpop.xlane.xlu0 %3798
        %v3800 = vadd.f32 %v3688, %v3690
        %3801 = vadd.xlane.f32.xlu0 %v3800
        %v3802 = vpop.xlane.xlu0 %3801
        %v3803 = vadd.f32 %v3692, %v3694
        %3804 = vadd.xlane.f32.xlu0 %v3803
        %v3805 = vpop.xlane.xlu0 %3804
        %v3806 = vadd.f32 %v3696, %v3698
        %3807 = vadd.xlane.f32.xlu0 %v3806
        %v3808 = vpop.xlane.xlu0 %3807
        %v3809 = vadd.f32 %v3700, %v3702
        %3810 = vadd.xlane.f32.xlu0 %v3809
        %v3811 = vpop.xlane.xlu0 %3810
        %v3812 = vadd.f32 %v3704, %v3706
        %3813 = vadd.xlane.f32.xlu0 %v3812
        %v3814 = vpop.xlane.xlu0 %3813
        %v3815 = vadd.f32 %v3708, %v3710
        %3816 = vadd.xlane.f32.xlu0 %v3815
        %v3817 = vpop.xlane.xlu0 %3816
        %v3818 = vadd.f32 %v3712, %v3714
        %3819 = vadd.xlane.f32.xlu0 %v3818
        %v3820 = vpop.xlane.xlu0 %3819
        %v3821 = vadd.f32 %v3716, %v3718
        %3822 = vadd.xlane.f32.xlu0 %v3821
        %v3823 = vpop.xlane.xlu0 %3822
        %v3824 = vadd.f32 %v3720, %v3722
        %3825 = vadd.xlane.f32.xlu0 %v3824
        %v3826 = vpop.xlane.xlu0 %3825
        %v3827 = vadd.f32 %v3724, %v3726
        %3828 = vadd.xlane.f32.xlu0 %v3827
        %v3829 = vpop.xlane.xlu0 %3828
        %v3830 = vadd.f32 %v3728, %v3730
        %3831 = vadd.xlane.f32.xlu0 %v3830
        %v3832 = vpop.xlane.xlu0 %3831
        %v3833 = vadd.f32 %v3732, %v3734
        %3834 = vadd.xlane.f32.xlu0 %v3833
        %v3835 = vpop.xlane.xlu0 %3834
        %v3836 = vadd.f32 %v3736, %v3738
        %3837 = vadd.xlane.f32.xlu0 %v3836
        %v3838 = vpop.xlane.xlu0 %3837
        %v3839 = vadd.f32 %v3740, %v3742
        %3840 = vadd.xlane.f32.xlu0 %v3839
        %v3841 = vpop.xlane.xlu0 %3840
        %v3842 = vadd.f32 %v3744, %v3746
        %3843 = vadd.xlane.f32.xlu0 %v3842
        %v3844 = vpop.xlane.xlu0 %3843
        %v3845 = vadd.f32 %v3748, %v3750
        %3846 = vadd.xlane.f32.xlu0 %v3845
        %v3847 = vpop.xlane.xlu0 %3846
        %v3848 = vadd.f32 %v3752, %v3754
        %3849 = vadd.xlane.f32.xlu0 %v3848
        %v3850 = vpop.xlane.xlu0 %3849
        %3851 = vmatpush.xpose.msra.mxu0 0.0
        %3852 = vmatpush.xpose.msra.mxu0 0.0
        %3853 = vmatpush.xpose.msra.mxu0 0.0
        %3854 = vmatpush.xpose.msra.mxu0 0.0
        %3855 = vmatpush.xpose.msra.mxu0 0.0
        %3856 = vmatpush.xpose.msra.mxu0 0.0
        %3857 = vmatpush.xpose.msra.mxu0 0.0
        %3858 = vmatpush.xpose.msra.mxu0 0.0
        %3859 = vmatpush.xpose.msra.mxu0 0.0
        %3860 = vmatpush.xpose.msra.mxu0 0.0
        %3861 = vmatpush.xpose.msra.mxu0 0.0
        %3862 = vmatpush.xpose.msra.mxu0 0.0
        %3863 = vmatpush.xpose.msra.mxu0 0.0
        %3864 = vmatpush.xpose.msra.mxu0 0.0
        %3865 = vmatpush.xpose.msra.mxu0 0.0
        %3866 = vmatpush.xpose.msra.mxu0 %v487
        %3867 = vmatmul.f32.gmra.mxu0 %v3628
        %v3868 = vpop.f32.mrf.mxu0
        %v3869 = vadd.f32 0.0, %v3868
        %3870 = vmatmul.f32.gmra.mxu0 %v3632
        %v3871 = vpop.f32.mrf.mxu0
        %v3872 = vadd.f32 0.0, %v3871
        %3873 = vmatmul.f32.gmra.mxu0 %v3636
        %v3874 = vpop.f32.mrf.mxu0
        %v3875 = vadd.f32 0.0, %v3874
        %3876 = vmatmul.f32.gmra.mxu0 %v3640
        %v3877 = vpop.f32.mrf.mxu0
        %v3878 = vadd.f32 0.0, %v3877
        %3879 = vmatmul.f32.gmra.mxu0 %v3644
        %v3880 = vpop.f32.mrf.mxu0
        %v3881 = vadd.f32 0.0, %v3880
        %3882 = vmatmul.f32.gmra.mxu0 %v3648
        %v3883 = vpop.f32.mrf.mxu0
        %v3884 = vadd.f32 0.0, %v3883
        %3885 = vmatmul.f32.gmra.mxu0 %v3652
        %v3886 = vpop.f32.mrf.mxu0
        %v3887 = vadd.f32 0.0, %v3886
        %3888 = vmatmul.f32.gmra.mxu0 %v3656
        %v3889 = vpop.f32.mrf.mxu0
        %v3890 = vadd.f32 0.0, %v3889
        %3891 = vmatmul.f32.gmra.mxu0 %v3660
        %v3892 = vpop.f32.mrf.mxu0
        %v3893 = vadd.f32 0.0, %v3892
        %3894 = vmatmul.f32.gmra.mxu0 %v3664
        %v3895 = vpop.f32.mrf.mxu0
        %v3896 = vadd.f32 0.0, %v3895
        %3897 = vmatmul.f32.gmra.mxu0 %v3668
        %v3898 = vpop.f32.mrf.mxu0
        %v3899 = vadd.f32 0.0, %v3898
        %3900 = vmatmul.f32.gmra.mxu0 %v3672
        %v3901 = vpop.f32.mrf.mxu0
        %v3902 = vadd.f32 0.0, %v3901
        %3903 = vmatmul.f32.gmra.mxu0 %v3676
        %v3904 = vpop.f32.mrf.mxu0
        %v3905 = vadd.f32 0.0, %v3904
        %3906 = vmatmul.f32.gmra.mxu0 %v3680
        %v3907 = vpop.f32.mrf.mxu0
        %v3908 = vadd.f32 0.0, %v3907
        %3909 = vmatmul.f32.gmra.mxu0 %v3684
        %v3910 = vpop.f32.mrf.mxu0
        %v3911 = vadd.f32 0.0, %v3910
        %3912 = vmatmul.f32.gmra.mxu0 %v3688
        %v3913 = vpop.f32.mrf.mxu0
        %v3914 = vadd.f32 0.0, %v3913
        %3915 = vmatmul.f32.gmra.mxu0 %v3692
        %v3916 = vpop.f32.mrf.mxu0
        %v3917 = vadd.f32 0.0, %v3916
        %3918 = vmatmul.f32.gmra.mxu0 %v3696
        %v3919 = vpop.f32.mrf.mxu0
        %v3920 = vadd.f32 0.0, %v3919
        %3921 = vmatmul.f32.gmra.mxu0 %v3700
        %v3922 = vpop.f32.mrf.mxu0
        %v3923 = vadd.f32 0.0, %v3922
        %3924 = vmatmul.f32.gmra.mxu0 %v3704
        %v3925 = vpop.f32.mrf.mxu0
        %v3926 = vadd.f32 0.0, %v3925
        %3927 = vmatmul.f32.gmra.mxu0 %v3708
        %v3928 = vpop.f32.mrf.mxu0
        %v3929 = vadd.f32 0.0, %v3928
        %3930 = vmatmul.f32.gmra.mxu0 %v3712
        %v3931 = vpop.f32.mrf.mxu0
        %v3932 = vadd.f32 0.0, %v3931
        %3933 = vmatmul.f32.gmra.mxu0 %v3716
        %v3934 = vpop.f32.mrf.mxu0
        %v3935 = vadd.f32 0.0, %v3934
        %3936 = vmatmul.f32.gmra.mxu0 %v3720
        %v3937 = vpop.f32.mrf.mxu0
        %v3938 = vadd.f32 0.0, %v3937
        %3939 = vmatmul.f32.gmra.mxu0 %v3724
        %v3940 = vpop.f32.mrf.mxu0
        %v3941 = vadd.f32 0.0, %v3940
        %3942 = vmatmul.f32.gmra.mxu0 %v3728
        %v3943 = vpop.f32.mrf.mxu0
        %v3944 = vadd.f32 0.0, %v3943
        %3945 = vmatmul.f32.gmra.mxu0 %v3732
        %v3946 = vpop.f32.mrf.mxu0
        %v3947 = vadd.f32 0.0, %v3946
        %3948 = vmatmul.f32.gmra.mxu0 %v3736
        %v3949 = vpop.f32.mrf.mxu0
        %v3950 = vadd.f32 0.0, %v3949
        %3951 = vmatmul.f32.gmra.mxu0 %v3740
        %v3952 = vpop.f32.mrf.mxu0
        %v3953 = vadd.f32 0.0, %v3952
        %3954 = vmatmul.f32.gmra.mxu0 %v3744
        %v3955 = vpop.f32.mrf.mxu0
        %v3956 = vadd.f32 0.0, %v3955
        %3957 = vmatmul.f32.gmra.mxu0 %v3748
        %v3958 = vpop.f32.mrf.mxu0
        %v3959 = vadd.f32 0.0, %v3958
        %3960 = vmatmul.f32.gmra.mxu0 %v3752
        %v3961 = vpop.f32.mrf.mxu0
        %v3962 = vadd.f32 0.0, %v3961
        %3963 = vdwg.mxu0
        %3964 = vmatpush.xpose.msra.mxu0 0.0
        %3965 = vmatpush.xpose.msra.mxu0 0.0
        %3966 = vmatpush.xpose.msra.mxu0 0.0
        %3967 = vmatpush.xpose.msra.mxu0 0.0
        %3968 = vmatpush.xpose.msra.mxu0 0.0
        %3969 = vmatpush.xpose.msra.mxu0 0.0
        %3970 = vmatpush.xpose.msra.mxu0 0.0
        %3971 = vmatpush.xpose.msra.mxu0 0.0
        %3972 = vmatpush.xpose.msra.mxu0 0.0
        %3973 = vmatpush.xpose.msra.mxu0 0.0
        %3974 = vmatpush.xpose.msra.mxu0 0.0
        %3975 = vmatpush.xpose.msra.mxu0 0.0
        %3976 = vmatpush.xpose.msra.mxu0 0.0
        %3977 = vmatpush.xpose.msra.mxu0 0.0
        %3978 = vmatpush.xpose.msra.mxu0 0.0
        %3979 = vmatpush.xpose.msra.mxu0 %v528
        %3980 = vmatmul.f32.gmra.mxu0 %v3630
        %v3981 = vpop.f32.mrf.mxu0
        %v3982 = vadd.f32 %v3869, %v3981
        %3983 = vmatmul.f32.gmra.mxu0 %v3634
        %v3984 = vpop.f32.mrf.mxu0
        %v3985 = vadd.f32 %v3872, %v3984
        %3986 = vmatmul.f32.gmra.mxu0 %v3638
        %v3987 = vpop.f32.mrf.mxu0
        %v3988 = vadd.f32 %v3875, %v3987
        %3989 = vmatmul.f32.gmra.mxu0 %v3642
        %v3990 = vpop.f32.mrf.mxu0
        %v3991 = vadd.f32 %v3878, %v3990
        %3992 = vmatmul.f32.gmra.mxu0 %v3646
        %v3993 = vpop.f32.mrf.mxu0
        %v3994 = vadd.f32 %v3881, %v3993
        %3995 = vmatmul.f32.gmra.mxu0 %v3650
        %v3996 = vpop.f32.mrf.mxu0
        %v3997 = vadd.f32 %v3884, %v3996
        %3998 = vmatmul.f32.gmra.mxu0 %v3654
        %v3999 = vpop.f32.mrf.mxu0
        %v4000 = vadd.f32 %v3887, %v3999
        %4001 = vmatmul.f32.gmra.mxu0 %v3658
        %v4002 = vpop.f32.mrf.mxu0
        %v4003 = vadd.f32 %v3890, %v4002
        %4004 = vmatmul.f32.gmra.mxu0 %v3662
        %v4005 = vpop.f32.mrf.mxu0
        %v4006 = vadd.f32 %v3893, %v4005
        %4007 = vmatmul.f32.gmra.mxu0 %v3666
        %v4008 = vpop.f32.mrf.mxu0
        %v4009 = vadd.f32 %v3896, %v4008
        %4010 = vmatmul.f32.gmra.mxu0 %v3670
        %v4011 = vpop.f32.mrf.mxu0
        %v4012 = vadd.f32 %v3899, %v4011
        %4013 = vmatmul.f32.gmra.mxu0 %v3674
        %v4014 = vpop.f32.mrf.mxu0
        %v4015 = vadd.f32 %v3902, %v4014
        %4016 = vmatmul.f32.gmra.mxu0 %v3678
        %v4017 = vpop.f32.mrf.mxu0
        %v4018 = vadd.f32 %v3905, %v4017
        %4019 = vmatmul.f32.gmra.mxu0 %v3682
        %v4020 = vpop.f32.mrf.mxu0
        %v4021 = vadd.f32 %v3908, %v4020
        %4022 = vmatmul.f32.gmra.mxu0 %v3686
        %v4023 = vpop.f32.mrf.mxu0
        %v4024 = vadd.f32 %v3911, %v4023
        %4025 = vmatmul.f32.gmra.mxu0 %v3690
        %v4026 = vpop.f32.mrf.mxu0
        %v4027 = vadd.f32 %v3914, %v4026
        %4028 = vmatmul.f32.gmra.mxu0 %v3694
        %v4029 = vpop.f32.mrf.mxu0
        %v4030 = vadd.f32 %v3917, %v4029
        %4031 = vmatmul.f32.gmra.mxu0 %v3698
        %v4032 = vpop.f32.mrf.mxu0
        %v4033 = vadd.f32 %v3920, %v4032
        %4034 = vmatmul.f32.gmra.mxu0 %v3702
        %v4035 = vpop.f32.mrf.mxu0
        %v4036 = vadd.f32 %v3923, %v4035
        %4037 = vmatmul.f32.gmra.mxu0 %v3706
        %v4038 = vpop.f32.mrf.mxu0
        %v4039 = vadd.f32 %v3926, %v4038
        %4040 = vmatmul.f32.gmra.mxu0 %v3710
        %v4041 = vpop.f32.mrf.mxu0
        %v4042 = vadd.f32 %v3929, %v4041
        %4043 = vmatmul.f32.gmra.mxu0 %v3714
        %v4044 = vpop.f32.mrf.mxu0
        %v4045 = vadd.f32 %v3932, %v4044
        %4046 = vmatmul.f32.gmra.mxu0 %v3718
        %v4047 = vpop.f32.mrf.mxu0
        %v4048 = vadd.f32 %v3935, %v4047
        %4049 = vmatmul.f32.gmra.mxu0 %v3722
        %v4050 = vpop.f32.mrf.mxu0
        %v4051 = vadd.f32 %v3938, %v4050
        %4052 = vmatmul.f32.gmra.mxu0 %v3726
        %v4053 = vpop.f32.mrf.mxu0
        %v4054 = vadd.f32 %v3941, %v4053
        %4055 = vmatmul.f32.gmra.mxu0 %v3730
        %v4056 = vpop.f32.mrf.mxu0
        %v4057 = vadd.f32 %v3944, %v4056
        %4058 = vmatmul.f32.gmra.mxu0 %v3734
        %v4059 = vpop.f32.mrf.mxu0
        %v4060 = vadd.f32 %v3947, %v4059
        %4061 = vmatmul.f32.gmra.mxu0 %v3738
        %v4062 = vpop.f32.mrf.mxu0
        %v4063 = vadd.f32 %v3950, %v4062
        %4064 = vmatmul.f32.gmra.mxu0 %v3742
        %v4065 = vpop.f32.mrf.mxu0
        %v4066 = vadd.f32 %v3953, %v4065
        %4067 = vmatmul.f32.gmra.mxu0 %v3746
        %v4068 = vpop.f32.mrf.mxu0
        %v4069 = vadd.f32 %v3956, %v4068
        %4070 = vmatmul.f32.gmra.mxu0 %v3750
        %v4071 = vpop.f32.mrf.mxu0
        %v4072 = vadd.f32 %v3959, %v4071
        %4073 = vmatmul.f32.gmra.mxu0 %v3754
        %v4074 = vpop.f32.mrf.mxu0
        %v4075 = vadd.f32 %v3962, %v4074
        %4076 = vdwg.mxu0
        %v4077 = vrcp.pop %v3757
        %v4078 = vrcp.pop %v3760
        %v4079 = vrcp.pop %v3763
        %v4080 = vrcp.pop %v3766
        %v4081 = vrcp.pop %v3769
        %v4082 = vrcp.pop %v3772
        %v4083 = vrcp.pop %v3775
        %v4084 = vrcp.pop %v3778
        %v4085 = vrcp.pop %v3781
        %v4086 = vrcp.pop %v3784
        %v4087 = vrcp.pop %v3787
        %v4088 = vrcp.pop %v3790
        %v4089 = vrcp.pop %v3793
        %v4090 = vrcp.pop %v3796
        %v4091 = vrcp.pop %v3799
        %v4092 = vrcp.pop %v3802
        %v4093 = vrcp.pop %v3805
        %v4094 = vrcp.pop %v3808
        %v4095 = vrcp.pop %v3811
        %v4096 = vrcp.pop %v3814
        %v4097 = vrcp.pop %v3817
        %v4098 = vrcp.pop %v3820
        %v4099 = vrcp.pop %v3823
        %v4100 = vrcp.pop %v3826
        %v4101 = vrcp.pop %v3829
        %v4102 = vrcp.pop %v3832
        %v4103 = vrcp.pop %v3835
        %v4104 = vrcp.pop %v3838
        %v4105 = vrcp.pop %v3841
        %v4106 = vrcp.pop %v3844
        %v4107 = vrcp.pop %v3847
        %v4108 = vrcp.pop %v3850
        %v4109 = vmul.f32 %v3982, %v4077
        %v4110 = vmul.f32 %v3985, %v4078
        %v4111 = vmul.f32 %v3988, %v4079
        %v4112 = vmul.f32 %v3991, %v4080
        %v4113 = vmul.f32 %v3994, %v4081
        %v4114 = vmul.f32 %v3997, %v4082
        %v4115 = vmul.f32 %v4000, %v4083
        %v4116 = vmul.f32 %v4003, %v4084
        %v4117 = vmul.f32 %v4006, %v4085
        %v4118 = vmul.f32 %v4009, %v4086
        %v4119 = vmul.f32 %v4012, %v4087
        %v4120 = vmul.f32 %v4015, %v4088
        %v4121 = vmul.f32 %v4018, %v4089
        %v4122 = vmul.f32 %v4021, %v4090
        %v4123 = vmul.f32 %v4024, %v4091
        %v4124 = vmul.f32 %v4027, %v4092
        %v4125 = vmul.f32 %v4030, %v4093
        %v4126 = vmul.f32 %v4033, %v4094
        %v4127 = vmul.f32 %v4036, %v4095
        %v4128 = vmul.f32 %v4039, %v4096
        %v4129 = vmul.f32 %v4042, %v4097
        %v4130 = vmul.f32 %v4045, %v4098
        %v4131 = vmul.f32 %v4048, %v4099
        %v4132 = vmul.f32 %v4051, %v4100
        %v4133 = vmul.f32 %v4054, %v4101
        %v4134 = vmul.f32 %v4057, %v4102
        %v4135 = vmul.f32 %v4060, %v4103
        %v4136 = vmul.f32 %v4063, %v4104
        %v4137 = vmul.f32 %v4066, %v4105
        %v4138 = vmul.f32 %v4069, %v4106
        %v4139 = vmul.f32 %v4072, %v4107
        %v4140 = vmul.f32 %v4075, %v4108
        %4173 = vrot.lane.b32.xlu0 %v4109, 16
        %v4174 = vpop.permute.xlu0 %4173
        %4175 = vrot.lane.b32.xlu0 %v4110, 16
        %v4176 = vpop.permute.xlu0 %4175
        %4177 = vrot.lane.b32.xlu0 %v4111, 16
        %v4178 = vpop.permute.xlu0 %4177
        %4179 = vrot.lane.b32.xlu0 %v4112, 16
        %v4180 = vpop.permute.xlu0 %4179
        %4181 = vrot.lane.b32.xlu0 %v4113, 16
        %v4182 = vpop.permute.xlu0 %4181
        %4183 = vrot.lane.b32.xlu0 %v4114, 16
        %v4184 = vpop.permute.xlu0 %4183
        %4185 = vrot.lane.b32.xlu0 %v4115, 16
        %v4186 = vpop.permute.xlu0 %4185
        %4187 = vrot.lane.b32.xlu0 %v4116, 16
        %v4188 = vpop.permute.xlu0 %4187
        %4189 = vrot.lane.b32.xlu0 %v4117, 16
        %v4190 = vpop.permute.xlu0 %4189
        %4191 = vrot.lane.b32.xlu0 %v4118, 16
        %v4192 = vpop.permute.xlu0 %4191
        %4193 = vrot.lane.b32.xlu0 %v4119, 16
        %v4194 = vpop.permute.xlu0 %4193
        %4195 = vrot.lane.b32.xlu0 %v4120, 16
        %v4196 = vpop.permute.xlu0 %4195
        %4197 = vrot.lane.b32.xlu0 %v4121, 16
        %v4198 = vpop.permute.xlu0 %4197
        %4199 = vrot.lane.b32.xlu0 %v4122, 16
        %v4200 = vpop.permute.xlu0 %4199
        %4201 = vrot.lane.b32.xlu0 %v4123, 16
        %v4202 = vpop.permute.xlu0 %4201
        %4203 = vrot.lane.b32.xlu0 %v4124, 16
        %v4204 = vpop.permute.xlu0 %4203
        %4205 = vrot.lane.b32.xlu0 %v4125, 16
        %v4206 = vpop.permute.xlu0 %4205
        %4207 = vrot.lane.b32.xlu0 %v4126, 16
        %v4208 = vpop.permute.xlu0 %4207
        %4209 = vrot.lane.b32.xlu0 %v4127, 16
        %v4210 = vpop.permute.xlu0 %4209
        %4211 = vrot.lane.b32.xlu0 %v4128, 16
        %v4212 = vpop.permute.xlu0 %4211
        %4213 = vrot.lane.b32.xlu0 %v4129, 16
        %v4214 = vpop.permute.xlu0 %4213
        %4215 = vrot.lane.b32.xlu0 %v4130, 16
        %v4216 = vpop.permute.xlu0 %4215
        %4217 = vrot.lane.b32.xlu0 %v4131, 16
        %v4218 = vpop.permute.xlu0 %4217
        %4219 = vrot.lane.b32.xlu0 %v4132, 16
        %v4220 = vpop.permute.xlu0 %4219
        %4221 = vrot.lane.b32.xlu0 %v4133, 16
        %v4222 = vpop.permute.xlu0 %4221
        %4223 = vrot.lane.b32.xlu0 %v4134, 16
        %v4224 = vpop.permute.xlu0 %4223
        %4225 = vrot.lane.b32.xlu0 %v4135, 16
        %v4226 = vpop.permute.xlu0 %4225
        %4227 = vrot.lane.b32.xlu0 %v4136, 16
        %v4228 = vpop.permute.xlu0 %4227
        %4229 = vrot.lane.b32.xlu0 %v4137, 16
        %v4230 = vpop.permute.xlu0 %4229
        %4231 = vrot.lane.b32.xlu0 %v4138, 16
        %v4232 = vpop.permute.xlu0 %4231
        %4233 = vrot.lane.b32.xlu0 %v4139, 16
        %v4234 = vpop.permute.xlu0 %4233
        %4235 = vrot.lane.b32.xlu0 %v4140, 16
        %v4236 = vpop.permute.xlu0 %4235
        %vm4269 = vcmask 195712
        %4270 = vst.msk [vmem:[#allocation3] sm:$0xff] %vm4269, %v4174
        %4271 = vst.msk [vmem:[#allocation3 + $0x8] sm:$0xff] %vm4269, %v4176
        %4272 = vst.msk [vmem:[#allocation3 + $0x10] sm:$0xff] %vm4269, %v4178
        %4273 = vst.msk [vmem:[#allocation3 + $0x18] sm:$0xff] %vm4269, %v4180
        %4274 = vst.msk [vmem:[#allocation3 + $0x20] sm:$0xff] %vm4269, %v4182
        %4275 = vst.msk [vmem:[#allocation3 + $0x28] sm:$0xff] %vm4269, %v4184
        %4276 = vst.msk [vmem:[#allocation3 + $0x30] sm:$0xff] %vm4269, %v4186
        %4277 = vst.msk [vmem:[#allocation3 + $0x38] sm:$0xff] %vm4269, %v4188
        %4278 = vst.msk [vmem:[#allocation3 + $0x40] sm:$0xff] %vm4269, %v4190
        %4279 = vst.msk [vmem:[#allocation3 + $0x48] sm:$0xff] %vm4269, %v4192
        %4280 = vst.msk [vmem:[#allocation3 + $0x50] sm:$0xff] %vm4269, %v4194
        %4281 = vst.msk [vmem:[#allocation3 + $0x58] sm:$0xff] %vm4269, %v4196
        %4282 = vst.msk [vmem:[#allocation3 + $0x60] sm:$0xff] %vm4269, %v4198
        %4283 = vst.msk [vmem:[#allocation3 + $0x68] sm:$0xff] %vm4269, %v4200
        %4284 = vst.msk [vmem:[#allocation3 + $0x70] sm:$0xff] %vm4269, %v4202
        %4285 = vst.msk [vmem:[#allocation3 + $0x78] sm:$0xff] %vm4269, %v4204
        %4286 = vst.msk [vmem:[#allocation3 + $0x80] sm:$0xff] %vm4269, %v4206
        %4287 = vst.msk [vmem:[#allocation3 + $0x88] sm:$0xff] %vm4269, %v4208
        %4288 = vst.msk [vmem:[#allocation3 + $0x90] sm:$0xff] %vm4269, %v4210
        %4289 = vst.msk [vmem:[#allocation3 + $0x98] sm:$0xff] %vm4269, %v4212
        %4290 = vst.msk [vmem:[#allocation3 + $0xa0] sm:$0xff] %vm4269, %v4214
        %4291 = vst.msk [vmem:[#allocation3 + $0xa8] sm:$0xff] %vm4269, %v4216
        %4292 = vst.msk [vmem:[#allocation3 + $0xb0] sm:$0xff] %vm4269, %v4218
        %4293 = vst.msk [vmem:[#allocation3 + $0xb8] sm:$0xff] %vm4269, %v4220
        %4294 = vst.msk [vmem:[#allocation3 + $0xc0] sm:$0xff] %vm4269, %v4222
        %4295 = vst.msk [vmem:[#allocation3 + $0xc8] sm:$0xff] %vm4269, %v4224
        %4296 = vst.msk [vmem:[#allocation3 + $0xd0] sm:$0xff] %vm4269, %v4226
        %4297 = vst.msk [vmem:[#allocation3 + $0xd8] sm:$0xff] %vm4269, %v4228
        %4298 = vst.msk [vmem:[#allocation3 + $0xe0] sm:$0xff] %vm4269, %v4230
        %4299 = vst.msk [vmem:[#allocation3 + $0xe8] sm:$0xff] %vm4269, %v4232
        %4300 = vst.msk [vmem:[#allocation3 + $0xf0] sm:$0xff] %vm4269, %v4234
        %4301 = vst.msk [vmem:[#allocation3 + $0xf8] sm:$0xff] %vm4269, %v4236
        %v4302 = vmul.f32 %v478, %v478
        %v4303 = vmul.f32 %v519, %v519
        %v4304 = vrot.slane %v4302, 4
        %v4305 = vadd.f32 %v4302, %v4304
        %v4306 = vrot.slane %v4305, 2
        %v4307 = vadd.f32 %v4305, %v4306
        %v4308 = vrot.slane %v4307, 1
        %v4309 = vadd.f32 %v4307, %v4308
        %v4310 = vrot.slane %v4303, 4
        %v4311 = vadd.f32 %v4303, %v4310
        %v4312 = vrot.slane %v4311, 2
        %v4313 = vadd.f32 %v4311, %v4312
        %v4314 = vrot.slane %v4313, 1
        %v4315 = vadd.f32 %v4313, %v4314
        %v4316 = vmax.f32 %v4309, 1e-24
        %v4317 = vmax.f32 %v4315, 1e-24
        %v4318 = vrsqrt.pop %v4316
        %v4319 = vmul.f32 %v4318, %v4316
        %v4320 = vmul.f32 %v4319, %v4318
        %v4321 = vmul.f32 0.5, %v4320
        %v4322 = vsub.f32 1.5, %v4321
        %v4323 = vmul.f32 %v4318, %v4322
        %vm4324 = vweird.f32 %v4316
        %vm4325 = vweird.f32 %v4318
        %vm4326 = vmor %vm4324, %vm4325
        %v4327 = vsel %vm4326, %v4318, %v4323
        %v4328 = vrsqrt.pop %v4317
        %v4329 = vmul.f32 %v4328, %v4317
        %v4330 = vmul.f32 %v4329, %v4328
        %v4331 = vmul.f32 0.5, %v4330
        %v4332 = vsub.f32 1.5, %v4331
        %v4333 = vmul.f32 %v4328, %v4332
        %vm4334 = vweird.f32 %v4317
        %vm4335 = vweird.f32 %v4328
        %vm4336 = vmor %vm4334, %vm4335
        %v4337 = vsel %vm4336, %v4328, %v4333
        %v4338 = vmul.f32 %v478, %v4327
        %v4339 = vmul.f32 %v519, %v4337
        %4340 = vrot.lane.b32.xlu0 %v733, 104
        %v4341 = vpop.permute.xlu0 %4340
        %4342 = vrot.lane.b32.xlu0 %v734, 104
        %v4343 = vpop.permute.xlu0 %4342
        %4344 = vrot.lane.b32.xlu0 %v735, 104
        %v4345 = vpop.permute.xlu0 %4344
        %4346 = vrot.lane.b32.xlu0 %v736, 104
        %v4347 = vpop.permute.xlu0 %4346
        %4348 = vrot.lane.b32.xlu0 %v737, 104
        %v4349 = vpop.permute.xlu0 %4348
        %4350 = vrot.lane.b32.xlu0 %v738, 104
        %v4351 = vpop.permute.xlu0 %4350
        %4352 = vrot.lane.b32.xlu0 %v739, 104
        %v4353 = vpop.permute.xlu0 %4352
        %4354 = vrot.lane.b32.xlu0 %v740, 104
        %v4355 = vpop.permute.xlu0 %4354
        %4356 = vrot.lane.b32.xlu0 %v741, 104
        %v4357 = vpop.permute.xlu0 %4356
        %4358 = vrot.lane.b32.xlu0 %v742, 104
        %v4359 = vpop.permute.xlu0 %4358
        %4360 = vrot.lane.b32.xlu0 %v743, 104
        %v4361 = vpop.permute.xlu0 %4360
        %4362 = vrot.lane.b32.xlu0 %v744, 104
        %v4363 = vpop.permute.xlu0 %4362
        %4364 = vrot.lane.b32.xlu0 %v745, 104
        %v4365 = vpop.permute.xlu0 %4364
        %4366 = vrot.lane.b32.xlu0 %v746, 104
        %v4367 = vpop.permute.xlu0 %4366
        %4368 = vrot.lane.b32.xlu0 %v747, 104
        %v4369 = vpop.permute.xlu0 %4368
        %4370 = vrot.lane.b32.xlu0 %v748, 104
        %v4371 = vpop.permute.xlu0 %4370
        %4372 = vrot.lane.b32.xlu0 %v765, 104
        %v4373 = vpop.permute.xlu0 %4372
        %4374 = vrot.lane.b32.xlu0 %v766, 104
        %v4375 = vpop.permute.xlu0 %4374
        %4376 = vrot.lane.b32.xlu0 %v767, 104
        %v4377 = vpop.permute.xlu0 %4376
        %4378 = vrot.lane.b32.xlu0 %v768, 104
        %v4379 = vpop.permute.xlu0 %4378
        %4380 = vrot.lane.b32.xlu0 %v769, 104
        %v4381 = vpop.permute.xlu0 %4380
        %4382 = vrot.lane.b32.xlu0 %v770, 104
        %v4383 = vpop.permute.xlu0 %4382
        %4384 = vrot.lane.b32.xlu0 %v771, 104
        %v4385 = vpop.permute.xlu0 %4384
        %4386 = vrot.lane.b32.xlu0 %v772, 104
        %v4387 = vpop.permute.xlu0 %4386
        %4388 = vrot.lane.b32.xlu0 %v773, 104
        %v4389 = vpop.permute.xlu0 %4388
        %4390 = vrot.lane.b32.xlu0 %v774, 104
        %v4391 = vpop.permute.xlu0 %4390
        %4392 = vrot.lane.b32.xlu0 %v775, 104
        %v4393 = vpop.permute.xlu0 %4392
        %4394 = vrot.lane.b32.xlu0 %v776, 104
        %v4395 = vpop.permute.xlu0 %4394
        %4396 = vrot.lane.b32.xlu0 %v777, 104
        %v4397 = vpop.permute.xlu0 %4396
        %4398 = vrot.lane.b32.xlu0 %v778, 104
        %v4399 = vpop.permute.xlu0 %4398
        %4400 = vrot.lane.b32.xlu0 %v779, 104
        %v4401 = vpop.permute.xlu0 %4400
        %4402 = vrot.lane.b32.xlu0 %v780, 104
        %v4403 = vpop.permute.xlu0 %4402
        %v4404 = vsel %vm819, %v4341, 0
        %v4406 = vsel %vm819, %v4343, 0
        %v4408 = vsel %vm819, %v4345, 0
        %v4410 = vsel %vm819, %v4347, 0
        %v4412 = vsel %vm819, %v4349, 0
        %v4414 = vsel %vm819, %v4351, 0
        %v4416 = vsel %vm819, %v4353, 0
        %v4418 = vsel %vm819, %v4355, 0
        %v4420 = vsel %vm819, %v4357, 0
        %v4422 = vsel %vm819, %v4359, 0
        %v4424 = vsel %vm819, %v4361, 0
        %v4426 = vsel %vm819, %v4363, 0
        %v4428 = vsel %vm819, %v4365, 0
        %v4430 = vsel %vm819, %v4367, 0
        %v4432 = vsel %vm819, %v4369, 0
        %v4434 = vsel %vm819, %v4371, 0
        %v4436 = vsel %vm819, %v4373, 0
        %v4438 = vsel %vm819, %v4375, 0
        %v4440 = vsel %vm819, %v4377, 0
        %v4442 = vsel %vm819, %v4379, 0
        %v4444 = vsel %vm819, %v4381, 0
        %v4446 = vsel %vm819, %v4383, 0
        %v4448 = vsel %vm819, %v4385, 0
        %v4450 = vsel %vm819, %v4387, 0
        %v4452 = vsel %vm819, %v4389, 0
        %v4454 = vsel %vm819, %v4391, 0
        %v4456 = vsel %vm819, %v4393, 0
        %v4458 = vsel %vm819, %v4395, 0
        %v4460 = vsel %vm819, %v4397, 0
        %v4462 = vsel %vm819, %v4399, 0
        %v4464 = vsel %vm819, %v4401, 0
        %v4466 = vsel %vm819, %v4403, 0
        %4468 = vmatpush.msra.mxu0 0.0
        %4469 = vmatpush.msra.mxu0 0.0
        %4470 = vmatpush.msra.mxu0 0.0
        %4471 = vmatpush.msra.mxu0 0.0
        %4472 = vmatpush.msra.mxu0 0.0
        %4473 = vmatpush.msra.mxu0 0.0
        %4474 = vmatpush.msra.mxu0 0.0
        %4475 = vmatpush.msra.mxu0 0.0
        %4476 = vmatpush.msra.mxu0 0.0
        %4477 = vmatpush.msra.mxu0 0.0
        %4478 = vmatpush.msra.mxu0 0.0
        %4479 = vmatpush.msra.mxu0 0.0
        %4480 = vmatpush.msra.mxu0 0.0
        %4481 = vmatpush.msra.mxu0 0.0
        %4482 = vmatpush.msra.mxu0 0.0
        %4483 = vmatpush.msra.mxu0 %v4338
        %4484 = vmatmul.f32.gmra.mxu0 %v4404
        %v4485 = vpop.f32.mrf.mxu0
        %v4486 = vadd.f32 0.0, %v4485
        %4487 = vmatmul.f32.gmra.mxu0 %v4406
        %v4488 = vpop.f32.mrf.mxu0
        %v4489 = vadd.f32 0.0, %v4488
        %4490 = vmatmul.f32.gmra.mxu0 %v4408
        %v4491 = vpop.f32.mrf.mxu0
        %v4492 = vadd.f32 0.0, %v4491
        %4493 = vmatmul.f32.gmra.mxu0 %v4410
        %v4494 = vpop.f32.mrf.mxu0
        %v4495 = vadd.f32 0.0, %v4494
        %4496 = vmatmul.f32.gmra.mxu0 %v4412
        %v4497 = vpop.f32.mrf.mxu0
        %v4498 = vadd.f32 0.0, %v4497
        %4499 = vmatmul.f32.gmra.mxu0 %v4414
        %v4500 = vpop.f32.mrf.mxu0
        %v4501 = vadd.f32 0.0, %v4500
        %4502 = vmatmul.f32.gmra.mxu0 %v4416
        %v4503 = vpop.f32.mrf.mxu0
        %v4504 = vadd.f32 0.0, %v4503
        %4505 = vmatmul.f32.gmra.mxu0 %v4418
        %v4506 = vpop.f32.mrf.mxu0
        %v4507 = vadd.f32 0.0, %v4506
        %4508 = vmatmul.f32.gmra.mxu0 %v4420
        %v4509 = vpop.f32.mrf.mxu0
        %v4510 = vadd.f32 0.0, %v4509
        %4511 = vmatmul.f32.gmra.mxu0 %v4422
        %v4512 = vpop.f32.mrf.mxu0
        %v4513 = vadd.f32 0.0, %v4512
        %4514 = vmatmul.f32.gmra.mxu0 %v4424
        %v4515 = vpop.f32.mrf.mxu0
        %v4516 = vadd.f32 0.0, %v4515
        %4517 = vmatmul.f32.gmra.mxu0 %v4426
        %v4518 = vpop.f32.mrf.mxu0
        %v4519 = vadd.f32 0.0, %v4518
        %4520 = vmatmul.f32.gmra.mxu0 %v4428
        %v4521 = vpop.f32.mrf.mxu0
        %v4522 = vadd.f32 0.0, %v4521
        %4523 = vmatmul.f32.gmra.mxu0 %v4430
        %v4524 = vpop.f32.mrf.mxu0
        %v4525 = vadd.f32 0.0, %v4524
        %4526 = vmatmul.f32.gmra.mxu0 %v4432
        %v4527 = vpop.f32.mrf.mxu0
        %v4528 = vadd.f32 0.0, %v4527
        %4529 = vmatmul.f32.gmra.mxu0 %v4434
        %v4530 = vpop.f32.mrf.mxu0
        %v4531 = vadd.f32 0.0, %v4530
        %4532 = vmatmul.f32.gmra.mxu0 %v4436
        %v4533 = vpop.f32.mrf.mxu0
        %v4534 = vadd.f32 0.0, %v4533
        %4535 = vmatmul.f32.gmra.mxu0 %v4438
        %v4536 = vpop.f32.mrf.mxu0
        %v4537 = vadd.f32 0.0, %v4536
        %4538 = vmatmul.f32.gmra.mxu0 %v4440
        %v4539 = vpop.f32.mrf.mxu0
        %v4540 = vadd.f32 0.0, %v4539
        %4541 = vmatmul.f32.gmra.mxu0 %v4442
        %v4542 = vpop.f32.mrf.mxu0
        %v4543 = vadd.f32 0.0, %v4542
        %4544 = vmatmul.f32.gmra.mxu0 %v4444
        %v4545 = vpop.f32.mrf.mxu0
        %v4546 = vadd.f32 0.0, %v4545
        %4547 = vmatmul.f32.gmra.mxu0 %v4446
        %v4548 = vpop.f32.mrf.mxu0
        %v4549 = vadd.f32 0.0, %v4548
        %4550 = vmatmul.f32.gmra.mxu0 %v4448
        %v4551 = vpop.f32.mrf.mxu0
        %v4552 = vadd.f32 0.0, %v4551
        %4553 = vmatmul.f32.gmra.mxu0 %v4450
        %v4554 = vpop.f32.mrf.mxu0
        %v4555 = vadd.f32 0.0, %v4554
        %4556 = vmatmul.f32.gmra.mxu0 %v4452
        %v4557 = vpop.f32.mrf.mxu0
        %v4558 = vadd.f32 0.0, %v4557
        %4559 = vmatmul.f32.gmra.mxu0 %v4454
        %v4560 = vpop.f32.mrf.mxu0
        %v4561 = vadd.f32 0.0, %v4560
        %4562 = vmatmul.f32.gmra.mxu0 %v4456
        %v4563 = vpop.f32.mrf.mxu0
        %v4564 = vadd.f32 0.0, %v4563
        %4565 = vmatmul.f32.gmra.mxu0 %v4458
        %v4566 = vpop.f32.mrf.mxu0
        %v4567 = vadd.f32 0.0, %v4566
        %4568 = vmatmul.f32.gmra.mxu0 %v4460
        %v4569 = vpop.f32.mrf.mxu0
        %v4570 = vadd.f32 0.0, %v4569
        %4571 = vmatmul.f32.gmra.mxu0 %v4462
        %v4572 = vpop.f32.mrf.mxu0
        %v4573 = vadd.f32 0.0, %v4572
        %4574 = vmatmul.f32.gmra.mxu0 %v4464
        %v4575 = vpop.f32.mrf.mxu0
        %v4576 = vadd.f32 0.0, %v4575
        %4577 = vmatmul.f32.gmra.mxu0 %v4466
        %v4578 = vpop.f32.mrf.mxu0
        %v4579 = vadd.f32 0.0, %v4578
        %4580 = vdwg.mxu0
        %4581 = vmatpush.msra.mxu0 0.0
        %4582 = vmatpush.msra.mxu0 0.0
        %4583 = vmatpush.msra.mxu0 0.0
        %4584 = vmatpush.msra.mxu0 0.0
        %4585 = vmatpush.msra.mxu0 0.0
        %4586 = vmatpush.msra.mxu0 0.0
        %4587 = vmatpush.msra.mxu0 0.0
        %4588 = vmatpush.msra.mxu0 0.0
        %4589 = vmatpush.msra.mxu0 0.0
        %4590 = vmatpush.msra.mxu0 0.0
        %4591 = vmatpush.msra.mxu0 0.0
        %4592 = vmatpush.msra.mxu0 0.0
        %4593 = vmatpush.msra.mxu0 0.0
        %4594 = vmatpush.msra.mxu0 0.0
        %4595 = vmatpush.msra.mxu0 0.0
        %4596 = vmatpush.msra.mxu0 %v4339
        %4597 = vmatmul.f32.gmra.mxu0 %v4404
        %v4598 = vpop.f32.mrf.mxu0
        %v4599 = vadd.f32 0.0, %v4598
        %4600 = vmatmul.f32.gmra.mxu0 %v4406
        %v4601 = vpop.f32.mrf.mxu0
        %v4602 = vadd.f32 0.0, %v4601
        %4603 = vmatmul.f32.gmra.mxu0 %v4408
        %v4604 = vpop.f32.mrf.mxu0
        %v4605 = vadd.f32 0.0, %v4604
        %4606 = vmatmul.f32.gmra.mxu0 %v4410
        %v4607 = vpop.f32.mrf.mxu0
        %v4608 = vadd.f32 0.0, %v4607
        %4609 = vmatmul.f32.gmra.mxu0 %v4412
        %v4610 = vpop.f32.mrf.mxu0
        %v4611 = vadd.f32 0.0, %v4610
        %4612 = vmatmul.f32.gmra.mxu0 %v4414
        %v4613 = vpop.f32.mrf.mxu0
        %v4614 = vadd.f32 0.0, %v4613
        %4615 = vmatmul.f32.gmra.mxu0 %v4416
        %v4616 = vpop.f32.mrf.mxu0
        %v4617 = vadd.f32 0.0, %v4616
        %4618 = vmatmul.f32.gmra.mxu0 %v4418
        %v4619 = vpop.f32.mrf.mxu0
        %v4620 = vadd.f32 0.0, %v4619
        %4621 = vmatmul.f32.gmra.mxu0 %v4420
        %v4622 = vpop.f32.mrf.mxu0
        %v4623 = vadd.f32 0.0, %v4622
        %4624 = vmatmul.f32.gmra.mxu0 %v4422
        %v4625 = vpop.f32.mrf.mxu0
        %v4626 = vadd.f32 0.0, %v4625
        %4627 = vmatmul.f32.gmra.mxu0 %v4424
        %v4628 = vpop.f32.mrf.mxu0
        %v4629 = vadd.f32 0.0, %v4628
        %4630 = vmatmul.f32.gmra.mxu0 %v4426
        %v4631 = vpop.f32.mrf.mxu0
        %v4632 = vadd.f32 0.0, %v4631
        %4633 = vmatmul.f32.gmra.mxu0 %v4428
        %v4634 = vpop.f32.mrf.mxu0
        %v4635 = vadd.f32 0.0, %v4634
        %4636 = vmatmul.f32.gmra.mxu0 %v4430
        %v4637 = vpop.f32.mrf.mxu0
        %v4638 = vadd.f32 0.0, %v4637
        %4639 = vmatmul.f32.gmra.mxu0 %v4432
        %v4640 = vpop.f32.mrf.mxu0
        %v4641 = vadd.f32 0.0, %v4640
        %4642 = vmatmul.f32.gmra.mxu0 %v4434
        %v4643 = vpop.f32.mrf.mxu0
        %v4644 = vadd.f32 0.0, %v4643
        %4645 = vmatmul.f32.gmra.mxu0 %v4436
        %v4646 = vpop.f32.mrf.mxu0
        %v4647 = vadd.f32 0.0, %v4646
        %4648 = vmatmul.f32.gmra.mxu0 %v4438
        %v4649 = vpop.f32.mrf.mxu0
        %v4650 = vadd.f32 0.0, %v4649
        %4651 = vmatmul.f32.gmra.mxu0 %v4440
        %v4652 = vpop.f32.mrf.mxu0
        %v4653 = vadd.f32 0.0, %v4652
        %4654 = vmatmul.f32.gmra.mxu0 %v4442
        %v4655 = vpop.f32.mrf.mxu0
        %v4656 = vadd.f32 0.0, %v4655
        %4657 = vmatmul.f32.gmra.mxu0 %v4444
        %v4658 = vpop.f32.mrf.mxu0
        %v4659 = vadd.f32 0.0, %v4658
        %4660 = vmatmul.f32.gmra.mxu0 %v4446
        %v4661 = vpop.f32.mrf.mxu0
        %v4662 = vadd.f32 0.0, %v4661
        %4663 = vmatmul.f32.gmra.mxu0 %v4448
        %v4664 = vpop.f32.mrf.mxu0
        %v4665 = vadd.f32 0.0, %v4664
        %4666 = vmatmul.f32.gmra.mxu0 %v4450
        %v4667 = vpop.f32.mrf.mxu0
        %v4668 = vadd.f32 0.0, %v4667
        %4669 = vmatmul.f32.gmra.mxu0 %v4452
        %v4670 = vpop.f32.mrf.mxu0
        %v4671 = vadd.f32 0.0, %v4670
        %4672 = vmatmul.f32.gmra.mxu0 %v4454
        %v4673 = vpop.f32.mrf.mxu0
        %v4674 = vadd.f32 0.0, %v4673
        %4675 = vmatmul.f32.gmra.mxu0 %v4456
        %v4676 = vpop.f32.mrf.mxu0
        %v4677 = vadd.f32 0.0, %v4676
        %4678 = vmatmul.f32.gmra.mxu0 %v4458
        %v4679 = vpop.f32.mrf.mxu0
        %v4680 = vadd.f32 0.0, %v4679
        %4681 = vmatmul.f32.gmra.mxu0 %v4460
        %v4682 = vpop.f32.mrf.mxu0
        %v4683 = vadd.f32 0.0, %v4682
        %4684 = vmatmul.f32.gmra.mxu0 %v4462
        %v4685 = vpop.f32.mrf.mxu0
        %v4686 = vadd.f32 0.0, %v4685
        %4687 = vmatmul.f32.gmra.mxu0 %v4464
        %v4688 = vpop.f32.mrf.mxu0
        %v4689 = vadd.f32 0.0, %v4688
        %4690 = vmatmul.f32.gmra.mxu0 %v4466
        %v4691 = vpop.f32.mrf.mxu0
        %v4692 = vadd.f32 0.0, %v4691
        %4693 = vdwg.mxu0
        %v4694 = vmax.f32 %v4486, %v4599
        %4695 = vmax.xlane.f32.xlu0 %v4694
        %v4696 = vpop.xlane.xlu0 %4695
        %v4697 = vmax.f32 %v4489, %v4602
        %4698 = vmax.xlane.f32.xlu0 %v4697
        %v4699 = vpop.xlane.xlu0 %4698
        %v4700 = vmax.f32 %v4492, %v4605
        %4701 = vmax.xlane.f32.xlu0 %v4700
        %v4702 = vpop.xlane.xlu0 %4701
        %v4703 = vmax.f32 %v4495, %v4608
        %4704 = vmax.xlane.f32.xlu0 %v4703
        %v4705 = vpop.xlane.xlu0 %4704
        %v4706 = vmax.f32 %v4498, %v4611
        %4707 = vmax.xlane.f32.xlu0 %v4706
        %v4708 = vpop.xlane.xlu0 %4707
        %v4709 = vmax.f32 %v4501, %v4614
        %4710 = vmax.xlane.f32.xlu0 %v4709
        %v4711 = vpop.xlane.xlu0 %4710
        %v4712 = vmax.f32 %v4504, %v4617
        %4713 = vmax.xlane.f32.xlu0 %v4712
        %v4714 = vpop.xlane.xlu0 %4713
        %v4715 = vmax.f32 %v4507, %v4620
        %4716 = vmax.xlane.f32.xlu0 %v4715
        %v4717 = vpop.xlane.xlu0 %4716
        %v4718 = vmax.f32 %v4510, %v4623
        %4719 = vmax.xlane.f32.xlu0 %v4718
        %v4720 = vpop.xlane.xlu0 %4719
        %v4721 = vmax.f32 %v4513, %v4626
        %4722 = vmax.xlane.f32.xlu0 %v4721
        %v4723 = vpop.xlane.xlu0 %4722
        %v4724 = vmax.f32 %v4516, %v4629
        %4725 = vmax.xlane.f32.xlu0 %v4724
        %v4726 = vpop.xlane.xlu0 %4725
        %v4727 = vmax.f32 %v4519, %v4632
        %4728 = vmax.xlane.f32.xlu0 %v4727
        %v4729 = vpop.xlane.xlu0 %4728
        %v4730 = vmax.f32 %v4522, %v4635
        %4731 = vmax.xlane.f32.xlu0 %v4730
        %v4732 = vpop.xlane.xlu0 %4731
        %v4733 = vmax.f32 %v4525, %v4638
        %4734 = vmax.xlane.f32.xlu0 %v4733
        %v4735 = vpop.xlane.xlu0 %4734
        %v4736 = vmax.f32 %v4528, %v4641
        %4737 = vmax.xlane.f32.xlu0 %v4736
        %v4738 = vpop.xlane.xlu0 %4737
        %v4739 = vmax.f32 %v4531, %v4644
        %4740 = vmax.xlane.f32.xlu0 %v4739
        %v4741 = vpop.xlane.xlu0 %4740
        %v4742 = vmax.f32 %v4534, %v4647
        %4743 = vmax.xlane.f32.xlu0 %v4742
        %v4744 = vpop.xlane.xlu0 %4743
        %v4745 = vmax.f32 %v4537, %v4650
        %4746 = vmax.xlane.f32.xlu0 %v4745
        %v4747 = vpop.xlane.xlu0 %4746
        %v4748 = vmax.f32 %v4540, %v4653
        %4749 = vmax.xlane.f32.xlu0 %v4748
        %v4750 = vpop.xlane.xlu0 %4749
        %v4751 = vmax.f32 %v4543, %v4656
        %4752 = vmax.xlane.f32.xlu0 %v4751
        %v4753 = vpop.xlane.xlu0 %4752
        %v4754 = vmax.f32 %v4546, %v4659
        %4755 = vmax.xlane.f32.xlu0 %v4754
        %v4756 = vpop.xlane.xlu0 %4755
        %v4757 = vmax.f32 %v4549, %v4662
        %4758 = vmax.xlane.f32.xlu0 %v4757
        %v4759 = vpop.xlane.xlu0 %4758
        %v4760 = vmax.f32 %v4552, %v4665
        %4761 = vmax.xlane.f32.xlu0 %v4760
        %v4762 = vpop.xlane.xlu0 %4761
        %v4763 = vmax.f32 %v4555, %v4668
        %4764 = vmax.xlane.f32.xlu0 %v4763
        %v4765 = vpop.xlane.xlu0 %4764
        %v4766 = vmax.f32 %v4558, %v4671
        %4767 = vmax.xlane.f32.xlu0 %v4766
        %v4768 = vpop.xlane.xlu0 %4767
        %v4769 = vmax.f32 %v4561, %v4674
        %4770 = vmax.xlane.f32.xlu0 %v4769
        %v4771 = vpop.xlane.xlu0 %4770
        %v4772 = vmax.f32 %v4564, %v4677
        %4773 = vmax.xlane.f32.xlu0 %v4772
        %v4774 = vpop.xlane.xlu0 %4773
        %v4775 = vmax.f32 %v4567, %v4680
        %4776 = vmax.xlane.f32.xlu0 %v4775
        %v4777 = vpop.xlane.xlu0 %4776
        %v4778 = vmax.f32 %v4570, %v4683
        %4779 = vmax.xlane.f32.xlu0 %v4778
        %v4780 = vpop.xlane.xlu0 %4779
        %v4781 = vmax.f32 %v4573, %v4686
        %4782 = vmax.xlane.f32.xlu0 %v4781
        %v4783 = vpop.xlane.xlu0 %4782
        %v4784 = vmax.f32 %v4576, %v4689
        %4785 = vmax.xlane.f32.xlu0 %v4784
        %v4786 = vpop.xlane.xlu0 %4785
        %v4787 = vmax.f32 %v4579, %v4692
        %4788 = vmax.xlane.f32.xlu0 %v4787
        %v4789 = vpop.xlane.xlu0 %4788
        %v4790 = vsub.f32 %v4486, %v4696
        %v4791 = vsub.f32 %v4599, %v4696
        %v4792 = vsub.f32 %v4489, %v4699
        %v4793 = vsub.f32 %v4602, %v4699
        %v4794 = vsub.f32 %v4492, %v4702
        %v4795 = vsub.f32 %v4605, %v4702
        %v4796 = vsub.f32 %v4495, %v4705
        %v4797 = vsub.f32 %v4608, %v4705
        %v4798 = vsub.f32 %v4498, %v4708
        %v4799 = vsub.f32 %v4611, %v4708
        %v4800 = vsub.f32 %v4501, %v4711
        %v4801 = vsub.f32 %v4614, %v4711
        %v4802 = vsub.f32 %v4504, %v4714
        %v4803 = vsub.f32 %v4617, %v4714
        %v4804 = vsub.f32 %v4507, %v4717
        %v4805 = vsub.f32 %v4620, %v4717
        %v4806 = vsub.f32 %v4510, %v4720
        %v4807 = vsub.f32 %v4623, %v4720
        %v4808 = vsub.f32 %v4513, %v4723
        %v4809 = vsub.f32 %v4626, %v4723
        %v4810 = vsub.f32 %v4516, %v4726
        %v4811 = vsub.f32 %v4629, %v4726
        %v4812 = vsub.f32 %v4519, %v4729
        %v4813 = vsub.f32 %v4632, %v4729
        %v4814 = vsub.f32 %v4522, %v4732
        %v4815 = vsub.f32 %v4635, %v4732
        %v4816 = vsub.f32 %v4525, %v4735
        %v4817 = vsub.f32 %v4638, %v4735
        %v4818 = vsub.f32 %v4528, %v4738
        %v4819 = vsub.f32 %v4641, %v4738
        %v4820 = vsub.f32 %v4531, %v4741
        %v4821 = vsub.f32 %v4644, %v4741
        %v4822 = vsub.f32 %v4534, %v4744
        %v4823 = vsub.f32 %v4647, %v4744
        %v4824 = vsub.f32 %v4537, %v4747
        %v4825 = vsub.f32 %v4650, %v4747
        %v4826 = vsub.f32 %v4540, %v4750
        %v4827 = vsub.f32 %v4653, %v4750
        %v4828 = vsub.f32 %v4543, %v4753
        %v4829 = vsub.f32 %v4656, %v4753
        %v4830 = vsub.f32 %v4546, %v4756
        %v4831 = vsub.f32 %v4659, %v4756
        %v4832 = vsub.f32 %v4549, %v4759
        %v4833 = vsub.f32 %v4662, %v4759
        %v4834 = vsub.f32 %v4552, %v4762
        %v4835 = vsub.f32 %v4665, %v4762
        %v4836 = vsub.f32 %v4555, %v4765
        %v4837 = vsub.f32 %v4668, %v4765
        %v4838 = vsub.f32 %v4558, %v4768
        %v4839 = vsub.f32 %v4671, %v4768
        %v4840 = vsub.f32 %v4561, %v4771
        %v4841 = vsub.f32 %v4674, %v4771
        %v4842 = vsub.f32 %v4564, %v4774
        %v4843 = vsub.f32 %v4677, %v4774
        %v4844 = vsub.f32 %v4567, %v4777
        %v4845 = vsub.f32 %v4680, %v4777
        %v4846 = vsub.f32 %v4570, %v4780
        %v4847 = vsub.f32 %v4683, %v4780
        %v4848 = vsub.f32 %v4573, %v4783
        %v4849 = vsub.f32 %v4686, %v4783
        %v4850 = vsub.f32 %v4576, %v4786
        %v4851 = vsub.f32 %v4689, %v4786
        %v4852 = vsub.f32 %v4579, %v4789
        %v4853 = vsub.f32 %v4692, %v4789
        %v4854 = vmul.f32 %v4790, 1.442695
        %v4855 = vpow.pop %v4854
        %v4856 = vmul.f32 %v4791, 1.442695
        %v4857 = vpow.pop %v4856
        %v4858 = vmul.f32 %v4792, 1.442695
        %v4859 = vpow.pop %v4858
        %v4860 = vmul.f32 %v4793, 1.442695
        %v4861 = vpow.pop %v4860
        %v4862 = vmul.f32 %v4794, 1.442695
        %v4863 = vpow.pop %v4862
        %v4864 = vmul.f32 %v4795, 1.442695
        %v4865 = vpow.pop %v4864
        %v4866 = vmul.f32 %v4796, 1.442695
        %v4867 = vpow.pop %v4866
        %v4868 = vmul.f32 %v4797, 1.442695
        %v4869 = vpow.pop %v4868
        %v4870 = vmul.f32 %v4798, 1.442695
        %v4871 = vpow.pop %v4870
        %v4872 = vmul.f32 %v4799, 1.442695
        %v4873 = vpow.pop %v4872
        %v4874 = vmul.f32 %v4800, 1.442695
        %v4875 = vpow.pop %v4874
        %v4876 = vmul.f32 %v4801, 1.442695
        %v4877 = vpow.pop %v4876
        %v4878 = vmul.f32 %v4802, 1.442695
        %v4879 = vpow.pop %v4878
        %v4880 = vmul.f32 %v4803, 1.442695
        %v4881 = vpow.pop %v4880
        %v4882 = vmul.f32 %v4804, 1.442695
        %v4883 = vpow.pop %v4882
        %v4884 = vmul.f32 %v4805, 1.442695
        %v4885 = vpow.pop %v4884
        %v4886 = vmul.f32 %v4806, 1.442695
        %v4887 = vpow.pop %v4886
        %v4888 = vmul.f32 %v4807, 1.442695
        %v4889 = vpow.pop %v4888
        %v4890 = vmul.f32 %v4808, 1.442695
        %v4891 = vpow.pop %v4890
        %v4892 = vmul.f32 %v4809, 1.442695
        %v4893 = vpow.pop %v4892
        %v4894 = vmul.f32 %v4810, 1.442695
        %v4895 = vpow.pop %v4894
        %v4896 = vmul.f32 %v4811, 1.442695
        %v4897 = vpow.pop %v4896
        %v4898 = vmul.f32 %v4812, 1.442695
        %v4899 = vpow.pop %v4898
        %v4900 = vmul.f32 %v4813, 1.442695
        %v4901 = vpow.pop %v4900
        %v4902 = vmul.f32 %v4814, 1.442695
        %v4903 = vpow.pop %v4902
        %v4904 = vmul.f32 %v4815, 1.442695
        %v4905 = vpow.pop %v4904
        %v4906 = vmul.f32 %v4816, 1.442695
        %v4907 = vpow.pop %v4906
        %v4908 = vmul.f32 %v4817, 1.442695
        %v4909 = vpow.pop %v4908
        %v4910 = vmul.f32 %v4818, 1.442695
        %v4911 = vpow.pop %v4910
        %v4912 = vmul.f32 %v4819, 1.442695
        %v4913 = vpow.pop %v4912
        %v4914 = vmul.f32 %v4820, 1.442695
        %v4915 = vpow.pop %v4914
        %v4916 = vmul.f32 %v4821, 1.442695
        %v4917 = vpow.pop %v4916
        %v4918 = vmul.f32 %v4822, 1.442695
        %v4919 = vpow.pop %v4918
        %v4920 = vmul.f32 %v4823, 1.442695
        %v4921 = vpow.pop %v4920
        %v4922 = vmul.f32 %v4824, 1.442695
        %v4923 = vpow.pop %v4922
        %v4924 = vmul.f32 %v4825, 1.442695
        %v4925 = vpow.pop %v4924
        %v4926 = vmul.f32 %v4826, 1.442695
        %v4927 = vpow.pop %v4926
        %v4928 = vmul.f32 %v4827, 1.442695
        %v4929 = vpow.pop %v4928
        %v4930 = vmul.f32 %v4828, 1.442695
        %v4931 = vpow.pop %v4930
        %v4932 = vmul.f32 %v4829, 1.442695
        %v4933 = vpow.pop %v4932
        %v4934 = vmul.f32 %v4830, 1.442695
        %v4935 = vpow.pop %v4934
        %v4936 = vmul.f32 %v4831, 1.442695
        %v4937 = vpow.pop %v4936
        %v4938 = vmul.f32 %v4832, 1.442695
        %v4939 = vpow.pop %v4938
        %v4940 = vmul.f32 %v4833, 1.442695
        %v4941 = vpow.pop %v4940
        %v4942 = vmul.f32 %v4834, 1.442695
        %v4943 = vpow.pop %v4942
        %v4944 = vmul.f32 %v4835, 1.442695
        %v4945 = vpow.pop %v4944
        %v4946 = vmul.f32 %v4836, 1.442695
        %v4947 = vpow.pop %v4946
        %v4948 = vmul.f32 %v4837, 1.442695
        %v4949 = vpow.pop %v4948
        %v4950 = vmul.f32 %v4838, 1.442695
        %v4951 = vpow.pop %v4950
        %v4952 = vmul.f32 %v4839, 1.442695
        %v4953 = vpow.pop %v4952
        %v4954 = vmul.f32 %v4840, 1.442695
        %v4955 = vpow.pop %v4954
        %v4956 = vmul.f32 %v4841, 1.442695
        %v4957 = vpow.pop %v4956
        %v4958 = vmul.f32 %v4842, 1.442695
        %v4959 = vpow.pop %v4958
        %v4960 = vmul.f32 %v4843, 1.442695
        %v4961 = vpow.pop %v4960
        %v4962 = vmul.f32 %v4844, 1.442695
        %v4963 = vpow.pop %v4962
        %v4964 = vmul.f32 %v4845, 1.442695
        %v4965 = vpow.pop %v4964
        %v4966 = vmul.f32 %v4846, 1.442695
        %v4967 = vpow.pop %v4966
        %v4968 = vmul.f32 %v4847, 1.442695
        %v4969 = vpow.pop %v4968
        %v4970 = vmul.f32 %v4848, 1.442695
        %v4971 = vpow.pop %v4970
        %v4972 = vmul.f32 %v4849, 1.442695
        %v4973 = vpow.pop %v4972
        %v4974 = vmul.f32 %v4850, 1.442695
        %v4975 = vpow.pop %v4974
        %v4976 = vmul.f32 %v4851, 1.442695
        %v4977 = vpow.pop %v4976
        %v4978 = vmul.f32 %v4852, 1.442695
        %v4979 = vpow.pop %v4978
        %v4980 = vmul.f32 %v4853, 1.442695
        %v4981 = vpow.pop %v4980
        %v4982 = vadd.f32 %v4855, %v4857
        %4983 = vadd.xlane.f32.xlu0 %v4982
        %v4984 = vpop.xlane.xlu0 %4983
        %v4985 = vadd.f32 %v4859, %v4861
        %4986 = vadd.xlane.f32.xlu0 %v4985
        %v4987 = vpop.xlane.xlu0 %4986
        %v4988 = vadd.f32 %v4863, %v4865
        %4989 = vadd.xlane.f32.xlu0 %v4988
        %v4990 = vpop.xlane.xlu0 %4989
        %v4991 = vadd.f32 %v4867, %v4869
        %4992 = vadd.xlane.f32.xlu0 %v4991
        %v4993 = vpop.xlane.xlu0 %4992
        %v4994 = vadd.f32 %v4871, %v4873
        %4995 = vadd.xlane.f32.xlu0 %v4994
        %v4996 = vpop.xlane.xlu0 %4995
        %v4997 = vadd.f32 %v4875, %v4877
        %4998 = vadd.xlane.f32.xlu0 %v4997
        %v4999 = vpop.xlane.xlu0 %4998
        %v5000 = vadd.f32 %v4879, %v4881
        %5001 = vadd.xlane.f32.xlu0 %v5000
        %v5002 = vpop.xlane.xlu0 %5001
        %v5003 = vadd.f32 %v4883, %v4885
        %5004 = vadd.xlane.f32.xlu0 %v5003
        %v5005 = vpop.xlane.xlu0 %5004
        %v5006 = vadd.f32 %v4887, %v4889
        %5007 = vadd.xlane.f32.xlu0 %v5006
        %v5008 = vpop.xlane.xlu0 %5007
        %v5009 = vadd.f32 %v4891, %v4893
        %5010 = vadd.xlane.f32.xlu0 %v5009
        %v5011 = vpop.xlane.xlu0 %5010
        %v5012 = vadd.f32 %v4895, %v4897
        %5013 = vadd.xlane.f32.xlu0 %v5012
        %v5014 = vpop.xlane.xlu0 %5013
        %v5015 = vadd.f32 %v4899, %v4901
        %5016 = vadd.xlane.f32.xlu0 %v5015
        %v5017 = vpop.xlane.xlu0 %5016
        %v5018 = vadd.f32 %v4903, %v4905
        %5019 = vadd.xlane.f32.xlu0 %v5018
        %v5020 = vpop.xlane.xlu0 %5019
        %v5021 = vadd.f32 %v4907, %v4909
        %5022 = vadd.xlane.f32.xlu0 %v5021
        %v5023 = vpop.xlane.xlu0 %5022
        %v5024 = vadd.f32 %v4911, %v4913
        %5025 = vadd.xlane.f32.xlu0 %v5024
        %v5026 = vpop.xlane.xlu0 %5025
        %v5027 = vadd.f32 %v4915, %v4917
        %5028 = vadd.xlane.f32.xlu0 %v5027
        %v5029 = vpop.xlane.xlu0 %5028
        %v5030 = vadd.f32 %v4919, %v4921
        %5031 = vadd.xlane.f32.xlu0 %v5030
        %v5032 = vpop.xlane.xlu0 %5031
        %v5033 = vadd.f32 %v4923, %v4925
        %5034 = vadd.xlane.f32.xlu0 %v5033
        %v5035 = vpop.xlane.xlu0 %5034
        %v5036 = vadd.f32 %v4927, %v4929
        %5037 = vadd.xlane.f32.xlu0 %v5036
        %v5038 = vpop.xlane.xlu0 %5037
        %v5039 = vadd.f32 %v4931, %v4933
        %5040 = vadd.xlane.f32.xlu0 %v5039
        %v5041 = vpop.xlane.xlu0 %5040
        %v5042 = vadd.f32 %v4935, %v4937
        %5043 = vadd.xlane.f32.xlu0 %v5042
        %v5044 = vpop.xlane.xlu0 %5043
        %v5045 = vadd.f32 %v4939, %v4941
        %5046 = vadd.xlane.f32.xlu0 %v5045
        %v5047 = vpop.xlane.xlu0 %5046
        %v5048 = vadd.f32 %v4943, %v4945
        %5049 = vadd.xlane.f32.xlu0 %v5048
        %v5050 = vpop.xlane.xlu0 %5049
        %v5051 = vadd.f32 %v4947, %v4949
        %5052 = vadd.xlane.f32.xlu0 %v5051
        %v5053 = vpop.xlane.xlu0 %5052
        %v5054 = vadd.f32 %v4951, %v4953
        %5055 = vadd.xlane.f32.xlu0 %v5054
        %v5056 = vpop.xlane.xlu0 %5055
        %v5057 = vadd.f32 %v4955, %v4957
        %5058 = vadd.xlane.f32.xlu0 %v5057
        %v5059 = vpop.xlane.xlu0 %5058
        %v5060 = vadd.f32 %v4959, %v4961
        %5061 = vadd.xlane.f32.xlu0 %v5060
        %v5062 = vpop.xlane.xlu0 %5061
        %v5063 = vadd.f32 %v4963, %v4965
        %5064 = vadd.xlane.f32.xlu0 %v5063
        %v5065 = vpop.xlane.xlu0 %5064
        %v5066 = vadd.f32 %v4967, %v4969
        %5067 = vadd.xlane.f32.xlu0 %v5066
        %v5068 = vpop.xlane.xlu0 %5067
        %v5069 = vadd.f32 %v4971, %v4973
        %5070 = vadd.xlane.f32.xlu0 %v5069
        %v5071 = vpop.xlane.xlu0 %5070
        %v5072 = vadd.f32 %v4975, %v4977
        %5073 = vadd.xlane.f32.xlu0 %v5072
        %v5074 = vpop.xlane.xlu0 %5073
        %v5075 = vadd.f32 %v4979, %v4981
        %5076 = vadd.xlane.f32.xlu0 %v5075
        %v5077 = vpop.xlane.xlu0 %5076
        %5078 = vmatpush.xpose.msra.mxu0 0.0
        %5079 = vmatpush.xpose.msra.mxu0 0.0
        %5080 = vmatpush.xpose.msra.mxu0 0.0
        %5081 = vmatpush.xpose.msra.mxu0 0.0
        %5082 = vmatpush.xpose.msra.mxu0 0.0
        %5083 = vmatpush.xpose.msra.mxu0 0.0
        %5084 = vmatpush.xpose.msra.mxu0 0.0
        %5085 = vmatpush.xpose.msra.mxu0 0.0
        %5086 = vmatpush.xpose.msra.mxu0 0.0
        %5087 = vmatpush.xpose.msra.mxu0 0.0
        %5088 = vmatpush.xpose.msra.mxu0 0.0
        %5089 = vmatpush.xpose.msra.mxu0 0.0
        %5090 = vmatpush.xpose.msra.mxu0 0.0
        %5091 = vmatpush.xpose.msra.mxu0 0.0
        %5092 = vmatpush.xpose.msra.mxu0 0.0
        %5093 = vmatpush.xpose.msra.mxu0 %v490
        %5094 = vmatmul.f32.gmra.mxu0 %v4855
        %v5095 = vpop.f32.mrf.mxu0
        %v5096 = vadd.f32 0.0, %v5095
        %5097 = vmatmul.f32.gmra.mxu0 %v4859
        %v5098 = vpop.f32.mrf.mxu0
        %v5099 = vadd.f32 0.0, %v5098
        %5100 = vmatmul.f32.gmra.mxu0 %v4863
        %v5101 = vpop.f32.mrf.mxu0
        %v5102 = vadd.f32 0.0, %v5101
        %5103 = vmatmul.f32.gmra.mxu0 %v4867
        %v5104 = vpop.f32.mrf.mxu0
        %v5105 = vadd.f32 0.0, %v5104
        %5106 = vmatmul.f32.gmra.mxu0 %v4871
        %v5107 = vpop.f32.mrf.mxu0
        %v5108 = vadd.f32 0.0, %v5107
        %5109 = vmatmul.f32.gmra.mxu0 %v4875
        %v5110 = vpop.f32.mrf.mxu0
        %v5111 = vadd.f32 0.0, %v5110
        %5112 = vmatmul.f32.gmra.mxu0 %v4879
        %v5113 = vpop.f32.mrf.mxu0
        %v5114 = vadd.f32 0.0, %v5113
        %5115 = vmatmul.f32.gmra.mxu0 %v4883
        %v5116 = vpop.f32.mrf.mxu0
        %v5117 = vadd.f32 0.0, %v5116
        %5118 = vmatmul.f32.gmra.mxu0 %v4887
        %v5119 = vpop.f32.mrf.mxu0
        %v5120 = vadd.f32 0.0, %v5119
        %5121 = vmatmul.f32.gmra.mxu0 %v4891
        %v5122 = vpop.f32.mrf.mxu0
        %v5123 = vadd.f32 0.0, %v5122
        %5124 = vmatmul.f32.gmra.mxu0 %v4895
        %v5125 = vpop.f32.mrf.mxu0
        %v5126 = vadd.f32 0.0, %v5125
        %5127 = vmatmul.f32.gmra.mxu0 %v4899
        %v5128 = vpop.f32.mrf.mxu0
        %v5129 = vadd.f32 0.0, %v5128
        %5130 = vmatmul.f32.gmra.mxu0 %v4903
        %v5131 = vpop.f32.mrf.mxu0
        %v5132 = vadd.f32 0.0, %v5131
        %5133 = vmatmul.f32.gmra.mxu0 %v4907
        %v5134 = vpop.f32.mrf.mxu0
        %v5135 = vadd.f32 0.0, %v5134
        %5136 = vmatmul.f32.gmra.mxu0 %v4911
        %v5137 = vpop.f32.mrf.mxu0
        %v5138 = vadd.f32 0.0, %v5137
        %5139 = vmatmul.f32.gmra.mxu0 %v4915
        %v5140 = vpop.f32.mrf.mxu0
        %v5141 = vadd.f32 0.0, %v5140
        %5142 = vmatmul.f32.gmra.mxu0 %v4919
        %v5143 = vpop.f32.mrf.mxu0
        %v5144 = vadd.f32 0.0, %v5143
        %5145 = vmatmul.f32.gmra.mxu0 %v4923
        %v5146 = vpop.f32.mrf.mxu0
        %v5147 = vadd.f32 0.0, %v5146
        %5148 = vmatmul.f32.gmra.mxu0 %v4927
        %v5149 = vpop.f32.mrf.mxu0
        %v5150 = vadd.f32 0.0, %v5149
        %5151 = vmatmul.f32.gmra.mxu0 %v4931
        %v5152 = vpop.f32.mrf.mxu0
        %v5153 = vadd.f32 0.0, %v5152
        %5154 = vmatmul.f32.gmra.mxu0 %v4935
        %v5155 = vpop.f32.mrf.mxu0
        %v5156 = vadd.f32 0.0, %v5155
        %5157 = vmatmul.f32.gmra.mxu0 %v4939
        %v5158 = vpop.f32.mrf.mxu0
        %v5159 = vadd.f32 0.0, %v5158
        %5160 = vmatmul.f32.gmra.mxu0 %v4943
        %v5161 = vpop.f32.mrf.mxu0
        %v5162 = vadd.f32 0.0, %v5161
        %5163 = vmatmul.f32.gmra.mxu0 %v4947
        %v5164 = vpop.f32.mrf.mxu0
        %v5165 = vadd.f32 0.0, %v5164
        %5166 = vmatmul.f32.gmra.mxu0 %v4951
        %v5167 = vpop.f32.mrf.mxu0
        %v5168 = vadd.f32 0.0, %v5167
        %5169 = vmatmul.f32.gmra.mxu0 %v4955
        %v5170 = vpop.f32.mrf.mxu0
        %v5171 = vadd.f32 0.0, %v5170
        %5172 = vmatmul.f32.gmra.mxu0 %v4959
        %v5173 = vpop.f32.mrf.mxu0
        %v5174 = vadd.f32 0.0, %v5173
        %5175 = vmatmul.f32.gmra.mxu0 %v4963
        %v5176 = vpop.f32.mrf.mxu0
        %v5177 = vadd.f32 0.0, %v5176
        %5178 = vmatmul.f32.gmra.mxu0 %v4967
        %v5179 = vpop.f32.mrf.mxu0
        %v5180 = vadd.f32 0.0, %v5179
        %5181 = vmatmul.f32.gmra.mxu0 %v4971
        %v5182 = vpop.f32.mrf.mxu0
        %v5183 = vadd.f32 0.0, %v5182
        %5184 = vmatmul.f32.gmra.mxu0 %v4975
        %v5185 = vpop.f32.mrf.mxu0
        %v5186 = vadd.f32 0.0, %v5185
        %5187 = vmatmul.f32.gmra.mxu0 %v4979
        %v5188 = vpop.f32.mrf.mxu0
        %v5189 = vadd.f32 0.0, %v5188
        %5190 = vdwg.mxu0
        %5191 = vmatpush.xpose.msra.mxu0 0.0
        %5192 = vmatpush.xpose.msra.mxu0 0.0
        %5193 = vmatpush.xpose.msra.mxu0 0.0
        %5194 = vmatpush.xpose.msra.mxu0 0.0
        %5195 = vmatpush.xpose.msra.mxu0 0.0
        %5196 = vmatpush.xpose.msra.mxu0 0.0
        %5197 = vmatpush.xpose.msra.mxu0 0.0
        %5198 = vmatpush.xpose.msra.mxu0 0.0
        %5199 = vmatpush.xpose.msra.mxu0 0.0
        %5200 = vmatpush.xpose.msra.mxu0 0.0
        %5201 = vmatpush.xpose.msra.mxu0 0.0
        %5202 = vmatpush.xpose.msra.mxu0 0.0
        %5203 = vmatpush.xpose.msra.mxu0 0.0
        %5204 = vmatpush.xpose.msra.mxu0 0.0
        %5205 = vmatpush.xpose.msra.mxu0 0.0
        %5206 = vmatpush.xpose.msra.mxu0 %v531
        %5207 = vmatmul.f32.gmra.mxu0 %v4857
        %v5208 = vpop.f32.mrf.mxu0
        %v5209 = vadd.f32 %v5096, %v5208
        %5210 = vmatmul.f32.gmra.mxu0 %v4861
        %v5211 = vpop.f32.mrf.mxu0
        %v5212 = vadd.f32 %v5099, %v5211
        %5213 = vmatmul.f32.gmra.mxu0 %v4865
        %v5214 = vpop.f32.mrf.mxu0
        %v5215 = vadd.f32 %v5102, %v5214
        %5216 = vmatmul.f32.gmra.mxu0 %v4869
        %v5217 = vpop.f32.mrf.mxu0
        %v5218 = vadd.f32 %v5105, %v5217
        %5219 = vmatmul.f32.gmra.mxu0 %v4873
        %v5220 = vpop.f32.mrf.mxu0
        %v5221 = vadd.f32 %v5108, %v5220
        %5222 = vmatmul.f32.gmra.mxu0 %v4877
        %v5223 = vpop.f32.mrf.mxu0
        %v5224 = vadd.f32 %v5111, %v5223
        %5225 = vmatmul.f32.gmra.mxu0 %v4881
        %v5226 = vpop.f32.mrf.mxu0
        %v5227 = vadd.f32 %v5114, %v5226
        %5228 = vmatmul.f32.gmra.mxu0 %v4885
        %v5229 = vpop.f32.mrf.mxu0
        %v5230 = vadd.f32 %v5117, %v5229
        %5231 = vmatmul.f32.gmra.mxu0 %v4889
        %v5232 = vpop.f32.mrf.mxu0
        %v5233 = vadd.f32 %v5120, %v5232
        %5234 = vmatmul.f32.gmra.mxu0 %v4893
        %v5235 = vpop.f32.mrf.mxu0
        %v5236 = vadd.f32 %v5123, %v5235
        %5237 = vmatmul.f32.gmra.mxu0 %v4897
        %v5238 = vpop.f32.mrf.mxu0
        %v5239 = vadd.f32 %v5126, %v5238
        %5240 = vmatmul.f32.gmra.mxu0 %v4901
        %v5241 = vpop.f32.mrf.mxu0
        %v5242 = vadd.f32 %v5129, %v5241
        %5243 = vmatmul.f32.gmra.mxu0 %v4905
        %v5244 = vpop.f32.mrf.mxu0
        %v5245 = vadd.f32 %v5132, %v5244
        %5246 = vmatmul.f32.gmra.mxu0 %v4909
        %v5247 = vpop.f32.mrf.mxu0
        %v5248 = vadd.f32 %v5135, %v5247
        %5249 = vmatmul.f32.gmra.mxu0 %v4913
        %v5250 = vpop.f32.mrf.mxu0
        %v5251 = vadd.f32 %v5138, %v5250
        %5252 = vmatmul.f32.gmra.mxu0 %v4917
        %v5253 = vpop.f32.mrf.mxu0
        %v5254 = vadd.f32 %v5141, %v5253
        %5255 = vmatmul.f32.gmra.mxu0 %v4921
        %v5256 = vpop.f32.mrf.mxu0
        %v5257 = vadd.f32 %v5144, %v5256
        %5258 = vmatmul.f32.gmra.mxu0 %v4925
        %v5259 = vpop.f32.mrf.mxu0
        %v5260 = vadd.f32 %v5147, %v5259
        %5261 = vmatmul.f32.gmra.mxu0 %v4929
        %v5262 = vpop.f32.mrf.mxu0
        %v5263 = vadd.f32 %v5150, %v5262
        %5264 = vmatmul.f32.gmra.mxu0 %v4933
        %v5265 = vpop.f32.mrf.mxu0
        %v5266 = vadd.f32 %v5153, %v5265
        %5267 = vmatmul.f32.gmra.mxu0 %v4937
        %v5268 = vpop.f32.mrf.mxu0
        %v5269 = vadd.f32 %v5156, %v5268
        %5270 = vmatmul.f32.gmra.mxu0 %v4941
        %v5271 = vpop.f32.mrf.mxu0
        %v5272 = vadd.f32 %v5159, %v5271
        %5273 = vmatmul.f32.gmra.mxu0 %v4945
        %v5274 = vpop.f32.mrf.mxu0
        %v5275 = vadd.f32 %v5162, %v5274
        %5276 = vmatmul.f32.gmra.mxu0 %v4949
        %v5277 = vpop.f32.mrf.mxu0
        %v5278 = vadd.f32 %v5165, %v5277
        %5279 = vmatmul.f32.gmra.mxu0 %v4953
        %v5280 = vpop.f32.mrf.mxu0
        %v5281 = vadd.f32 %v5168, %v5280
        %5282 = vmatmul.f32.gmra.mxu0 %v4957
        %v5283 = vpop.f32.mrf.mxu0
        %v5284 = vadd.f32 %v5171, %v5283
        %5285 = vmatmul.f32.gmra.mxu0 %v4961
        %v5286 = vpop.f32.mrf.mxu0
        %v5287 = vadd.f32 %v5174, %v5286
        %5288 = vmatmul.f32.gmra.mxu0 %v4965
        %v5289 = vpop.f32.mrf.mxu0
        %v5290 = vadd.f32 %v5177, %v5289
        %5291 = vmatmul.f32.gmra.mxu0 %v4969
        %v5292 = vpop.f32.mrf.mxu0
        %v5293 = vadd.f32 %v5180, %v5292
        %5294 = vmatmul.f32.gmra.mxu0 %v4973
        %v5295 = vpop.f32.mrf.mxu0
        %v5296 = vadd.f32 %v5183, %v5295
        %5297 = vmatmul.f32.gmra.mxu0 %v4977
        %v5298 = vpop.f32.mrf.mxu0
        %v5299 = vadd.f32 %v5186, %v5298
        %5300 = vmatmul.f32.gmra.mxu0 %v4981
        %v5301 = vpop.f32.mrf.mxu0
        %v5302 = vadd.f32 %v5189, %v5301
        %5303 = vdwg.mxu0
        %v5304 = vrcp.pop %v4984
        %v5305 = vrcp.pop %v4987
        %v5306 = vrcp.pop %v4990
        %v5307 = vrcp.pop %v4993
        %v5308 = vrcp.pop %v4996
        %v5309 = vrcp.pop %v4999
        %v5310 = vrcp.pop %v5002
        %v5311 = vrcp.pop %v5005
        %v5312 = vrcp.pop %v5008
        %v5313 = vrcp.pop %v5011
        %v5314 = vrcp.pop %v5014
        %v5315 = vrcp.pop %v5017
        %v5316 = vrcp.pop %v5020
        %v5317 = vrcp.pop %v5023
        %v5318 = vrcp.pop %v5026
        %v5319 = vrcp.pop %v5029
        %v5320 = vrcp.pop %v5032
        %v5321 = vrcp.pop %v5035
        %v5322 = vrcp.pop %v5038
        %v5323 = vrcp.pop %v5041
        %v5324 = vrcp.pop %v5044
        %v5325 = vrcp.pop %v5047
        %v5326 = vrcp.pop %v5050
        %v5327 = vrcp.pop %v5053
        %v5328 = vrcp.pop %v5056
        %v5329 = vrcp.pop %v5059
        %v5330 = vrcp.pop %v5062
        %v5331 = vrcp.pop %v5065
        %v5332 = vrcp.pop %v5068
        %v5333 = vrcp.pop %v5071
        %v5334 = vrcp.pop %v5074
        %v5335 = vrcp.pop %v5077
        %v5336 = vmul.f32 %v5209, %v5304
        %v5337 = vmul.f32 %v5212, %v5305
        %v5338 = vmul.f32 %v5215, %v5306
        %v5339 = vmul.f32 %v5218, %v5307
        %v5340 = vmul.f32 %v5221, %v5308
        %v5341 = vmul.f32 %v5224, %v5309
        %v5342 = vmul.f32 %v5227, %v5310
        %v5343 = vmul.f32 %v5230, %v5311
        %v5344 = vmul.f32 %v5233, %v5312
        %v5345 = vmul.f32 %v5236, %v5313
        %v5346 = vmul.f32 %v5239, %v5314
        %v5347 = vmul.f32 %v5242, %v5315
        %v5348 = vmul.f32 %v5245, %v5316
        %v5349 = vmul.f32 %v5248, %v5317
        %v5350 = vmul.f32 %v5251, %v5318
        %v5351 = vmul.f32 %v5254, %v5319
        %v5352 = vmul.f32 %v5257, %v5320
        %v5353 = vmul.f32 %v5260, %v5321
        %v5354 = vmul.f32 %v5263, %v5322
        %v5355 = vmul.f32 %v5266, %v5323
        %v5356 = vmul.f32 %v5269, %v5324
        %v5357 = vmul.f32 %v5272, %v5325
        %v5358 = vmul.f32 %v5275, %v5326
        %v5359 = vmul.f32 %v5278, %v5327
        %v5360 = vmul.f32 %v5281, %v5328
        %v5361 = vmul.f32 %v5284, %v5329
        %v5362 = vmul.f32 %v5287, %v5330
        %v5363 = vmul.f32 %v5290, %v5331
        %v5364 = vmul.f32 %v5293, %v5332
        %v5365 = vmul.f32 %v5296, %v5333
        %v5366 = vmul.f32 %v5299, %v5334
        %v5367 = vmul.f32 %v5302, %v5335
        %5400 = vrot.lane.b32.xlu0 %v5336, 24
        %v5401 = vpop.permute.xlu0 %5400
        %5402 = vrot.lane.b32.xlu0 %v5337, 24
        %v5403 = vpop.permute.xlu0 %5402
        %5404 = vrot.lane.b32.xlu0 %v5338, 24
        %v5405 = vpop.permute.xlu0 %5404
        %5406 = vrot.lane.b32.xlu0 %v5339, 24
        %v5407 = vpop.permute.xlu0 %5406
        %5408 = vrot.lane.b32.xlu0 %v5340, 24
        %v5409 = vpop.permute.xlu0 %5408
        %5410 = vrot.lane.b32.xlu0 %v5341, 24
        %v5411 = vpop.permute.xlu0 %5410
        %5412 = vrot.lane.b32.xlu0 %v5342, 24
        %v5413 = vpop.permute.xlu0 %5412
        %5414 = vrot.lane.b32.xlu0 %v5343, 24
        %v5415 = vpop.permute.xlu0 %5414
        %5416 = vrot.lane.b32.xlu0 %v5344, 24
        %v5417 = vpop.permute.xlu0 %5416
        %5418 = vrot.lane.b32.xlu0 %v5345, 24
        %v5419 = vpop.permute.xlu0 %5418
        %5420 = vrot.lane.b32.xlu0 %v5346, 24
        %v5421 = vpop.permute.xlu0 %5420
        %5422 = vrot.lane.b32.xlu0 %v5347, 24
        %v5423 = vpop.permute.xlu0 %5422
        %5424 = vrot.lane.b32.xlu0 %v5348, 24
        %v5425 = vpop.permute.xlu0 %5424
        %5426 = vrot.lane.b32.xlu0 %v5349, 24
        %v5427 = vpop.permute.xlu0 %5426
        %5428 = vrot.lane.b32.xlu0 %v5350, 24
        %v5429 = vpop.permute.xlu0 %5428
        %5430 = vrot.lane.b32.xlu0 %v5351, 24
        %v5431 = vpop.permute.xlu0 %5430
        %5432 = vrot.lane.b32.xlu0 %v5352, 24
        %v5433 = vpop.permute.xlu0 %5432
        %5434 = vrot.lane.b32.xlu0 %v5353, 24
        %v5435 = vpop.permute.xlu0 %5434
        %5436 = vrot.lane.b32.xlu0 %v5354, 24
        %v5437 = vpop.permute.xlu0 %5436
        %5438 = vrot.lane.b32.xlu0 %v5355, 24
        %v5439 = vpop.permute.xlu0 %5438
        %5440 = vrot.lane.b32.xlu0 %v5356, 24
        %v5441 = vpop.permute.xlu0 %5440
        %5442 = vrot.lane.b32.xlu0 %v5357, 24
        %v5443 = vpop.permute.xlu0 %5442
        %5444 = vrot.lane.b32.xlu0 %v5358, 24
        %v5445 = vpop.permute.xlu0 %5444
        %5446 = vrot.lane.b32.xlu0 %v5359, 24
        %v5447 = vpop.permute.xlu0 %5446
        %5448 = vrot.lane.b32.xlu0 %v5360, 24
        %v5449 = vpop.permute.xlu0 %5448
        %5450 = vrot.lane.b32.xlu0 %v5361, 24
        %v5451 = vpop.permute.xlu0 %5450
        %5452 = vrot.lane.b32.xlu0 %v5362, 24
        %v5453 = vpop.permute.xlu0 %5452
        %5454 = vrot.lane.b32.xlu0 %v5363, 24
        %v5455 = vpop.permute.xlu0 %5454
        %5456 = vrot.lane.b32.xlu0 %v5364, 24
        %v5457 = vpop.permute.xlu0 %5456
        %5458 = vrot.lane.b32.xlu0 %v5365, 24
        %v5459 = vpop.permute.xlu0 %5458
        %5460 = vrot.lane.b32.xlu0 %v5366, 24
        %v5461 = vpop.permute.xlu0 %5460
        %5462 = vrot.lane.b32.xlu0 %v5367, 24
        %v5463 = vpop.permute.xlu0 %5462
        %vm5496 = vcmask 261312
        %5497 = vst.msk [vmem:[#allocation3] sm:$0xff] %vm5496, %v5401
        %5498 = vst.msk [vmem:[#allocation3 + $0x8] sm:$0xff] %vm5496, %v5403
        %5499 = vst.msk [vmem:[#allocation3 + $0x10] sm:$0xff] %vm5496, %v5405
        %5500 = vst.msk [vmem:[#allocation3 + $0x18] sm:$0xff] %vm5496, %v5407
        %5501 = vst.msk [vmem:[#allocation3 + $0x20] sm:$0xff] %vm5496, %v5409
        %5502 = vst.msk [vmem:[#allocation3 + $0x28] sm:$0xff] %vm5496, %v5411
        %5503 = vst.msk [vmem:[#allocation3 + $0x30] sm:$0xff] %vm5496, %v5413
        %5504 = vst.msk [vmem:[#allocation3 + $0x38] sm:$0xff] %vm5496, %v5415
        %5505 = vst.msk [vmem:[#allocation3 + $0x40] sm:$0xff] %vm5496, %v5417
        %5506 = vst.msk [vmem:[#allocation3 + $0x48] sm:$0xff] %vm5496, %v5419
        %5507 = vst.msk [vmem:[#allocation3 + $0x50] sm:$0xff] %vm5496, %v5421
        %5508 = vst.msk [vmem:[#allocation3 + $0x58] sm:$0xff] %vm5496, %v5423
        %5509 = vst.msk [vmem:[#allocation3 + $0x60] sm:$0xff] %vm5496, %v5425
        %5510 = vst.msk [vmem:[#allocation3 + $0x68] sm:$0xff] %vm5496, %v5427
        %5511 = vst.msk [vmem:[#allocation3 + $0x70] sm:$0xff] %vm5496, %v5429
        %5512 = vst.msk [vmem:[#allocation3 + $0x78] sm:$0xff] %vm5496, %v5431
        %5513 = vst.msk [vmem:[#allocation3 + $0x80] sm:$0xff] %vm5496, %v5433
        %5514 = vst.msk [vmem:[#allocation3 + $0x88] sm:$0xff] %vm5496, %v5435
        %5515 = vst.msk [vmem:[#allocation3 + $0x90] sm:$0xff] %vm5496, %v5437
        %5516 = vst.msk [vmem:[#allocation3 + $0x98] sm:$0xff] %vm5496, %v5439
        %5517 = vst.msk [vmem:[#allocation3 + $0xa0] sm:$0xff] %vm5496, %v5441
        %5518 = vst.msk [vmem:[#allocation3 + $0xa8] sm:$0xff] %vm5496, %v5443
        %5519 = vst.msk [vmem:[#allocation3 + $0xb0] sm:$0xff] %vm5496, %v5445
        %5520 = vst.msk [vmem:[#allocation3 + $0xb8] sm:$0xff] %vm5496, %v5447
        %5521 = vst.msk [vmem:[#allocation3 + $0xc0] sm:$0xff] %vm5496, %v5449
        %5522 = vst.msk [vmem:[#allocation3 + $0xc8] sm:$0xff] %vm5496, %v5451
        %5523 = vst.msk [vmem:[#allocation3 + $0xd0] sm:$0xff] %vm5496, %v5453
        %5524 = vst.msk [vmem:[#allocation3 + $0xd8] sm:$0xff] %vm5496, %v5455
        %5525 = vst.msk [vmem:[#allocation3 + $0xe0] sm:$0xff] %vm5496, %v5457
        %5526 = vst.msk [vmem:[#allocation3 + $0xe8] sm:$0xff] %vm5496, %v5459
        %5527 = vst.msk [vmem:[#allocation3 + $0xf0] sm:$0xff] %vm5496, %v5461
        %5528 = vst.msk [vmem:[#allocation3 + $0xf8] sm:$0xff] %vm5496, %v5463
        %v5529 = vld [vmem:[%s4] sm:$0xff]
        %v5530 = vld [vmem:[%s4 + $0x8] sm:$0xff]
        %v5531 = vld [vmem:[%s4 + $0x10] sm:$0xff]
        %v5532 = vld [vmem:[%s4 + $0x18] sm:$0xff]
        %v5533 = vld [vmem:[#allocation3] sm:$0xff]
        %v5534 = vld [vmem:[#allocation3 + $0x8] sm:$0xff]
        %v5535 = vld [vmem:[#allocation3 + $0x10] sm:$0xff]
        %v5536 = vld [vmem:[#allocation3 + $0x18] sm:$0xff]
        %v5537 = vld [vmem:[#allocation3 + $0x20] sm:$0xff]
        %v5538 = vld [vmem:[#allocation3 + $0x28] sm:$0xff]
        %v5539 = vld [vmem:[#allocation3 + $0x30] sm:$0xff]
        %v5540 = vld [vmem:[#allocation3 + $0x38] sm:$0xff]
        %v5541 = vld [vmem:[#allocation3 + $0x40] sm:$0xff]
        %v5542 = vld [vmem:[#allocation3 + $0x48] sm:$0xff]
        %v5543 = vld [vmem:[#allocation3 + $0x50] sm:$0xff]
        %v5544 = vld [vmem:[#allocation3 + $0x58] sm:$0xff]
        %v5545 = vld [vmem:[#allocation3 + $0x60] sm:$0xff]
        %v5546 = vld [vmem:[#allocation3 + $0x68] sm:$0xff]
        %v5547 = vld [vmem:[#allocation3 + $0x70] sm:$0xff]
        %v5548 = vld [vmem:[#allocation3 + $0x78] sm:$0xff]
        %v5549 = vld [vmem:[#allocation3 + $0x80] sm:$0xff]
        %v5550 = vld [vmem:[#allocation3 + $0x88] sm:$0xff]
        %v5551 = vld [vmem:[#allocation3 + $0x90] sm:$0xff]
        %v5552 = vld [vmem:[#allocation3 + $0x98] sm:$0xff]
        %v5553 = vld [vmem:[#allocation3 + $0xa0] sm:$0xff]
        %v5554 = vld [vmem:[#allocation3 + $0xa8] sm:$0xff]
        %v5555 = vld [vmem:[#allocation3 + $0xb0] sm:$0xff]
        %v5556 = vld [vmem:[#allocation3 + $0xb8] sm:$0xff]
        %v5557 = vld [vmem:[#allocation3 + $0xc0] sm:$0xff]
        %v5558 = vld [vmem:[#allocation3 + $0xc8] sm:$0xff]
        %v5559 = vld [vmem:[#allocation3 + $0xd0] sm:$0xff]
        %v5560 = vld [vmem:[#allocation3 + $0xd8] sm:$0xff]
        %v5561 = vld [vmem:[#allocation3 + $0xe0] sm:$0xff]
        %v5562 = vld [vmem:[#allocation3 + $0xe8] sm:$0xff]
        %v5563 = vld [vmem:[#allocation3 + $0xf0] sm:$0xff]
        %v5564 = vld [vmem:[#allocation3 + $0xf8] sm:$0xff]
        %v5566 = vsel %vm348, %v5529, 0
        %v5569 = vsel %vm348, %v5530, 0
        %v5572 = vsel %vm348, %v5531, 0
        %v5575 = vsel %vm348, %v5532, 0
        %v5578 = vsel %vm348, %v5533, 0
        %v5581 = vsel %vm348, %v5534, 0
        %v5584 = vsel %vm348, %v5535, 0
        %v5587 = vsel %vm348, %v5536, 0
        %v5590 = vsel %vm348, %v5537, 0
        %v5593 = vsel %vm348, %v5538, 0
        %v5596 = vsel %vm348, %v5539, 0
        %v5599 = vsel %vm348, %v5540, 0
        %v5602 = vsel %vm348, %v5541, 0
        %v5605 = vsel %vm348, %v5542, 0
        %v5608 = vsel %vm348, %v5543, 0
        %v5611 = vsel %vm348, %v5544, 0
        %v5614 = vsel %vm348, %v5545, 0
        %v5617 = vsel %vm348, %v5546, 0
        %v5620 = vsel %vm348, %v5547, 0
        %v5623 = vsel %vm348, %v5548, 0
        %v5626 = vsel %vm348, %v5549, 0
        %v5629 = vsel %vm348, %v5550, 0
        %v5632 = vsel %vm348, %v5551, 0
        %v5635 = vsel %vm348, %v5552, 0
        %v5638 = vsel %vm348, %v5553, 0
        %v5641 = vsel %vm348, %v5554, 0
        %v5644 = vsel %vm348, %v5555, 0
        %v5647 = vsel %vm348, %v5556, 0
        %v5650 = vsel %vm348, %v5557, 0
        %v5653 = vsel %vm348, %v5558, 0
        %v5656 = vsel %vm348, %v5559, 0
        %v5659 = vsel %vm348, %v5560, 0
        %v5662 = vsel %vm348, %v5561, 0
        %v5665 = vsel %vm348, %v5562, 0
        %v5668 = vsel %vm348, %v5563, 0
        %v5671 = vsel %vm348, %v5564, 0
        %5673 = vmatpush.xpose.msra.mxu0 %v5623
        %5674 = vmatpush.xpose.msra.mxu0 %v5620
        %5675 = vmatpush.xpose.msra.mxu0 %v5617
        %5676 = vmatpush.xpose.msra.mxu0 %v5614
        %5677 = vmatpush.xpose.msra.mxu0 %v5611
        %5678 = vmatpush.xpose.msra.mxu0 %v5608
        %5679 = vmatpush.xpose.msra.mxu0 %v5605
        %5680 = vmatpush.xpose.msra.mxu0 %v5602
        %5681 = vmatpush.xpose.msra.mxu0 %v5599
        %5682 = vmatpush.xpose.msra.mxu0 %v5596
        %5683 = vmatpush.xpose.msra.mxu0 %v5593
        %5684 = vmatpush.xpose.msra.mxu0 %v5590
        %5685 = vmatpush.xpose.msra.mxu0 %v5587
        %5686 = vmatpush.xpose.msra.mxu0 %v5584
        %5687 = vmatpush.xpose.msra.mxu0 %v5581
        %5688 = vmatpush.xpose.msra.mxu0 %v5578
        %5689 = vmatmul.f32.gmra.mxu0 %v5566
        %v5690 = vpop.f32.mrf.mxu0
        %v5691 = vadd.f32 0.0, %v5690
        %5692 = vmatmul.f32.gmra.mxu0 %v5569
        %v5693 = vpop.f32.mrf.mxu0
        %v5694 = vadd.f32 0.0, %v5693
        %5695 = vmatmul.f32.gmra.mxu0 %v5572
        %v5696 = vpop.f32.mrf.mxu0
        %v5697 = vadd.f32 0.0, %v5696
        %5698 = vmatmul.f32.gmra.mxu0 %v5575
        %v5699 = vpop.f32.mrf.mxu0
        %v5700 = vadd.f32 0.0, %v5699
        %5701 = vdwg.mxu0
        %5702 = vmatpush.xpose.msra.mxu0 %v5671
        %5703 = vmatpush.xpose.msra.mxu0 %v5668
        %5704 = vmatpush.xpose.msra.mxu0 %v5665
        %5705 = vmatpush.xpose.msra.mxu0 %v5662
        %5706 = vmatpush.xpose.msra.mxu0 %v5659
        %5707 = vmatpush.xpose.msra.mxu0 %v5656
        %5708 = vmatpush.xpose.msra.mxu0 %v5653
        %5709 = vmatpush.xpose.msra.mxu0 %v5650
        %5710 = vmatpush.xpose.msra.mxu0 %v5647
        %5711 = vmatpush.xpose.msra.mxu0 %v5644
        %5712 = vmatpush.xpose.msra.mxu0 %v5641
        %5713 = vmatpush.xpose.msra.mxu0 %v5638
        %5714 = vmatpush.xpose.msra.mxu0 %v5635
        %5715 = vmatpush.xpose.msra.mxu0 %v5632
        %5716 = vmatpush.xpose.msra.mxu0 %v5629
        %5717 = vmatpush.xpose.msra.mxu0 %v5626
        %5718 = vmatmul.f32.gmra.mxu0 %v5566
        %v5719 = vpop.f32.mrf.mxu0
        %v5720 = vadd.f32 0.0, %v5719
        %5721 = vmatmul.f32.gmra.mxu0 %v5569
        %v5722 = vpop.f32.mrf.mxu0
        %v5723 = vadd.f32 0.0, %v5722
        %5724 = vmatmul.f32.gmra.mxu0 %v5572
        %v5725 = vpop.f32.mrf.mxu0
        %v5726 = vadd.f32 0.0, %v5725
        %5727 = vmatmul.f32.gmra.mxu0 %v5575
        %v5728 = vpop.f32.mrf.mxu0
        %v5729 = vadd.f32 0.0, %v5728
        %5730 = vdwg.mxu0
        %5731 = vst [vmem:[%s327] sm:$0xff] %v5691
        %5732 = vst [vmem:[%s327 + $0x8] sm:$0xff] %v5720
        %5733 = vst [vmem:[%s327 + $0x10] sm:$0xff] %v5694
        %5734 = vst [vmem:[%s327 + $0x18] sm:$0xff] %v5723
        %5735 = vst [vmem:[%s327 + $0x20] sm:$0xff] %v5697
        %5736 = vst [vmem:[%s327 + $0x28] sm:$0xff] %v5726
        %5737 = vst [vmem:[%s327 + $0x30] sm:$0xff] %v5700
        %5738 = vst [vmem:[%s327 + $0x38] sm:$0xff] %v5729
        %s5739 = sand.u32 %s171, 1
        %s5740 = scalar_lea.sflag [#allocation6], %s5739
        %s5741 = sand.u32 %s171, 1
        %s5742 = smul.addr %s5741, 64
        %s5743 = scalar_lea.vmem [#allocation11], %s5742
        // Predicated region
        $region57: #{tpu_custom_call.1} parent=43 // pred_check
          %p5744 = pneg %p181
        $region58: #{tpu_custom_call.1} parent=43 // pred_check_branch
          %5746 = sbr.rel (%p5744) target = $region60
        $region59: #{tpu_custom_call.1} parent=43 // pred_region
          %5748 = vsyncadd %s5740, 0
          %s5749 = smul.addr %s27, 8
          %s5750 = smul.addr %s5749, 8
          %s5751 = scalar_lea.hbm %s6, %s5750
          %s5752 = sshll.u32 %s5743, 4
          %s5753 = int_to_ptr.vmem [resolvable:$true] %s5752
          %s5754 = sshll.u32 %s5751, 4
          %s5755 = int_to_ptr.hbm [resolvable:$true] %s5754
          %5760 = dma.vmem_to_hbm [thread:$0]  %s5753, 1024, %s5755, %s5740, 256, 256, 16
        $region60: #{tpu_custom_call.1} parent=43 // pred_fallthru
          _
      $region44: #{tpu_custom_call.1} parent=5 // pred_fallthru
        _
      %p5761 = scmp.le.s32.totalorder 2, %s22
      // Predicated region
      $region61: #{tpu_custom_call.1} parent=5 // pred_check
        %p5762 = pneg %p5761
      $region62: #{tpu_custom_call.1} parent=5 // pred_check_branch
        %5764 = sbr.rel (%p5762) target = $region64
      $region63: #{tpu_custom_call.1} parent=5 // pred_region
        %s5765 = ssub.s32 %s22, 2
        // Predicated region
        $region65: #{tpu_custom_call.1} parent=63 // pred_check
          %p5766 = pneg %p187
        $region66: #{tpu_custom_call.1} parent=63 // pred_check_branch
          %5768 = sbr.rel (%p5766) target = $region68
        $region67: #{tpu_custom_call.1} parent=63 // pred_region
          %s5769 = sand.u32 %s172, 1
          %s5770 = scalar_lea.sflag [#allocation6], %s5769
          %s5771 = sand.u32 %s172, 1
          %s5772 = smul.addr %s5771, 64
          %s5773 = scalar_lea.vmem [#allocation11], %s5772
          %5775 = dma.done %s5770, 1024
        $region68: #{tpu_custom_call.1} parent=63 // pred_fallthru
          _
      $region64: #{tpu_custom_call.1} parent=5 // pred_fallthru
        _
    $region6: #{tpu_custom_call.1} parent=1 // loop_footer
      %s26 = sadd.s32 1, %s22
    $region7: #{tpu_custom_call.1} parent=1 // loop_footer_branch
      %21 = sbr.rel target = $region3
    $region8: #{tpu_custom_call.1} parent=1 // loop_exit
      _
    %5776 = vsyncpa [#allocation5], 1
    %s5777 = scalar_lea.sflag [#allocation5], 1
    %5778 = vsyncpa %s5777, 1
    %5779 = vsyncpa [#allocation9], 1
    %s5780 = scalar_lea.sflag [#allocation9], 1
    %5781 = vsyncpa %s5780, 1
    %5782 = vsyncpa [#allocation6], 1
    %s5783 = scalar_lea.sflag [#allocation6], 1
    %5784 = vsyncpa %s5783, 1
    %5785 = vsyncpa [#allocation7], 1
    %s5786 = scalar_lea.sflag [#allocation7], 1
    %5787 = vsyncpa %s5786, 1

</llo_original>
